<compile_context>
chip_gen: v7x
topology: tpu7x:2x2x1
jax: 0.10.0
libtpu: 0.0.40
codegen_flags: <defaults>
</compile_context>

<pallas_src>
import functools

import numpy as np
import jax
import jax.numpy as jnp
from jax.experimental import pallas as pl
from jax.experimental.pallas import tpu as pltpu

EPS = 1e-5
LANE = 128


def _round_up(x, m):
    return (x + m - 1) // m * m


def _vmem_limit_bytes():
    # ~3/4 of device VMEM: ~96 MiB on v5e/v6e (128 MiB), ~48 MiB on v7x (64 MiB).
    cap = None
    try:
        info = pltpu.get_tpu_info()
        cap = getattr(info, "vmem_capacity_bytes", None)
    except Exception:
        cap = None
    if not cap:
        cap = 64 * 1024 * 1024  # conservative (v7x-sized) fallback
    return min((int(cap) * 3) // 4, 112 * 1024 * 1024)


# -------- fused kernel: ReLU + BN(scale/shift) + 3x3 conv + next-chain BN stats -------- #
def _fused_bn_conv_kernel(x_ref, scale_ref, shift_ref, w_ref, b_ref,
                          out_ref, sum_ref, sq_ref, s2_ref, *, cs):
    # x_ref:   (1, H, W, CP) f32  dense-concat slab block (unpadded).
    # scale/shift: (1, CP) f32    folded BN (zero outside active input channels).
    # w_ref:   (3, 3*CP, OW) bf16 kh-major weights; rows = kw*CP + ci, cols = output window.
    # b_ref:   (1, OW) f32        bias on the new output channels (zero elsewhere).
    # out_ref: (1, H, W, CP) f32  updated slab (aliased with the input slab in HBM).
    # sum/sq_ref: (1, 1, CP) f32  per-image sum / sumsq of relu(updated slab) -> next BN.
    # s2_ref:  ((H+2)*W, 3*CP) bf16 scratch: zero-padded, kw-pre-shifted matmul operand.
    _, H, W, CP = x_ref.shape
    OW = w_ref.shape[-1]
    ce = cs + OW
    HW = H * W

    base = x_ref[0]                                           # (H, W, CP) f32
    scale = scale_ref[...].reshape(1, 1, CP)
    shift = shift_ref[...].reshape(1, 1, CP)
    yn = jnp.maximum(base, 0.0) * scale + shift               # f32 VPU (v5e-friendly)

    # kw-pre-shift (3 shifted copies instead of 9 misaligned window copies).
    # s2[h*W + w, kw*CP + c] = ypad[h, w + kw, c]   with ypad = SAME-padded yn.
    zc = jnp.zeros((H, 1, CP), jnp.float32)
    left = jnp.concatenate([zc, yn[:, :W - 1, :]], axis=1)    # ypad[., w + 0, .]
    right = jnp.concatenate([yn[:, 1:, :], zc], axis=1)       # ypad[., w + 2, .]

    zrow = jnp.zeros((W, 3 * CP), jnp.bfloat16)
    s2_ref[0:W, :] = zrow                                     # top halo row (h = 0)
    s2_ref[(H + 1) * W:(H + 2) * W, :] = zrow                 # bottom halo row (h = H+1)
    s2_ref[W:W + HW, 0:CP] = left.reshape(HW, CP).astype(jnp.bfloat16)
    s2_ref[W:W + HW, CP:2 * CP] = yn.reshape(HW, CP).astype(jnp.bfloat16)
    s2_ref[W:W + HW, 2 * CP:3 * CP] = right.reshape(HW, CP).astype(jnp.bfloat16)

    # 3x3 conv = 3 MXU matmuls (one per kh), bf16 operands, f32 accumulation.
    acc = jnp.zeros((HW, OW), jnp.float32)
    for kh in range(3):
        win = s2_ref[kh * W:kh * W + HW, :]                   # sublane-aligned view
        acc = acc + jnp.dot(win, w_ref[kh], preferred_element_type=jnp.float32)
    acc = (acc + b_ref[...]).reshape(H, W, OW)

    # Dense concat: lanes outside / old lanes inside the window have zero weight columns
    # and zero bias, so acc is exactly 0 there and the f32 passthrough is bit-exact.
    new_win = base[:, :, cs:ce] + acc
    pieces = []
    if cs > 0:
        pieces.append(base[:, :, :cs])
    pieces.append(new_win)
    if ce < CP:
        pieces.append(base[:, :, ce:])
    new_full = pieces[0] if len(pieces) == 1 else jnp.concatenate(pieces, axis=2)
    out_ref[0] = new_full

    # Next chain's BN statistics, fused (no extra HBM pass over the slab).
    r = jnp.maximum(new_full, 0.0)
    sum_ref[0] = jnp.sum(jnp.sum(r, axis=0), axis=0, keepdims=True)       # (1, CP)
    sq_ref[0] = jnp.sum(jnp.sum(r * r, axis=0), axis=0, keepdims=True)    # (1, CP)


def fused_bn_conv(act, scale, shift, wmat, bias, cs):
    N, H, W, CP = act.shape
    OW = wmat.shape[-1]
    Hp = H + 2
    kernel = functools.partial(_fused_bn_conv_kernel, cs=cs)
    return pl.pallas_call(
        kernel,
        out_shape=(jax.ShapeDtypeStruct((N, H, W, CP), jnp.float32),
                   jax.ShapeDtypeStruct((N, 1, CP), jnp.float32),
                   jax.ShapeDtypeStruct((N, 1, CP), jnp.float32)),
        grid=(N,),
        in_specs=[
            pl.BlockSpec((1, H, W, CP), lambda n: (n, 0, 0, 0)),
            pl.BlockSpec((1, CP), lambda n: (0, 0)),            # resident
            pl.BlockSpec((1, CP), lambda n: (0, 0)),            # resident
            pl.BlockSpec((3, 3 * CP, OW), lambda n: (0, 0, 0)),  # resident bf16 weights
            pl.BlockSpec((1, OW), lambda n: (0, 0)),             # resident bias
        ],
        out_specs=(
            pl.BlockSpec((1, H, W, CP), lambda n: (n, 0, 0, 0)),
            pl.BlockSpec((1, 1, CP), lambda n: (n, 0, 0)),
            pl.BlockSpec((1, 1, CP), lambda n: (n, 0, 0)),
        ),
        scratch_shapes=[pltpu.VMEM((Hp * W, 3 * CP), jnp.bfloat16)],
        input_output_aliases={0: 0},                            # slab updated in place
        compiler_params=pltpu.CompilerParams(
            dimension_semantics=("parallel",),
            vmem_limit_bytes=_vmem_limit_bytes()),
    )(act, scale, shift, wmat, bias)


# ----------------------------------- parameters ------------------------------------ #
def init_params(key, in_features, num_chains=4):
    """Per chain i: BN gamma/beta for (i+1)*C channels, Conv2d((i+1)*C -> C, 3x3)."""
    params = []
    for i in range(num_chains):
        cin = (i + 1) * in_features
        key, kw, kb = jax.random.split(key, 3)
        gamma = jnp.ones((cin,), jnp.float32)                  # PyTorch BN default
        beta = jnp.zeros((cin,), jnp.float32)
        w = jax.random.normal(kw, (in_features, cin, 3, 3), jnp.float32) * 0.1  # OIHW
        b = jax.random.normal(kb, (in_features,), jnp.float32) * 0.05
        params.append((gamma, beta, w, b))
    return params


# ------------------------------------- forward ------------------------------------- #
def dense_block_forward(x_nchw, params):
    x = jnp.transpose(x_nchw, (0, 2, 3, 1)).astype(jnp.float32)   # NHWC
    N, H, W, C = x.shape
    num_chains = len(params)
    ctot = (num_chains + 1) * C
    CP = _round_up(ctot, LANE)
    m_true = N * H * W

    # Fixed, lane-padded dense-concat slab; chain i's conv output lands at offset (i+1)*C.
    act = jnp.zeros((N, H, W, CP), jnp.float32).at[..., :C].set(x)

    # Chain-0 BN statistics in plain JAX (tiny); later chains' stats come fused from the
    # conv kernel epilogue (old-channel lanes are bit-identical, so re-summing is exact).
    xr = jnp.maximum(x, 0.0)
    run_sum = jnp.zeros((CP,), jnp.float32).at[:C].set(jnp.sum(xr, axis=(0, 1, 2)))
    run_sq = jnp.zeros((CP,), jnp.float32).at[:C].set(jnp.sum(xr * xr, axis=(0, 1, 2)))

    for i, (gamma, beta, wt, b) in enumerate(params):
        cin = (i + 1) * C
        cs = (cin // LANE) * LANE                 # 128-aligned output-lane window
        ce = _round_up(cin + C, LANE)
        OW = ce - cs
        off = cin - cs

        mean = (run_sum / m_true).reshape(1, CP)
        var = (run_sq / m_true).reshape(1, CP) - mean * mean   # biased var (PyTorch train)

        gamma_p = jnp.zeros((1, CP), jnp.float32).at[0, :cin].set(gamma)
        beta_p = jnp.zeros((1, CP), jnp.float32).at[0, :cin].set(beta)
        scale = gamma_p * jax.lax.rsqrt(var + EPS)             # 0 outside active channels
        shift = beta_p - mean * scale                          # 0 outside active channels

        # kh-major stacked weights restricted to the output window:
        # wmat[kh, kw*CP + ci, off + co] = wt[co, ci, kh, kw]; zero elsewhere.
        w_t = jnp.transpose(wt, (2, 3, 1, 0))                  # (3, 3, cin, C)
        wmat = jnp.zeros((3, 3 * CP, OW), jnp.float32)
        for kw in range(3):
            wmat = wmat.at[:, kw * CP:kw * CP + cin, off:off + C].set(w_t[:, kw])
        wmat = wmat.astype(jnp.bfloat16)
        bias = jnp.zeros((1, OW), jnp.float32).at[0, off:off + C].set(b)

        act, psum, psq = fused_bn_conv(act, scale, shift, wmat, bias, cs)
        run_sum = jnp.sum(psum, axis=0).reshape(CP)
        run_sq = jnp.sum(psq, axis=0).reshape(CP)

    out = act[..., :ctot]
    return jnp.transpose(out, (0, 3, 1, 2))                    # back to NCHW


# ------------------------------- pure-JAX reference --------------------------------- #
def ref_forward(x_nchw, params):
    x = x_nchw.astype(jnp.float32)
    inp = x
    outs = [x]
    for (gamma, beta, wt, b) in params:
        r = jnp.maximum(inp, 0.0)
        mean = jnp.mean(r, axis=(0, 2, 3), keepdims=True)
        var = jnp.mean(r * r, axis=(0, 2, 3), keepdims=True) - mean * mean
        yn = (r - mean) * jax.lax.rsqrt(var + EPS)
        yn = yn * gamma.reshape(1, -1, 1, 1) + beta.reshape(1, -1, 1, 1)
        out = jax.lax.conv_general_dilated(
            yn, wt, window_strides=(1, 1), padding="SAME",
            dimension_numbers=("NCHW", "OIHW", "NCHW"),
        ) + b.reshape(1, -1, 1, 1)
        outs.append(out)
        inp = jnp.concatenate(outs, axis=1)
    return inp


if __name__ == "__main__":
    key = jax.random.PRNGKey(0)
    key, kx = jax.random.split(key)
    N, C, H, W = 2, 4, 16, 16
    x = jax.random.normal(kx, (N, C, H, W), jnp.float32)

    params = init_params(key, in_features=C, num_chains=4)

    out = jax.jit(dense_block_forward)(x, params)
    out = jax.block_until_ready(out)

    ref = jax.block_until_ready(ref_forward(x, params))
    assert out.shape == (N, C * 5, H, W), out.shape
    np.testing.assert_allclose(np.asarray(out), np.asarray(ref), rtol=2e-2, atol=2e-2)

    print("KERNEL_OK")
</pallas_src>

<mosaic_0001>
module attributes {stable_mosaic.version = 11 : i64} {
  func.func @_fused_bn_conv_kernel(%arg0: i32, %arg1: memref<1x16x16x128xf32, #tpu.memory_space<vmem>>, %arg2: memref<1x128xf32, #tpu.memory_space<vmem>>, %arg3: memref<1x128xf32, #tpu.memory_space<vmem>>, %arg4: memref<3x384x128xbf16, #tpu.memory_space<vmem>>, %arg5: memref<1x128xf32, #tpu.memory_space<vmem>>, %arg6: memref<1x16x16x128xf32, #tpu.memory_space<vmem>>, %arg7: memref<1x1x128xf32, #tpu.memory_space<vmem>>, %arg8: memref<1x1x128xf32, #tpu.memory_space<vmem>>, %arg9: memref<288x384xbf16, #tpu.memory_space<vmem>>) attributes {dimension_semantics = [#tpu.dimension_semantics<parallel>], iteration_bounds = array<i64: 2>, scalar_prefetch = 0 : i64, scratch_operands = 1 : i64, tpu.core_type = #tpu.core_type<tc>, window_params = [{transform_indices = @transform_0, window_bounds = array<i64: 1, 16, 16, 128>}, {pipeline_mode = #tpu.pipeline_mode<synchronous>, transform_indices = @transform_1, window_bounds = array<i64: 1, 128>}, {pipeline_mode = #tpu.pipeline_mode<synchronous>, transform_indices = @transform_2, window_bounds = array<i64: 1, 128>}, {pipeline_mode = #tpu.pipeline_mode<synchronous>, transform_indices = @transform_3, window_bounds = array<i64: 3, 384, 128>}, {pipeline_mode = #tpu.pipeline_mode<synchronous>, transform_indices = @transform_4, window_bounds = array<i64: 1, 128>}, {transform_indices = @transform_5, window_bounds = array<i64: 1, 16, 16, 128>}, {transform_indices = @transform_6, window_bounds = array<i64: 1, 1, 128>}, {transform_indices = @transform_7, window_bounds = array<i64: 1, 1, 128>}]} {
    %c0 = arith.constant 0 : index
    %c0_0 = arith.constant 0 : index
    %c0_1 = arith.constant 0 : index
    %c0_2 = arith.constant 0 : index
    %0 = vector.load %arg1[%c0, %c0_0, %c0_1, %c0_2] : memref<1x16x16x128xf32, #tpu.memory_space<vmem>>, vector<1x16x16x128xf32>
    %1 = vector.shape_cast %0 : vector<1x16x16x128xf32> to vector<16x16x128xf32>
    %c0_3 = arith.constant 0 : index
    %c0_4 = arith.constant 0 : index
    %2 = vector.load %arg2[%c0_3, %c0_4] : memref<1x128xf32, #tpu.memory_space<vmem>>, vector<1x128xf32>
    %3 = vector.shape_cast %2 : vector<1x128xf32> to vector<1x1x128xf32>
    %c0_5 = arith.constant 0 : index
    %c0_6 = arith.constant 0 : index
    %4 = vector.load %arg3[%c0_5, %c0_6] : memref<1x128xf32, #tpu.memory_space<vmem>>, vector<1x128xf32>
    %5 = vector.shape_cast %4 : vector<1x128xf32> to vector<1x1x128xf32>
    %cst = arith.constant 0.000000e+00 : f32
    %6 = vector.broadcast %cst : f32 to vector<16x16x128xf32>
    %7 = arith.maximumf %1, %6 : vector<16x16x128xf32>
    %8 = vector.broadcast %3 : vector<1x1x128xf32> to vector<16x16x128xf32>
    %9 = arith.mulf %7, %8 : vector<16x16x128xf32>
    %10 = vector.broadcast %5 : vector<1x1x128xf32> to vector<16x16x128xf32>
    %11 = arith.addf %9, %10 : vector<16x16x128xf32>
    %cst_7 = arith.constant 0.000000e+00 : f32
    %12 = vector.broadcast %cst_7 : f32 to vector<16x1x128xf32>
    %13 = vector.extract_strided_slice %11 {offsets = [0, 0, 0], sizes = [16, 15, 128], strides = [1, 1, 1]} : vector<16x16x128xf32> to vector<16x15x128xf32>
    %14 = tpu.concatenate %12, %13 in 1 : vector<16x1x128xf32>, vector<16x15x128xf32> -> vector<16x16x128xf32>
    %15 = vector.extract_strided_slice %11 {offsets = [0, 1, 0], sizes = [16, 15, 128], strides = [1, 1, 1]} : vector<16x16x128xf32> to vector<16x15x128xf32>
    %16 = tpu.concatenate %15, %12 in 1 : vector<16x15x128xf32>, vector<16x1x128xf32> -> vector<16x16x128xf32>
    %cst_8 = arith.constant 0.000000e+00 : bf16
    %17 = vector.broadcast %cst_8 : bf16 to vector<16x384xbf16>
    %c0_9 = arith.constant 0 : index
    %c0_10 = arith.constant 0 : index
    %18 = vector.load %arg9[%c0_9, %c0_10] : memref<288x384xbf16, #tpu.memory_space<vmem>>, vector<16x384xbf16>
    tpu.vector_store %arg9[%c0_9, %c0_10], %17 {strides = array<i32>} : memref<288x384xbf16, #tpu.memory_space<vmem>>, vector<16x384xbf16>,
    %c272 = arith.constant 272 : index
    %c0_11 = arith.constant 0 : index
    %19 = vector.load %arg9[%c272, %c0_11] : memref<288x384xbf16, #tpu.memory_space<vmem>>, vector<16x384xbf16>
    tpu.vector_store %arg9[%c272, %c0_11], %17 {strides = array<i32>} : memref<288x384xbf16, #tpu.memory_space<vmem>>, vector<16x384xbf16>,
    %20 = vector.shape_cast %14 : vector<16x16x128xf32> to vector<256x128xf32>
    %21 = arith.truncf %20 : vector<256x128xf32> to vector<256x128xbf16>
    %c16 = arith.constant 16 : index
    %c0_12 = arith.constant 0 : index
    %22 = vector.load %arg9[%c16, %c0_12] : memref<288x384xbf16, #tpu.memory_space<vmem>>, vector<256x128xbf16>
    tpu.vector_store %arg9[%c16, %c0_12], %21 {strides = array<i32>} : memref<288x384xbf16, #tpu.memory_space<vmem>>, vector<256x128xbf16>,
    %23 = vector.shape_cast %11 : vector<16x16x128xf32> to vector<256x128xf32>
    %24 = arith.truncf %23 : vector<256x128xf32> to vector<256x128xbf16>
    %c16_13 = arith.constant 16 : index
    %c128 = arith.constant 128 : index
    %25 = vector.load %arg9[%c16_13, %c128] : memref<288x384xbf16, #tpu.memory_space<vmem>>, vector<256x128xbf16>
    tpu.vector_store %arg9[%c16_13, %c128], %24 {strides = array<i32>} : memref<288x384xbf16, #tpu.memory_space<vmem>>, vector<256x128xbf16>,
    %26 = vector.shape_cast %16 : vector<16x16x128xf32> to vector<256x128xf32>
    %27 = arith.truncf %26 : vector<256x128xf32> to vector<256x128xbf16>
    %c16_14 = arith.constant 16 : index
    %c256 = arith.constant 256 : index
    %28 = vector.load %arg9[%c16_14, %c256] : memref<288x384xbf16, #tpu.memory_space<vmem>>, vector<256x128xbf16>
    tpu.vector_store %arg9[%c16_14, %c256], %27 {strides = array<i32>} : memref<288x384xbf16, #tpu.memory_space<vmem>>, vector<256x128xbf16>,
    %cst_15 = arith.constant 0.000000e+00 : f32
    %29 = vector.broadcast %cst_15 : f32 to vector<256x128xf32>
    %c0_16 = arith.constant 0 : index
    %c0_17 = arith.constant 0 : index
    %30 = vector.load %arg9[%c0_16, %c0_17] : memref<288x384xbf16, #tpu.memory_space<vmem>>, vector<256x384xbf16>
    %c0_18 = arith.constant 0 : index
    %c0_19 = arith.constant 0 : index
    %c0_20 = arith.constant 0 : index
    %31 = vector.load %arg4[%c0_18, %c0_19, %c0_20] : memref<3x384x128xbf16, #tpu.memory_space<vmem>>, vector<1x384x128xbf16>
    %32 = vector.shape_cast %31 : vector<1x384x128xbf16> to vector<384x128xbf16>
    %cst_21 = arith.constant dense<0.000000e+00> : vector<256x128xf32>
    %33 = tpu.matmul %30, %32, %cst_21 {dimension_numbers = #tpu.dot_dimension_numbers<[1], [0], [0], [1], [0, 0, 1, 1], [], []>} : vector<256x384xbf16>, vector<384x128xbf16>, vector<256x128xf32> -> vector<256x128xf32>
    %34 = arith.addf %29, %33 : vector<256x128xf32>
    %c16_22 = arith.constant 16 : index
    %c0_23 = arith.constant 0 : index
    %35 = vector.load %arg9[%c16_22, %c0_23] : memref<288x384xbf16, #tpu.memory_space<vmem>>, vector<256x384xbf16>
    %c1 = arith.constant 1 : index
    %c0_24 = arith.constant 0 : index
    %c0_25 = arith.constant 0 : index
    %36 = vector.load %arg4[%c1, %c0_24, %c0_25] : memref<3x384x128xbf16, #tpu.memory_space<vmem>>, vector<1x384x128xbf16>
    %37 = vector.shape_cast %36 : vector<1x384x128xbf16> to vector<384x128xbf16>
    %cst_26 = arith.constant dense<0.000000e+00> : vector<256x128xf32>
    %38 = tpu.matmul %35, %37, %cst_26 {dimension_numbers = #tpu.dot_dimension_numbers<[1], [0], [0], [1], [0, 0, 1, 1], [], []>} : vector<256x384xbf16>, vector<384x128xbf16>, vector<256x128xf32> -> vector<256x128xf32>
    %39 = arith.addf %34, %38 : vector<256x128xf32>
    %c32 = arith.constant 32 : index
    %c0_27 = arith.constant 0 : index
    %40 = vector.load %arg9[%c32, %c0_27] : memref<288x384xbf16, #tpu.memory_space<vmem>>, vector<256x384xbf16>
    %c2 = arith.constant 2 : index
    %c0_28 = arith.constant 0 : index
    %c0_29 = arith.constant 0 : index
    %41 = vector.load %arg4[%c2, %c0_28, %c0_29] : memref<3x384x128xbf16, #tpu.memory_space<vmem>>, vector<1x384x128xbf16>
    %42 = vector.shape_cast %41 : vector<1x384x128xbf16> to vector<384x128xbf16>
    %cst_30 = arith.constant dense<0.000000e+00> : vector<256x128xf32>
    %43 = tpu.matmul %40, %42, %cst_30 {dimension_numbers = #tpu.dot_dimension_numbers<[1], [0], [0], [1], [0, 0, 1, 1], [], []>} : vector<256x384xbf16>, vector<384x128xbf16>, vector<256x128xf32> -> vector<256x128xf32>
    %44 = arith.addf %39, %43 : vector<256x128xf32>
    %c0_31 = arith.constant 0 : index
    %c0_32 = arith.constant 0 : index
    %45 = vector.load %arg5[%c0_31, %c0_32] : memref<1x128xf32, #tpu.memory_space<vmem>>, vector<1x128xf32>
    %46 = vector.broadcast %45 : vector<1x128xf32> to vector<256x128xf32>
    %47 = arith.addf %44, %46 : vector<256x128xf32>
    %48 = vector.shape_cast %47 : vector<256x128xf32> to vector<16x16x128xf32>
    %49 = arith.addf %1, %48 : vector<16x16x128xf32>
    %c0_33 = arith.constant 0 : index
    %c0_34 = arith.constant 0 : index
    %c0_35 = arith.constant 0 : index
    %c0_36 = arith.constant 0 : index
    %50 = vector.load %arg6[%c0_33, %c0_34, %c0_35, %c0_36] : memref<1x16x16x128xf32, #tpu.memory_space<vmem>>, vector<1x16x16x128xf32>
    %51 = vector.shape_cast %50 : vector<1x16x16x128xf32> to vector<16x16x128xf32>
    %52 = vector.shape_cast %49 : vector<16x16x128xf32> to vector<1x16x16x128xf32>
    tpu.vector_store %arg6[%c0_33, %c0_34, %c0_35, %c0_36], %52 {strides = array<i32>} : memref<1x16x16x128xf32, #tpu.memory_space<vmem>>, vector<1x16x16x128xf32>,
    %cst_37 = arith.constant 0.000000e+00 : f32
    %53 = vector.broadcast %cst_37 : f32 to vector<16x16x128xf32>
    %54 = arith.maximumf %49, %53 : vector<16x16x128xf32>
    %cst_38 = arith.constant dense<0.000000e+00> : vector<16x128xf32>
    %55 = vector.multi_reduction <add>, %54, %cst_38 [0] : vector<16x16x128xf32> to vector<16x128xf32>
    %cst_39 = arith.constant dense<0.000000e+00> : vector<128xf32>
    %56 = vector.multi_reduction <add>, %55, %cst_39 [0] : vector<16x128xf32> to vector<128xf32>
    %57 = vector.shape_cast %56 : vector<128xf32> to vector<1x128xf32>
    %c0_40 = arith.constant 0 : index
    %c0_41 = arith.constant 0 : index
    %c0_42 = arith.constant 0 : index
    %58 = vector.load %arg7[%c0_40, %c0_41, %c0_42] : memref<1x1x128xf32, #tpu.memory_space<vmem>>, vector<1x1x128xf32>
    %59 = vector.shape_cast %58 : vector<1x1x128xf32> to vector<1x128xf32>
    %60 = vector.shape_cast %57 : vector<1x128xf32> to vector<1x1x128xf32>
    tpu.vector_store %arg7[%c0_40, %c0_41, %c0_42], %60 {strides = array<i32>} : memref<1x1x128xf32, #tpu.memory_space<vmem>>, vector<1x1x128xf32>,
    %61 = arith.mulf %54, %54 : vector<16x16x128xf32>
    %cst_43 = arith.constant dense<0.000000e+00> : vector<16x128xf32>
    %62 = vector.multi_reduction <add>, %61, %cst_43 [0] : vector<16x16x128xf32> to vector<16x128xf32>
    %cst_44 = arith.constant dense<0.000000e+00> : vector<128xf32>
    %63 = vector.multi_reduction <add>, %62, %cst_44 [0] : vector<16x128xf32> to vector<128xf32>
    %64 = vector.shape_cast %63 : vector<128xf32> to vector<1x128xf32>
    %c0_45 = arith.constant 0 : index
    %c0_46 = arith.constant 0 : index
    %c0_47 = arith.constant 0 : index
    %65 = vector.load %arg8[%c0_45, %c0_46, %c0_47] : memref<1x1x128xf32, #tpu.memory_space<vmem>>, vector<1x1x128xf32>
    %66 = vector.shape_cast %65 : vector<1x1x128xf32> to vector<1x128xf32>
    %67 = vector.shape_cast %64 : vector<1x128xf32> to vector<1x1x128xf32>
    tpu.vector_store %arg8[%c0_45, %c0_46, %c0_47], %67 {strides = array<i32>} : memref<1x1x128xf32, #tpu.memory_space<vmem>>, vector<1x1x128xf32>,
    return
  }
  func.func @transform_0(%arg0: i32) -> (i32, i32, i32, i32) {
    %c0_i32 = arith.constant 0 : i32
    %c0_i32_0 = arith.constant 0 : i32
    %c0_i32_1 = arith.constant 0 : i32
    %c0_i32_2 = arith.constant 0 : i32
    return %arg0, %c0_i32, %c0_i32_0, %c0_i32_1 : i32, i32, i32, i32
  }
  func.func @transform_1(%arg0: i32) -> (i32, i32) {
    %c0_i32 = arith.constant 0 : i32
    %c0_i32_0 = arith.constant 0 : i32
    %c0_i32_1 = arith.constant 0 : i32
    return %c0_i32, %c0_i32_0 : i32, i32
  }
  func.func @transform_2(%arg0: i32) -> (i32, i32) {
    %c0_i32 = arith.constant 0 : i32
    %c0_i32_0 = arith.constant 0 : i32
    %c0_i32_1 = arith.constant 0 : i32
    return %c0_i32, %c0_i32_0 : i32, i32
  }
  func.func @transform_3(%arg0: i32) -> (i32, i32, i32) {
    %c0_i32 = arith.constant 0 : i32
    %c0_i32_0 = arith.constant 0 : i32
    %c0_i32_1 = arith.constant 0 : i32
    %c0_i32_2 = arith.constant 0 : i32
    return %c0_i32, %c0_i32_0, %c0_i32_1 : i32, i32, i32
  }
  func.func @transform_4(%arg0: i32) -> (i32, i32) {
    %c0_i32 = arith.constant 0 : i32
    %c0_i32_0 = arith.constant 0 : i32
    %c0_i32_1 = arith.constant 0 : i32
    return %c0_i32, %c0_i32_0 : i32, i32
  }
  func.func @transform_5(%arg0: i32) -> (i32, i32, i32, i32) {
    %c0_i32 = arith.constant 0 : i32
    %c0_i32_0 = arith.constant 0 : i32
    %c0_i32_1 = arith.constant 0 : i32
    %c0_i32_2 = arith.constant 0 : i32
    return %arg0, %c0_i32, %c0_i32_0, %c0_i32_1 : i32, i32, i32, i32
  }
  func.func @transform_6(%arg0: i32) -> (i32, i32, i32) {
    %c0_i32 = arith.constant 0 : i32
    %c0_i32_0 = arith.constant 0 : i32
    %c0_i32_1 = arith.constant 0 : i32
    return %arg0, %c0_i32, %c0_i32_0 : i32, i32, i32
  }
  func.func @transform_7(%arg0: i32) -> (i32, i32, i32) {
    %c0_i32 = arith.constant 0 : i32
    %c0_i32_0 = arith.constant 0 : i32
    %c0_i32_1 = arith.constant 0 : i32
    return %arg0, %c0_i32, %c0_i32_0 : i32, i32, i32
  }
}

module attributes {stable_mosaic.version = 11 : i64} {
  func.func @_fused_bn_conv_kernel(%arg0: i32, %arg1: memref<1x16x16x128xf32, #tpu.memory_space<vmem>>, %arg2: memref<1x128xf32, #tpu.memory_space<vmem>>, %arg3: memref<1x128xf32, #tpu.memory_space<vmem>>, %arg4: memref<3x384x128xbf16, #tpu.memory_space<vmem>>, %arg5: memref<1x128xf32, #tpu.memory_space<vmem>>, %arg6: memref<1x16x16x128xf32, #tpu.memory_space<vmem>>, %arg7: memref<1x1x128xf32, #tpu.memory_space<vmem>>, %arg8: memref<1x1x128xf32, #tpu.memory_space<vmem>>, %arg9: memref<288x384xbf16, #tpu.memory_space<vmem>>) attributes {dimension_semantics = [#tpu.dimension_semantics<parallel>], iteration_bounds = array<i64: 2>, scalar_prefetch = 0 : i64, scratch_operands = 1 : i64, tpu.core_type = #tpu.core_type<tc>, window_params = [{transform_indices = @transform_0, window_bounds = array<i64: 1, 16, 16, 128>}, {pipeline_mode = #tpu.pipeline_mode<synchronous>, transform_indices = @transform_1, window_bounds = array<i64: 1, 128>}, {pipeline_mode = #tpu.pipeline_mode<synchronous>, transform_indices = @transform_2, window_bounds = array<i64: 1, 128>}, {pipeline_mode = #tpu.pipeline_mode<synchronous>, transform_indices = @transform_3, window_bounds = array<i64: 3, 384, 128>}, {pipeline_mode = #tpu.pipeline_mode<synchronous>, transform_indices = @transform_4, window_bounds = array<i64: 1, 128>}, {transform_indices = @transform_5, window_bounds = array<i64: 1, 16, 16, 128>}, {transform_indices = @transform_6, window_bounds = array<i64: 1, 1, 128>}, {transform_indices = @transform_7, window_bounds = array<i64: 1, 1, 128>}]} {
    %c0 = arith.constant 0 : index
    %c0_0 = arith.constant 0 : index
    %c0_1 = arith.constant 0 : index
    %c0_2 = arith.constant 0 : index
    %0 = vector.load %arg1[%c0, %c0_0, %c0_1, %c0_2] : memref<1x16x16x128xf32, #tpu.memory_space<vmem>>, vector<1x16x16x128xf32>
    %1 = vector.shape_cast %0 : vector<1x16x16x128xf32> to vector<16x16x128xf32>
    %c0_3 = arith.constant 0 : index
    %c0_4 = arith.constant 0 : index
    %2 = vector.load %arg2[%c0_3, %c0_4] : memref<1x128xf32, #tpu.memory_space<vmem>>, vector<1x128xf32>
    %3 = vector.shape_cast %2 : vector<1x128xf32> to vector<1x1x128xf32>
    %c0_5 = arith.constant 0 : index
    %c0_6 = arith.constant 0 : index
    %4 = vector.load %arg3[%c0_5, %c0_6] : memref<1x128xf32, #tpu.memory_space<vmem>>, vector<1x128xf32>
    %5 = vector.shape_cast %4 : vector<1x128xf32> to vector<1x1x128xf32>
    %cst = arith.constant 0.000000e+00 : f32
    %6 = vector.broadcast %cst : f32 to vector<16x16x128xf32>
    %7 = arith.maximumf %1, %6 : vector<16x16x128xf32>
    %8 = vector.broadcast %3 : vector<1x1x128xf32> to vector<16x16x128xf32>
    %9 = arith.mulf %7, %8 : vector<16x16x128xf32>
    %10 = vector.broadcast %5 : vector<1x1x128xf32> to vector<16x16x128xf32>
    %11 = arith.addf %9, %10 : vector<16x16x128xf32>
    %cst_7 = arith.constant 0.000000e+00 : f32
    %12 = vector.broadcast %cst_7 : f32 to vector<16x1x128xf32>
    %13 = vector.extract_strided_slice %11 {offsets = [0, 0, 0], sizes = [16, 15, 128], strides = [1, 1, 1]} : vector<16x16x128xf32> to vector<16x15x128xf32>
    %14 = tpu.concatenate %12, %13 in 1 : vector<16x1x128xf32>, vector<16x15x128xf32> -> vector<16x16x128xf32>
    %15 = vector.extract_strided_slice %11 {offsets = [0, 1, 0], sizes = [16, 15, 128], strides = [1, 1, 1]} : vector<16x16x128xf32> to vector<16x15x128xf32>
    %16 = tpu.concatenate %15, %12 in 1 : vector<16x15x128xf32>, vector<16x1x128xf32> -> vector<16x16x128xf32>
    %cst_8 = arith.constant 0.000000e+00 : bf16
    %17 = vector.broadcast %cst_8 : bf16 to vector<16x384xbf16>
    %c0_9 = arith.constant 0 : index
    %c0_10 = arith.constant 0 : index
    %18 = vector.load %arg9[%c0_9, %c0_10] : memref<288x384xbf16, #tpu.memory_space<vmem>>, vector<16x384xbf16>
    tpu.vector_store %arg9[%c0_9, %c0_10], %17 {strides = array<i32>} : memref<288x384xbf16, #tpu.memory_space<vmem>>, vector<16x384xbf16>,
    %c272 = arith.constant 272 : index
    %c0_11 = arith.constant 0 : index
    %19 = vector.load %arg9[%c272, %c0_11] : memref<288x384xbf16, #tpu.memory_space<vmem>>, vector<16x384xbf16>
    tpu.vector_store %arg9[%c272, %c0_11], %17 {strides = array<i32>} : memref<288x384xbf16, #tpu.memory_space<vmem>>, vector<16x384xbf16>,
    %20 = vector.shape_cast %14 : vector<16x16x128xf32> to vector<256x128xf32>
    %21 = arith.truncf %20 : vector<256x128xf32> to vector<256x128xbf16>
    %c16 = arith.constant 16 : index
    %c0_12 = arith.constant 0 : index
    %22 = vector.load %arg9[%c16, %c0_12] : memref<288x384xbf16, #tpu.memory_space<vmem>>, vector<256x128xbf16>
    tpu.vector_store %arg9[%c16, %c0_12], %21 {strides = array<i32>} : memref<288x384xbf16, #tpu.memory_space<vmem>>, vector<256x128xbf16>,
    %23 = vector.shape_cast %11 : vector<16x16x128xf32> to vector<256x128xf32>
    %24 = arith.truncf %23 : vector<256x128xf32> to vector<256x128xbf16>
    %c16_13 = arith.constant 16 : index
    %c128 = arith.constant 128 : index
    %25 = vector.load %arg9[%c16_13, %c128] : memref<288x384xbf16, #tpu.memory_space<vmem>>, vector<256x128xbf16>
    tpu.vector_store %arg9[%c16_13, %c128], %24 {strides = array<i32>} : memref<288x384xbf16, #tpu.memory_space<vmem>>, vector<256x128xbf16>,
    %26 = vector.shape_cast %16 : vector<16x16x128xf32> to vector<256x128xf32>
    %27 = arith.truncf %26 : vector<256x128xf32> to vector<256x128xbf16>
    %c16_14 = arith.constant 16 : index
    %c256 = arith.constant 256 : index
    %28 = vector.load %arg9[%c16_14, %c256] : memref<288x384xbf16, #tpu.memory_space<vmem>>, vector<256x128xbf16>
    tpu.vector_store %arg9[%c16_14, %c256], %27 {strides = array<i32>} : memref<288x384xbf16, #tpu.memory_space<vmem>>, vector<256x128xbf16>,
    %cst_15 = arith.constant 0.000000e+00 : f32
    %29 = vector.broadcast %cst_15 : f32 to vector<256x128xf32>
    %c0_16 = arith.constant 0 : index
    %c0_17 = arith.constant 0 : index
    %30 = vector.load %arg9[%c0_16, %c0_17] : memref<288x384xbf16, #tpu.memory_space<vmem>>, vector<256x384xbf16>
    %c0_18 = arith.constant 0 : index
    %c0_19 = arith.constant 0 : index
    %c0_20 = arith.constant 0 : index
    %31 = vector.load %arg4[%c0_18, %c0_19, %c0_20] : memref<3x384x128xbf16, #tpu.memory_space<vmem>>, vector<1x384x128xbf16>
    %32 = vector.shape_cast %31 : vector<1x384x128xbf16> to vector<384x128xbf16>
    %cst_21 = arith.constant dense<0.000000e+00> : vector<256x128xf32>
    %33 = tpu.matmul %30, %32, %cst_21 {dimension_numbers = #tpu.dot_dimension_numbers<[1], [0], [0], [1], [0, 0, 1, 1], [], []>} : vector<256x384xbf16>, vector<384x128xbf16>, vector<256x128xf32> -> vector<256x128xf32>
    %34 = arith.addf %29, %33 : vector<256x128xf32>
    %c16_22 = arith.constant 16 : index
    %c0_23 = arith.constant 0 : index
    %35 = vector.load %arg9[%c16_22, %c0_23] : memref<288x384xbf16, #tpu.memory_space<vmem>>, vector<256x384xbf16>
    %c1 = arith.constant 1 : index
    %c0_24 = arith.constant 0 : index
    %c0_25 = arith.constant 0 : index
    %36 = vector.load %arg4[%c1, %c0_24, %c0_25] : memref<3x384x128xbf16, #tpu.memory_space<vmem>>, vector<1x384x128xbf16>
    %37 = vector.shape_cast %36 : vector<1x384x128xbf16> to vector<384x128xbf16>
    %cst_26 = arith.constant dense<0.000000e+00> : vector<256x128xf32>
    %38 = tpu.matmul %35, %37, %cst_26 {dimension_numbers = #tpu.dot_dimension_numbers<[1], [0], [0], [1], [0, 0, 1, 1], [], []>} : vector<256x384xbf16>, vector<384x128xbf16>, vector<256x128xf32> -> vector<256x128xf32>
    %39 = arith.addf %34, %38 : vector<256x128xf32>
    %c32 = arith.constant 32 : index
    %c0_27 = arith.constant 0 : index
    %40 = vector.load %arg9[%c32, %c0_27] : memref<288x384xbf16, #tpu.memory_space<vmem>>, vector<256x384xbf16>
    %c2 = arith.constant 2 : index
    %c0_28 = arith.constant 0 : index
    %c0_29 = arith.constant 0 : index
    %41 = vector.load %arg4[%c2, %c0_28, %c0_29] : memref<3x384x128xbf16, #tpu.memory_space<vmem>>, vector<1x384x128xbf16>
    %42 = vector.shape_cast %41 : vector<1x384x128xbf16> to vector<384x128xbf16>
    %cst_30 = arith.constant dense<0.000000e+00> : vector<256x128xf32>
    %43 = tpu.matmul %40, %42, %cst_30 {dimension_numbers = #tpu.dot_dimension_numbers<[1], [0], [0], [1], [0, 0, 1, 1], [], []>} : vector<256x384xbf16>, vector<384x128xbf16>, vector<256x128xf32> -> vector<256x128xf32>
    %44 = arith.addf %39, %43 : vector<256x128xf32>
    %c0_31 = arith.constant 0 : index
    %c0_32 = arith.constant 0 : index
    %45 = vector.load %arg5[%c0_31, %c0_32] : memref<1x128xf32, #tpu.memory_space<vmem>>, vector<1x128xf32>
    %46 = vector.broadcast %45 : vector<1x128xf32> to vector<256x128xf32>
    %47 = arith.addf %44, %46 : vector<256x128xf32>
    %48 = vector.shape_cast %47 : vector<256x128xf32> to vector<16x16x128xf32>
    %49 = arith.addf %1, %48 : vector<16x16x128xf32>
    %c0_33 = arith.constant 0 : index
    %c0_34 = arith.constant 0 : index
    %c0_35 = arith.constant 0 : index
    %c0_36 = arith.constant 0 : index
    %50 = vector.load %arg6[%c0_33, %c0_34, %c0_35, %c0_36] : memref<1x16x16x128xf32, #tpu.memory_space<vmem>>, vector<1x16x16x128xf32>
    %51 = vector.shape_cast %50 : vector<1x16x16x128xf32> to vector<16x16x128xf32>
    %52 = vector.shape_cast %49 : vector<16x16x128xf32> to vector<1x16x16x128xf32>
    tpu.vector_store %arg6[%c0_33, %c0_34, %c0_35, %c0_36], %52 {strides = array<i32>} : memref<1x16x16x128xf32, #tpu.memory_space<vmem>>, vector<1x16x16x128xf32>,
    %cst_37 = arith.constant 0.000000e+00 : f32
    %53 = vector.broadcast %cst_37 : f32 to vector<16x16x128xf32>
    %54 = arith.maximumf %49, %53 : vector<16x16x128xf32>
    %cst_38 = arith.constant dense<0.000000e+00> : vector<16x128xf32>
    %55 = vector.multi_reduction <add>, %54, %cst_38 [0] : vector<16x16x128xf32> to vector<16x128xf32>
    %cst_39 = arith.constant dense<0.000000e+00> : vector<128xf32>
    %56 = vector.multi_reduction <add>, %55, %cst_39 [0] : vector<16x128xf32> to vector<128xf32>
    %57 = vector.shape_cast %56 : vector<128xf32> to vector<1x128xf32>
    %c0_40 = arith.constant 0 : index
    %c0_41 = arith.constant 0 : index
    %c0_42 = arith.constant 0 : index
    %58 = vector.load %arg7[%c0_40, %c0_41, %c0_42] : memref<1x1x128xf32, #tpu.memory_space<vmem>>, vector<1x1x128xf32>
    %59 = vector.shape_cast %58 : vector<1x1x128xf32> to vector<1x128xf32>
    %60 = vector.shape_cast %57 : vector<1x128xf32> to vector<1x1x128xf32>
    tpu.vector_store %arg7[%c0_40, %c0_41, %c0_42], %60 {strides = array<i32>} : memref<1x1x128xf32, #tpu.memory_space<vmem>>, vector<1x1x128xf32>,
    %61 = arith.mulf %54, %54 : vector<16x16x128xf32>
    %cst_43 = arith.constant dense<0.000000e+00> : vector<16x128xf32>
    %62 = vector.multi_reduction <add>, %61, %cst_43 [0] : vector<16x16x128xf32> to vector<16x128xf32>
    %cst_44 = arith.constant dense<0.000000e+00> : vector<128xf32>
    %63 = vector.multi_reduction <add>, %62, %cst_44 [0] : vector<16x128xf32> to vector<128xf32>
    %64 = vector.shape_cast %63 : vector<128xf32> to vector<1x128xf32>
    %c0_45 = arith.constant 0 : index
    %c0_46 = arith.constant 0 : index
    %c0_47 = arith.constant 0 : index
    %65 = vector.load %arg8[%c0_45, %c0_46, %c0_47] : memref<1x1x128xf32, #tpu.memory_space<vmem>>, vector<1x1x128xf32>
    %66 = vector.shape_cast %65 : vector<1x1x128xf32> to vector<1x128xf32>
    %67 = vector.shape_cast %64 : vector<1x128xf32> to vector<1x1x128xf32>
    tpu.vector_store %arg8[%c0_45, %c0_46, %c0_47], %67 {strides = array<i32>} : memref<1x1x128xf32, #tpu.memory_space<vmem>>, vector<1x1x128xf32>,
    return
  }
  func.func @transform_0(%arg0: i32) -> (i32, i32, i32, i32) {
    %c0_i32 = arith.constant 0 : i32
    %c0_i32_0 = arith.constant 0 : i32
    %c0_i32_1 = arith.constant 0 : i32
    %c0_i32_2 = arith.constant 0 : i32
    return %arg0, %c0_i32, %c0_i32_0, %c0_i32_1 : i32, i32, i32, i32
  }
  func.func @transform_1(%arg0: i32) -> (i32, i32) {
    %c0_i32 = arith.constant 0 : i32
    %c0_i32_0 = arith.constant 0 : i32
    %c0_i32_1 = arith.constant 0 : i32
    return %c0_i32, %c0_i32_0 : i32, i32
  }
  func.func @transform_2(%arg0: i32) -> (i32, i32) {
    %c0_i32 = arith.constant 0 : i32
    %c0_i32_0 = arith.constant 0 : i32
    %c0_i32_1 = arith.constant 0 : i32
    return %c0_i32, %c0_i32_0 : i32, i32
  }
  func.func @transform_3(%arg0: i32) -> (i32, i32, i32) {
    %c0_i32 = arith.constant 0 : i32
    %c0_i32_0 = arith.constant 0 : i32
    %c0_i32_1 = arith.constant 0 : i32
    %c0_i32_2 = arith.constant 0 : i32
    return %c0_i32, %c0_i32_0, %c0_i32_1 : i32, i32, i32
  }
  func.func @transform_4(%arg0: i32) -> (i32, i32) {
    %c0_i32 = arith.constant 0 : i32
    %c0_i32_0 = arith.constant 0 : i32
    %c0_i32_1 = arith.constant 0 : i32
    return %c0_i32, %c0_i32_0 : i32, i32
  }
  func.func @transform_5(%arg0: i32) -> (i32, i32, i32, i32) {
    %c0_i32 = arith.constant 0 : i32
    %c0_i32_0 = arith.constant 0 : i32
    %c0_i32_1 = arith.constant 0 : i32
    %c0_i32_2 = arith.constant 0 : i32
    return %arg0, %c0_i32, %c0_i32_0, %c0_i32_1 : i32, i32, i32, i32
  }
  func.func @transform_6(%arg0: i32) -> (i32, i32, i32) {
    %c0_i32 = arith.constant 0 : i32
    %c0_i32_0 = arith.constant 0 : i32
    %c0_i32_1 = arith.constant 0 : i32
    return %arg0, %c0_i32, %c0_i32_0 : i32, i32, i32
  }
  func.func @transform_7(%arg0: i32) -> (i32, i32, i32) {
    %c0_i32 = arith.constant 0 : i32
    %c0_i32_0 = arith.constant 0 : i32
    %c0_i32_1 = arith.constant 0 : i32
    return %arg0, %c0_i32, %c0_i32_0 : i32, i32, i32
  }
}

</mosaic_0001>

<llo_original>
// kernel: dense_block_forward.4
$region0: #{dense_block_forward.4}
  #allocation0 [shape = 'u32[]', space=smem, size = 0x4, offset = 0x4, fixed_abs, tag = 'smem constant byte address 0x4 - core index']
  #allocation1 [shape = 'u32[144,128]{1,0:T(1,128)}', space=vmem, size = 0x12000, scoped, tag = 'internal scratch']
  #allocation2 [shape = 'bf16[288,384]{1,0:T(16,128)(2,1)}', space=vmem, size = 0x36000, scoped, tag = 'scratch operand']
  %s0 = inlined_call_operand.vmem [shape: f32[2,16,16,128], index: 0, kind: input, shape index: {}, may-alias: {0,5}]
  %s1 = inlined_call_operand.vmem [shape: f32[1,128], index: 1, kind: input, shape index: {}]
  %s2 = inlined_call_operand.vmem [shape: f32[1,128], index: 2, kind: input, shape index: {}]
  %s3 = inlined_call_operand.vmem [shape: bf16[3,384,128], index: 3, kind: input, shape index: {}]
  %s4 = inlined_call_operand.vmem [shape: f32[1,128], index: 4, kind: input, shape index: {}]
  %s5 = inlined_call_operand.vmem [shape: f32[2,16,16,128], index: 5, kind: output, shape index: {0}, may-alias: {0,5}]
  %s6 = inlined_call_operand.vmem [shape: f32[2,1,128], index: 6, kind: output, shape index: {1}]
  %s7 = inlined_call_operand.vmem [shape: f32[2,1,128], index: 7, kind: output, shape index: {2}]
  %8 = xla_tuple %s5, %s6, %s7
  %s9 = sld [smem:[#allocation0]]
  $region69: #{dense_block_forward.4} parent=0
    _
  %s11 = ssub.s32 1, %s9
  %s12 = scalar_select 0, %s11, %s9
  loop: start=0, step=1, limit=4
  $region2: #{dense_block_forward.4} parent=0 // loop_pre_header
    _
  $region3: #{dense_block_forward.4} parent=0 // loop_header
    %s14 = sphi 0, %s18
    %p15 = scmp.ge.s32.totalorder %s14, 4
    %s24 = sphi 0, %s26
    %s27 = sphi 0, %s24
    %s28 = sphi 0, %s27
    %s44 = sphi 0, %s28
    %s48 = sphi 0, %s48
    %s50 = sphi 0, %s48
    %s51 = sphi 0, %s50
    %s65 = sphi 0, %s51
    %s69 = sphi 0, %s69
    %s71 = sphi 0, %s69
    %s72 = sphi 0, %s71
    %s86 = sphi 0, %s72
    %s90 = sphi 0, %s90
    %s92 = sphi 0, %s90
    %s93 = sphi 0, %s92
    %s107 = sphi 0, %s93
    %s111 = sphi 0, %s111
    %s113 = sphi 0, %s111
    %s114 = sphi 0, %s113
    %s128 = sphi 0, %s114
    %s134 = sphi 0, %s136
    %s137 = sphi 0, %s134
    %s138 = sphi 0, %s137
    %s154 = sphi 0, %s138
    %s160 = sphi 0, %s162
    %s163 = sphi 0, %s160
    %s164 = sphi 0, %s163
    %s180 = sphi 0, %s164
    %s186 = sphi 0, %s188
    %s189 = sphi 0, %s186
    %s190 = sphi 0, %s189
    %s206 = sphi 0, %s190
  $region4: #{dense_block_forward.4} parent=0 // loop_header_branch
    %17 = sbr.rel (%p15) target = $region8
  $region5: #{dense_block_forward.4} parent=0 // loop_body
    %s19 = ssub.s32 %s14, 1
    %s20 = ssub.s32 %s14, 2
    %s21 = sadd.s32 %s14, 1
    %s22 = ssub.s32 %s14, %s21
    %p23 = scmp.eq.s32.totalorder %s22, 0
    %s25 = sadd.s32 %s24, 1
    %s26 = scalar_select %p23, %s24, %s25
    %p29 = pneg %p23
    %p30 = scmp.eq.s32.totalorder %s14, 1
    %p31 = por %p29, %p30
    %p32 = scmp.ne.s32.totalorder %s24, %s27
    %p33 = scmp.eq.s32.totalorder %s14, 0
    %p34 = por %p32, %p33
    %p35 = scmp.ne.s32.totalorder %s24, %s27
    %p36 = scmp.eq.s32.totalorder %s19, 1
    %p37 = por %p35, %p36
    %p38 = scmp.ne.s32.totalorder %s27, %s28
    %p39 = scmp.eq.s32.totalorder %s19, 0
    %p40 = por %p38, %p39
    %p41 = scmp.ne.s32.totalorder %s27, %s28
    %p42 = scmp.eq.s32.totalorder %s20, 1
    %p43 = por %p41, %p42
    %p45 = scmp.ne.s32.totalorder %s28, %s44
    %p46 = scmp.eq.s32.totalorder %s20, 0
    %p47 = por %p45, %p46
    %s49 = sadd.s32 %s48, 1
    %p52 = scmp.eq.s32.totalorder %s14, 1
    %p53 = scmp.ne.s32.totalorder %s48, %s50
    %p54 = scmp.eq.s32.totalorder %s14, 0
    %p55 = por %p53, %p54
    %p56 = scmp.ne.s32.totalorder %s48, %s50
    %p57 = scmp.eq.s32.totalorder %s19, 1
    %p58 = por %p56, %p57
    %p59 = scmp.ne.s32.totalorder %s50, %s51
    %p60 = scmp.eq.s32.totalorder %s19, 0
    %p61 = por %p59, %p60
    %p62 = scmp.ne.s32.totalorder %s50, %s51
    %p63 = scmp.eq.s32.totalorder %s20, 1
    %p64 = por %p62, %p63
    %p66 = scmp.ne.s32.totalorder %s51, %s65
    %p67 = scmp.eq.s32.totalorder %s20, 0
    %p68 = por %p66, %p67
    %s70 = sadd.s32 %s69, 1
    %p73 = scmp.eq.s32.totalorder %s14, 1
    %p74 = scmp.ne.s32.totalorder %s69, %s71
    %p75 = scmp.eq.s32.totalorder %s14, 0
    %p76 = por %p74, %p75
    %p77 = scmp.ne.s32.totalorder %s69, %s71
    %p78 = scmp.eq.s32.totalorder %s19, 1
    %p79 = por %p77, %p78
    %p80 = scmp.ne.s32.totalorder %s71, %s72
    %p81 = scmp.eq.s32.totalorder %s19, 0
    %p82 = por %p80, %p81
    %p83 = scmp.ne.s32.totalorder %s71, %s72
    %p84 = scmp.eq.s32.totalorder %s20, 1
    %p85 = por %p83, %p84
    %p87 = scmp.ne.s32.totalorder %s72, %s86
    %p88 = scmp.eq.s32.totalorder %s20, 0
    %p89 = por %p87, %p88
    %s91 = sadd.s32 %s90, 1
    %p94 = scmp.eq.s32.totalorder %s14, 1
    %p95 = scmp.ne.s32.totalorder %s90, %s92
    %p96 = scmp.eq.s32.totalorder %s14, 0
    %p97 = por %p95, %p96
    %p98 = scmp.ne.s32.totalorder %s90, %s92
    %p99 = scmp.eq.s32.totalorder %s19, 1
    %p100 = por %p98, %p99
    %p101 = scmp.ne.s32.totalorder %s92, %s93
    %p102 = scmp.eq.s32.totalorder %s19, 0
    %p103 = por %p101, %p102
    %p104 = scmp.ne.s32.totalorder %s92, %s93
    %p105 = scmp.eq.s32.totalorder %s20, 1
    %p106 = por %p104, %p105
    %p108 = scmp.ne.s32.totalorder %s93, %s107
    %p109 = scmp.eq.s32.totalorder %s20, 0
    %p110 = por %p108, %p109
    %s112 = sadd.s32 %s111, 1
    %p115 = scmp.eq.s32.totalorder %s14, 1
    %p116 = scmp.ne.s32.totalorder %s111, %s113
    %p117 = scmp.eq.s32.totalorder %s14, 0
    %p118 = por %p116, %p117
    %p119 = scmp.ne.s32.totalorder %s111, %s113
    %p120 = scmp.eq.s32.totalorder %s19, 1
    %p121 = por %p119, %p120
    %p122 = scmp.ne.s32.totalorder %s113, %s114
    %p123 = scmp.eq.s32.totalorder %s19, 0
    %p124 = por %p122, %p123
    %p125 = scmp.ne.s32.totalorder %s113, %s114
    %p126 = scmp.eq.s32.totalorder %s20, 1
    %p127 = por %p125, %p126
    %p129 = scmp.ne.s32.totalorder %s114, %s128
    %p130 = scmp.eq.s32.totalorder %s20, 0
    %p131 = por %p129, %p130
    %s132 = ssub.s32 %s14, %s21
    %p133 = scmp.eq.s32.totalorder %s132, 0
    %s135 = sadd.s32 %s134, 1
    %s136 = scalar_select %p133, %s134, %s135
    %p139 = pneg %p133
    %p140 = scmp.eq.s32.totalorder %s14, 1
    %p141 = por %p139, %p140
    %p142 = scmp.ne.s32.totalorder %s134, %s137
    %p143 = scmp.eq.s32.totalorder %s14, 0
    %p144 = por %p142, %p143
    %p145 = scmp.ne.s32.totalorder %s134, %s137
    %p146 = scmp.eq.s32.totalorder %s19, 1
    %p147 = por %p145, %p146
    %p148 = scmp.ne.s32.totalorder %s137, %s138
    %p149 = scmp.eq.s32.totalorder %s19, 0
    %p150 = por %p148, %p149
    %p151 = scmp.ne.s32.totalorder %s137, %s138
    %p152 = scmp.eq.s32.totalorder %s20, 1
    %p153 = por %p151, %p152
    %p155 = scmp.ne.s32.totalorder %s138, %s154
    %p156 = scmp.eq.s32.totalorder %s20, 0
    %p157 = por %p155, %p156
    %s158 = ssub.s32 %s14, %s21
    %p159 = scmp.eq.s32.totalorder %s158, 0
    %s161 = sadd.s32 %s160, 1
    %s162 = scalar_select %p159, %s160, %s161
    %p165 = pneg %p159
    %p166 = scmp.eq.s32.totalorder %s14, 1
    %p167 = por %p165, %p166
    %p168 = scmp.ne.s32.totalorder %s160, %s163
    %p169 = scmp.eq.s32.totalorder %s14, 0
    %p170 = por %p168, %p169
    %p171 = scmp.ne.s32.totalorder %s160, %s163
    %p172 = scmp.eq.s32.totalorder %s19, 1
    %p173 = por %p171, %p172
    %p174 = scmp.ne.s32.totalorder %s163, %s164
    %p175 = scmp.eq.s32.totalorder %s19, 0
    %p176 = por %p174, %p175
    %p177 = scmp.ne.s32.totalorder %s163, %s164
    %p178 = scmp.eq.s32.totalorder %s20, 1
    %p179 = por %p177, %p178
    %p181 = scmp.ne.s32.totalorder %s164, %s180
    %p182 = scmp.eq.s32.totalorder %s20, 0
    %p183 = por %p181, %p182
    %s184 = ssub.s32 %s14, %s21
    %p185 = scmp.eq.s32.totalorder %s184, 0
    %s187 = sadd.s32 %s186, 1
    %s188 = scalar_select %p185, %s186, %s187
    %p191 = pneg %p185
    %p192 = scmp.eq.s32.totalorder %s14, 1
    %p193 = por %p191, %p192
    %p194 = scmp.ne.s32.totalorder %s186, %s189
    %p195 = scmp.eq.s32.totalorder %s14, 0
    %p196 = por %p194, %p195
    %p197 = scmp.ne.s32.totalorder %s186, %s189
    %p198 = scmp.eq.s32.totalorder %s19, 1
    %p199 = por %p197, %p198
    %p200 = scmp.ne.s32.totalorder %s189, %s190
    %p201 = scmp.eq.s32.totalorder %s19, 0
    %p202 = por %p200, %p201
    %p203 = scmp.ne.s32.totalorder %s189, %s190
    %p204 = scmp.eq.s32.totalorder %s20, 1
    %p205 = por %p203, %p204
    %p207 = scmp.ne.s32.totalorder %s190, %s206
    %p208 = scmp.eq.s32.totalorder %s20, 0
    %p209 = por %p207, %p208
    %p210 = scmp.le.s32.totalorder 1, %s14
    %p211 = scmp.lt.s32.totalorder %s14, 3
    %p212 = pnand %p210, %p211
    %p213 = pneg %p212
    // Predicated region
    $region9: #{dense_block_forward.4} parent=5 // pred_check
      _
    $region10: #{dense_block_forward.4} parent=5 // pred_check_branch
      %215 = sbr.rel (%p212) target = $region12
    $region11: #{dense_block_forward.4} parent=5 // pred_region
      %s216 = ssub.s32 %s14, 1
      // Predicated region
      $region13: #{dense_block_forward.4} parent=11 // pred_check
        %p217 = pneg %p61
      $region14: #{dense_block_forward.4} parent=11 // pred_check_branch
        %219 = sbr.rel (%p217) target = $region16
      $region15: #{dense_block_forward.4} parent=11 // pred_region
        _
      $region16: #{dense_block_forward.4} parent=11 // pred_fallthru
        _
      // Predicated region
      $region17: #{dense_block_forward.4} parent=11 // pred_check
        %p220 = pneg %p82
      $region18: #{dense_block_forward.4} parent=11 // pred_check_branch
        %222 = sbr.rel (%p220) target = $region20
      $region19: #{dense_block_forward.4} parent=11 // pred_region
        _
      $region20: #{dense_block_forward.4} parent=11 // pred_fallthru
        _
      // Predicated region
      $region21: #{dense_block_forward.4} parent=11 // pred_check
        %p223 = pneg %p103
      $region22: #{dense_block_forward.4} parent=11 // pred_check_branch
        %225 = sbr.rel (%p223) target = $region24
      $region23: #{dense_block_forward.4} parent=11 // pred_region
        _
      $region24: #{dense_block_forward.4} parent=11 // pred_fallthru
        _
      // Predicated region
      $region25: #{dense_block_forward.4} parent=11 // pred_check
        %p226 = pneg %p124
      $region26: #{dense_block_forward.4} parent=11 // pred_check_branch
        %228 = sbr.rel (%p226) target = $region28
      $region27: #{dense_block_forward.4} parent=11 // pred_region
        _
      $region28: #{dense_block_forward.4} parent=11 // pred_fallthru
        _
    $region12: #{dense_block_forward.4} parent=5 // pred_fallthru
      _
    %p229 = scmp.lt.s32.totalorder %s14, 2
    // Predicated region
    $region29: #{dense_block_forward.4} parent=5 // pred_check
      %p230 = pneg %p229
    $region30: #{dense_block_forward.4} parent=5 // pred_check_branch
      %232 = sbr.rel (%p230) target = $region32
    $region31: #{dense_block_forward.4} parent=5 // pred_region
      // Predicated region
      $region33: #{dense_block_forward.4} parent=31 // pred_check
        %p233 = pneg %p34
      $region34: #{dense_block_forward.4} parent=31 // pred_check_branch
        %235 = sbr.rel (%p233) target = $region36
      $region35: #{dense_block_forward.4} parent=31 // pred_region
        %p236 = scmp.lt.s32.totalorder %s14, 1
        %s237 = scalar_select %p236, %s14, 1
        %s238 = smul.addr %s237, 32
        %s239 = smul.addr %s238, 8
        %s240 = scalar_lea.vmem %s0, %s239
      $region36: #{dense_block_forward.4} parent=31 // pred_fallthru
        _
    $region32: #{dense_block_forward.4} parent=5 // pred_fallthru
      _
    %p241 = scmp.le.s32.totalorder 1, %s14
    %p242 = scmp.lt.s32.totalorder %s14, 3
    %p243 = pnand %p241, %p242
    %p244 = pneg %p243
    // Predicated region
    $region37: #{dense_block_forward.4} parent=5 // pred_check
      _
    $region38: #{dense_block_forward.4} parent=5 // pred_check_branch
      %246 = sbr.rel (%p243) target = $region40
    $region39: #{dense_block_forward.4} parent=5 // pred_region
      %s247 = ssub.s32 %s14, 1
      %p248 = scmp.lt.s32.totalorder %s19, 1
      %s249 = scalar_select %p248, %s19, 1
      %s250 = smul.addr %s249, 32
      %s251 = smul.addr %s250, 8
      %s252 = scalar_lea.vmem %s0, %s251
      %p253 = pneg %p40
      %p254 = pneg %p37
      %p255 = pneg %p61
      %p256 = pneg %p58
      %p257 = pneg %p82
      %p258 = pneg %p79
      %p259 = pneg %p103
      %p260 = pneg %p100
      %p261 = pneg %p124
      %p262 = pneg %p121
      %p263 = pneg %p150
      %p264 = pneg %p147
      %p265 = scmp.lt.s32.totalorder %s19, 1
      %s266 = scalar_select %p265, %s19, 1
      %s267 = smul.addr %s266, 32
      %s268 = smul.addr %s267, 8
      %s269 = scalar_lea.vmem %s5, %s268
      %p270 = pneg %p176
      %p271 = pneg %p173
      %p272 = scmp.lt.s32.totalorder %s19, 1
      %s273 = scalar_select %p272, %s19, 1
      %s274 = scalar_lea.vmem %s6, %s273
      %p275 = pneg %p202
      %p276 = pneg %p199
      %p277 = scmp.lt.s32.totalorder %s19, 1
      %s278 = scalar_select %p277, %s19, 1
      %s279 = scalar_lea.vmem %s7, %s278
      %p280 = scmp.lt.s32.totalorder %s19, 1
      %s281 = scalar_select %p280, %s19, 1
      %s282 = smul.addr %s281, 32
      %s283 = smul.addr %s282, 8
      %s284 = scalar_lea.vmem %s0, %s283
      %p285 = scmp.lt.s32.totalorder %s19, 1
      %s286 = scalar_select %p285, %s19, 1
      %s287 = smul.addr %s286, 32
      %s288 = smul.addr %s287, 8
      %s289 = scalar_lea.vmem %s5, %s288
      %p290 = scmp.lt.s32.totalorder %s19, 1
      %s291 = scalar_select %p290, %s19, 1
      %s292 = scalar_lea.vmem %s6, %s291
      %p293 = scmp.lt.s32.totalorder %s19, 1
      %s294 = scalar_select %p293, %s19, 1
      %s295 = scalar_lea.vmem %s7, %s294
      %v297 = vld [vmem:[%s284] sm:$0xff]
      %v298 = vld [vmem:[%s284 + $0x8] sm:$0xff]
      %v299 = vld [vmem:[%s284 + $0x10] sm:$0xff]
      %v300 = vld [vmem:[%s284 + $0x18] sm:$0xff]
      %v301 = vld [vmem:[%s284 + $0x20] sm:$0xff]
      %v302 = vld [vmem:[%s284 + $0x28] sm:$0xff]
      %v303 = vld [vmem:[%s284 + $0x30] sm:$0xff]
      %v304 = vld [vmem:[%s284 + $0x38] sm:$0xff]
      %v305 = vld [vmem:[%s284 + $0x40] sm:$0xff]
      %v306 = vld [vmem:[%s284 + $0x48] sm:$0xff]
      %v307 = vld [vmem:[%s284 + $0x50] sm:$0xff]
      %v308 = vld [vmem:[%s284 + $0x58] sm:$0xff]
      %v309 = vld [vmem:[%s284 + $0x60] sm:$0xff]
      %v310 = vld [vmem:[%s284 + $0x68] sm:$0xff]
      %v311 = vld [vmem:[%s284 + $0x70] sm:$0xff]
      %v312 = vld [vmem:[%s284 + $0x78] sm:$0xff]
      %v313 = vld [vmem:[%s284 + $0x80] sm:$0xff]
      %v314 = vld [vmem:[%s284 + $0x88] sm:$0xff]
      %v315 = vld [vmem:[%s284 + $0x90] sm:$0xff]
      %v316 = vld [vmem:[%s284 + $0x98] sm:$0xff]
      %v317 = vld [vmem:[%s284 + $0xa0] sm:$0xff]
      %v318 = vld [vmem:[%s284 + $0xa8] sm:$0xff]
      %v319 = vld [vmem:[%s284 + $0xb0] sm:$0xff]
      %v320 = vld [vmem:[%s284 + $0xb8] sm:$0xff]
      %v321 = vld [vmem:[%s284 + $0xc0] sm:$0xff]
      %v322 = vld [vmem:[%s284 + $0xc8] sm:$0xff]
      %v323 = vld [vmem:[%s284 + $0xd0] sm:$0xff]
      %v324 = vld [vmem:[%s284 + $0xd8] sm:$0xff]
      %v325 = vld [vmem:[%s284 + $0xe0] sm:$0xff]
      %v326 = vld [vmem:[%s284 + $0xe8] sm:$0xff]
      %v327 = vld [vmem:[%s284 + $0xf0] sm:$0xff]
      %v328 = vld [vmem:[%s284 + $0xf8] sm:$0xff]
      %v329 = vld [vmem:[%s1] sm:$0x1]
      %v330 = vld [vmem:[%s2] sm:$0x1]
      %v331 = vmax.f32 %v297, 0.0
      %v332 = vmax.f32 %v298, 0.0
      %v333 = vmax.f32 %v299, 0.0
      %v334 = vmax.f32 %v300, 0.0
      %v335 = vmax.f32 %v301, 0.0
      %v336 = vmax.f32 %v302, 0.0
      %v337 = vmax.f32 %v303, 0.0
      %v338 = vmax.f32 %v304, 0.0
      %v339 = vmax.f32 %v305, 0.0
      %v340 = vmax.f32 %v306, 0.0
      %v341 = vmax.f32 %v307, 0.0
      %v342 = vmax.f32 %v308, 0.0
      %v343 = vmax.f32 %v309, 0.0
      %v344 = vmax.f32 %v310, 0.0
      %v345 = vmax.f32 %v311, 0.0
      %v346 = vmax.f32 %v312, 0.0
      %v347 = vmax.f32 %v313, 0.0
      %v348 = vmax.f32 %v314, 0.0
      %v349 = vmax.f32 %v315, 0.0
      %v350 = vmax.f32 %v316, 0.0
      %v351 = vmax.f32 %v317, 0.0
      %v352 = vmax.f32 %v318, 0.0
      %v353 = vmax.f32 %v319, 0.0
      %v354 = vmax.f32 %v320, 0.0
      %v355 = vmax.f32 %v321, 0.0
      %v356 = vmax.f32 %v322, 0.0
      %v357 = vmax.f32 %v323, 0.0
      %v358 = vmax.f32 %v324, 0.0
      %v359 = vmax.f32 %v325, 0.0
      %v360 = vmax.f32 %v326, 0.0
      %v361 = vmax.f32 %v327, 0.0
      %v362 = vmax.f32 %v328, 0.0
      %v364 = vlaneseq
      %v365 = vshrl.u32 %v364, 7
      %v366 = vsub.s32 0, %v365
      %v367 = vrot.slane %v329, %v366
      %v369 = vmul.f32 %v331, %v367
      %v370 = vmul.f32 %v332, %v367
      %v371 = vmul.f32 %v333, %v367
      %v372 = vmul.f32 %v334, %v367
      %v373 = vmul.f32 %v335, %v367
      %v374 = vmul.f32 %v336, %v367
      %v375 = vmul.f32 %v337, %v367
      %v376 = vmul.f32 %v338, %v367
      %v377 = vmul.f32 %v339, %v367
      %v378 = vmul.f32 %v340, %v367
      %v379 = vmul.f32 %v341, %v367
      %v380 = vmul.f32 %v342, %v367
      %v381 = vmul.f32 %v343, %v367
      %v382 = vmul.f32 %v344, %v367
      %v383 = vmul.f32 %v345, %v367
      %v384 = vmul.f32 %v346, %v367
      %v385 = vmul.f32 %v347, %v367
      %v386 = vmul.f32 %v348, %v367
      %v387 = vmul.f32 %v349, %v367
      %v388 = vmul.f32 %v350, %v367
      %v389 = vmul.f32 %v351, %v367
      %v390 = vmul.f32 %v352, %v367
      %v391 = vmul.f32 %v353, %v367
      %v392 = vmul.f32 %v354, %v367
      %v393 = vmul.f32 %v355, %v367
      %v394 = vmul.f32 %v356, %v367
      %v395 = vmul.f32 %v357, %v367
      %v396 = vmul.f32 %v358, %v367
      %v397 = vmul.f32 %v359, %v367
      %v398 = vmul.f32 %v360, %v367
      %v399 = vmul.f32 %v361, %v367
      %v400 = vmul.f32 %v362, %v367
      %v402 = vlaneseq
      %v403 = vshrl.u32 %v402, 7
      %v404 = vsub.s32 0, %v403
      %v405 = vrot.slane %v330, %v404
      %v407 = vadd.f32 %v369, %v405
      %v408 = vadd.f32 %v370, %v405
      %v409 = vadd.f32 %v371, %v405
      %v410 = vadd.f32 %v372, %v405
      %v411 = vadd.f32 %v373, %v405
      %v412 = vadd.f32 %v374, %v405
      %v413 = vadd.f32 %v375, %v405
      %v414 = vadd.f32 %v376, %v405
      %v415 = vadd.f32 %v377, %v405
      %v416 = vadd.f32 %v378, %v405
      %v417 = vadd.f32 %v379, %v405
      %v418 = vadd.f32 %v380, %v405
      %v419 = vadd.f32 %v381, %v405
      %v420 = vadd.f32 %v382, %v405
      %v421 = vadd.f32 %v383, %v405
      %v422 = vadd.f32 %v384, %v405
      %v423 = vadd.f32 %v385, %v405
      %v424 = vadd.f32 %v386, %v405
      %v425 = vadd.f32 %v387, %v405
      %v426 = vadd.f32 %v388, %v405
      %v427 = vadd.f32 %v389, %v405
      %v428 = vadd.f32 %v390, %v405
      %v429 = vadd.f32 %v391, %v405
      %v430 = vadd.f32 %v392, %v405
      %v431 = vadd.f32 %v393, %v405
      %v432 = vadd.f32 %v394, %v405
      %v433 = vadd.f32 %v395, %v405
      %v434 = vadd.f32 %v396, %v405
      %v435 = vadd.f32 %v397, %v405
      %v436 = vadd.f32 %v398, %v405
      %v437 = vadd.f32 %v399, %v405
      %v438 = vadd.f32 %v400, %v405
      %vm471 = vcmask 1040384
      %v472 = vrot.slane %v407, 7
      %v473 = vrot.slane %v408, 7
      %v474 = vsel %vm471, %v472, %v473
      %v475 = vrot.slane %v409, 7
      %v476 = vrot.slane %v410, 7
      %v477 = vsel %vm471, %v475, %v476
      %v478 = vrot.slane %v411, 7
      %v479 = vrot.slane %v412, 7
      %v480 = vsel %vm471, %v478, %v479
      %v481 = vrot.slane %v413, 7
      %v482 = vrot.slane %v414, 7
      %v483 = vsel %vm471, %v481, %v482
      %v484 = vrot.slane %v415, 7
      %v485 = vrot.slane %v416, 7
      %v486 = vsel %vm471, %v484, %v485
      %v487 = vrot.slane %v417, 7
      %v488 = vrot.slane %v418, 7
      %v489 = vsel %vm471, %v487, %v488
      %v490 = vrot.slane %v419, 7
      %v491 = vrot.slane %v420, 7
      %v492 = vsel %vm471, %v490, %v491
      %v493 = vrot.slane %v421, 7
      %v494 = vrot.slane %v422, 7
      %v495 = vsel %vm471, %v493, %v494
      %v496 = vrot.slane %v423, 7
      %v497 = vrot.slane %v424, 7
      %v498 = vsel %vm471, %v496, %v497
      %v499 = vrot.slane %v425, 7
      %v500 = vrot.slane %v426, 7
      %v501 = vsel %vm471, %v499, %v500
      %v502 = vrot.slane %v427, 7
      %v503 = vrot.slane %v428, 7
      %v504 = vsel %vm471, %v502, %v503
      %v505 = vrot.slane %v429, 7
      %v506 = vrot.slane %v430, 7
      %v507 = vsel %vm471, %v505, %v506
      %v508 = vrot.slane %v431, 7
      %v509 = vrot.slane %v432, 7
      %v510 = vsel %vm471, %v508, %v509
      %v511 = vrot.slane %v433, 7
      %v512 = vrot.slane %v434, 7
      %v513 = vsel %vm471, %v511, %v512
      %v514 = vrot.slane %v435, 7
      %v515 = vrot.slane %v436, 7
      %v516 = vsel %vm471, %v514, %v515
      %v517 = vrot.slane %v437, 7
      %v518 = vrot.slane %v438, 7
      %v519 = vsel %vm471, %v517, %v518
      %v552 = vsel %vm471, 0.0, %v472
      %v553 = vsel %vm471, 0.0, %v475
      %v554 = vsel %vm471, 0.0, %v478
      %v555 = vsel %vm471, 0.0, %v481
      %v556 = vsel %vm471, 0.0, %v484
      %v557 = vsel %vm471, 0.0, %v487
      %v558 = vsel %vm471, 0.0, %v490
      %v559 = vsel %vm471, 0.0, %v493
      %v560 = vsel %vm471, 0.0, %v496
      %v561 = vsel %vm471, 0.0, %v499
      %v562 = vsel %vm471, 0.0, %v502
      %v563 = vsel %vm471, 0.0, %v505
      %v564 = vsel %vm471, 0.0, %v508
      %v565 = vsel %vm471, 0.0, %v511
      %v566 = vsel %vm471, 0.0, %v514
      %v567 = vsel %vm471, 0.0, %v517
      %vm568 = vcmask 1046528
      %v569 = vrot.slane %v407, 1
      %v570 = vrot.slane %v408, 1
      %v571 = vsel %vm568, %v569, %v570
      %v572 = vrot.slane %v409, 1
      %v573 = vrot.slane %v410, 1
      %v574 = vsel %vm568, %v572, %v573
      %v575 = vrot.slane %v411, 1
      %v576 = vrot.slane %v412, 1
      %v577 = vsel %vm568, %v575, %v576
      %v578 = vrot.slane %v413, 1
      %v579 = vrot.slane %v414, 1
      %v580 = vsel %vm568, %v578, %v579
      %v581 = vrot.slane %v415, 1
      %v582 = vrot.slane %v416, 1
      %v583 = vsel %vm568, %v581, %v582
      %v584 = vrot.slane %v417, 1
      %v585 = vrot.slane %v418, 1
      %v586 = vsel %vm568, %v584, %v585
      %v587 = vrot.slane %v419, 1
      %v588 = vrot.slane %v420, 1
      %v589 = vsel %vm568, %v587, %v588
      %v590 = vrot.slane %v421, 1
      %v591 = vrot.slane %v422, 1
      %v592 = vsel %vm568, %v590, %v591
      %v593 = vrot.slane %v423, 1
      %v594 = vrot.slane %v424, 1
      %v595 = vsel %vm568, %v593, %v594
      %v596 = vrot.slane %v425, 1
      %v597 = vrot.slane %v426, 1
      %v598 = vsel %vm568, %v596, %v597
      %v599 = vrot.slane %v427, 1
      %v600 = vrot.slane %v428, 1
      %v601 = vsel %vm568, %v599, %v600
      %v602 = vrot.slane %v429, 1
      %v603 = vrot.slane %v430, 1
      %v604 = vsel %vm568, %v602, %v603
      %v605 = vrot.slane %v431, 1
      %v606 = vrot.slane %v432, 1
      %v607 = vsel %vm568, %v605, %v606
      %v608 = vrot.slane %v433, 1
      %v609 = vrot.slane %v434, 1
      %v610 = vsel %vm568, %v608, %v609
      %v611 = vrot.slane %v435, 1
      %v612 = vrot.slane %v436, 1
      %v613 = vsel %vm568, %v611, %v612
      %v614 = vrot.slane %v437, 1
      %v615 = vrot.slane %v438, 1
      %v616 = vsel %vm568, %v614, %v615
      %v649 = vsel %vm568, %v570, 0.0
      %v650 = vsel %vm568, %v573, 0.0
      %v651 = vsel %vm568, %v576, 0.0
      %v652 = vsel %vm568, %v579, 0.0
      %v653 = vsel %vm568, %v582, 0.0
      %v654 = vsel %vm568, %v585, 0.0
      %v655 = vsel %vm568, %v588, 0.0
      %v656 = vsel %vm568, %v591, 0.0
      %v657 = vsel %vm568, %v594, 0.0
      %v658 = vsel %vm568, %v597, 0.0
      %v659 = vsel %vm568, %v600, 0.0
      %v660 = vsel %vm568, %v603, 0.0
      %v661 = vsel %vm568, %v606, 0.0
      %v662 = vsel %vm568, %v609, 0.0
      %v663 = vsel %vm568, %v612, 0.0
      %v664 = vsel %vm568, %v615, 0.0
      %665 = vst [vmem:[#allocation2] sm:$0xff] 0
      %666 = vst [vmem:[#allocation2 + $0x8] sm:$0xff] 0
      %667 = vst [vmem:[#allocation2 + $0x10] sm:$0xff] 0
      %668 = vst [vmem:[#allocation2 + $0x198] sm:$0xff] 0
      %669 = vst [vmem:[#allocation2 + $0x1a0] sm:$0xff] 0
      %670 = vst [vmem:[#allocation2 + $0x1a8] sm:$0xff] 0
      %v671 = vpack.c.bf16 %v474, %v552
      %v672 = vpack.c.bf16 %v477, %v553
      %v673 = vpack.c.bf16 %v480, %v554
      %v674 = vpack.c.bf16 %v483, %v555
      %v675 = vpack.c.bf16 %v486, %v556
      %v676 = vpack.c.bf16 %v489, %v557
      %v677 = vpack.c.bf16 %v492, %v558
      %v678 = vpack.c.bf16 %v495, %v559
      %v679 = vpack.c.bf16 %v498, %v560
      %v680 = vpack.c.bf16 %v501, %v561
      %v681 = vpack.c.bf16 %v504, %v562
      %v682 = vpack.c.bf16 %v507, %v563
      %v683 = vpack.c.bf16 %v510, %v564
      %v684 = vpack.c.bf16 %v513, %v565
      %v685 = vpack.c.bf16 %v516, %v566
      %v686 = vpack.c.bf16 %v519, %v567
      %687 = vst [vmem:[#allocation2 + $0x18] sm:$0xff] %v671
      %688 = vst [vmem:[#allocation2 + $0x30] sm:$0xff] %v672
      %689 = vst [vmem:[#allocation2 + $0x48] sm:$0xff] %v673
      %690 = vst [vmem:[#allocation2 + $0x60] sm:$0xff] %v674
      %691 = vst [vmem:[#allocation2 + $0x78] sm:$0xff] %v675
      %692 = vst [vmem:[#allocation2 + $0x90] sm:$0xff] %v676
      %693 = vst [vmem:[#allocation2 + $0xa8] sm:$0xff] %v677
      %694 = vst [vmem:[#allocation2 + $0xc0] sm:$0xff] %v678
      %695 = vst [vmem:[#allocation2 + $0xd8] sm:$0xff] %v679
      %696 = vst [vmem:[#allocation2 + $0xf0] sm:$0xff] %v680
      %697 = vst [vmem:[#allocation2 + $0x108] sm:$0xff] %v681
      %698 = vst [vmem:[#allocation2 + $0x120] sm:$0xff] %v682
      %699 = vst [vmem:[#allocation2 + $0x138] sm:$0xff] %v683
      %700 = vst [vmem:[#allocation2 + $0x150] sm:$0xff] %v684
      %701 = vst [vmem:[#allocation2 + $0x168] sm:$0xff] %v685
      %702 = vst [vmem:[#allocation2 + $0x180] sm:$0xff] %v686
      %v703 = vpack.c.bf16 %v408, %v407
      %v704 = vpack.c.bf16 %v410, %v409
      %v705 = vpack.c.bf16 %v412, %v411
      %v706 = vpack.c.bf16 %v414, %v413
      %v707 = vpack.c.bf16 %v416, %v415
      %v708 = vpack.c.bf16 %v418, %v417
      %v709 = vpack.c.bf16 %v420, %v419
      %v710 = vpack.c.bf16 %v422, %v421
      %v711 = vpack.c.bf16 %v424, %v423
      %v712 = vpack.c.bf16 %v426, %v425
      %v713 = vpack.c.bf16 %v428, %v427
      %v714 = vpack.c.bf16 %v430, %v429
      %v715 = vpack.c.bf16 %v432, %v431
      %v716 = vpack.c.bf16 %v434, %v433
      %v717 = vpack.c.bf16 %v436, %v435
      %v718 = vpack.c.bf16 %v438, %v437
      %719 = vst [vmem:[#allocation2 + $0x20] sm:$0xff] %v703
      %720 = vst [vmem:[#allocation2 + $0x38] sm:$0xff] %v704
      %721 = vst [vmem:[#allocation2 + $0x50] sm:$0xff] %v705
      %722 = vst [vmem:[#allocation2 + $0x68] sm:$0xff] %v706
      %723 = vst [vmem:[#allocation2 + $0x80] sm:$0xff] %v707
      %724 = vst [vmem:[#allocation2 + $0x98] sm:$0xff] %v708
      %725 = vst [vmem:[#allocation2 + $0xb0] sm:$0xff] %v709
      %726 = vst [vmem:[#allocation2 + $0xc8] sm:$0xff] %v710
      %727 = vst [vmem:[#allocation2 + $0xe0] sm:$0xff] %v711
      %728 = vst [vmem:[#allocation2 + $0xf8] sm:$0xff] %v712
      %729 = vst [vmem:[#allocation2 + $0x110] sm:$0xff] %v713
      %730 = vst [vmem:[#allocation2 + $0x128] sm:$0xff] %v714
      %731 = vst [vmem:[#allocation2 + $0x140] sm:$0xff] %v715
      %732 = vst [vmem:[#allocation2 + $0x158] sm:$0xff] %v716
      %733 = vst [vmem:[#allocation2 + $0x170] sm:$0xff] %v717
      %734 = vst [vmem:[#allocation2 + $0x188] sm:$0xff] %v718
      %v735 = vpack.c.bf16 %v649, %v571
      %v736 = vpack.c.bf16 %v650, %v574
      %v737 = vpack.c.bf16 %v651, %v577
      %v738 = vpack.c.bf16 %v652, %v580
      %v739 = vpack.c.bf16 %v653, %v583
      %v740 = vpack.c.bf16 %v654, %v586
      %v741 = vpack.c.bf16 %v655, %v589
      %v742 = vpack.c.bf16 %v656, %v592
      %v743 = vpack.c.bf16 %v657, %v595
      %v744 = vpack.c.bf16 %v658, %v598
      %v745 = vpack.c.bf16 %v659, %v601
      %v746 = vpack.c.bf16 %v660, %v604
      %v747 = vpack.c.bf16 %v661, %v607
      %v748 = vpack.c.bf16 %v662, %v610
      %v749 = vpack.c.bf16 %v663, %v613
      %v750 = vpack.c.bf16 %v664, %v616
      %751 = vst [vmem:[#allocation2 + $0x28] sm:$0xff] %v735
      %752 = vst [vmem:[#allocation2 + $0x40] sm:$0xff] %v736
      %753 = vst [vmem:[#allocation2 + $0x58] sm:$0xff] %v737
      %754 = vst [vmem:[#allocation2 + $0x70] sm:$0xff] %v738
      %755 = vst [vmem:[#allocation2 + $0x88] sm:$0xff] %v739
      %756 = vst [vmem:[#allocation2 + $0xa0] sm:$0xff] %v740
      %757 = vst [vmem:[#allocation2 + $0xb8] sm:$0xff] %v741
      %758 = vst [vmem:[#allocation2 + $0xd0] sm:$0xff] %v742
      %759 = vst [vmem:[#allocation2 + $0xe8] sm:$0xff] %v743
      %760 = vst [vmem:[#allocation2 + $0x100] sm:$0xff] %v744
      %761 = vst [vmem:[#allocation2 + $0x118] sm:$0xff] %v745
      %762 = vst [vmem:[#allocation2 + $0x130] sm:$0xff] %v746
      %763 = vst [vmem:[#allocation2 + $0x148] sm:$0xff] %v747
      %764 = vst [vmem:[#allocation2 + $0x160] sm:$0xff] %v748
      %765 = vst [vmem:[#allocation2 + $0x178] sm:$0xff] %v749
      %766 = vst [vmem:[#allocation2 + $0x190] sm:$0xff] %v750
      %v767 = vld [vmem:[#allocation2] sm:$0xff]
      %v768 = vld [vmem:[#allocation2 + $0x8] sm:$0xff]
      %v769 = vld [vmem:[#allocation2 + $0x10] sm:$0xff]
      %v770 = vld [vmem:[#allocation2 + $0x18] sm:$0xff]
      %v771 = vld [vmem:[#allocation2 + $0x20] sm:$0xff]
      %v772 = vld [vmem:[#allocation2 + $0x28] sm:$0xff]
      %v773 = vld [vmem:[#allocation2 + $0x30] sm:$0xff]
      %v774 = vld [vmem:[#allocation2 + $0x38] sm:$0xff]
      %v775 = vld [vmem:[#allocation2 + $0x40] sm:$0xff]
      %v776 = vld [vmem:[#allocation2 + $0x48] sm:$0xff]
      %v777 = vld [vmem:[#allocation2 + $0x50] sm:$0xff]
      %v778 = vld [vmem:[#allocation2 + $0x58] sm:$0xff]
      %v779 = vld [vmem:[#allocation2 + $0x60] sm:$0xff]
      %v780 = vld [vmem:[#allocation2 + $0x68] sm:$0xff]
      %v781 = vld [vmem:[#allocation2 + $0x70] sm:$0xff]
      %v782 = vld [vmem:[#allocation2 + $0x78] sm:$0xff]
      %v783 = vld [vmem:[#allocation2 + $0x80] sm:$0xff]
      %v784 = vld [vmem:[#allocation2 + $0x88] sm:$0xff]
      %v785 = vld [vmem:[#allocation2 + $0x90] sm:$0xff]
      %v786 = vld [vmem:[#allocation2 + $0x98] sm:$0xff]
      %v787 = vld [vmem:[#allocation2 + $0xa0] sm:$0xff]
      %v788 = vld [vmem:[#allocation2 + $0xa8] sm:$0xff]
      %v789 = vld [vmem:[#allocation2 + $0xb0] sm:$0xff]
      %v790 = vld [vmem:[#allocation2 + $0xb8] sm:$0xff]
      %v791 = vld [vmem:[#allocation2 + $0xc0] sm:$0xff]
      %v792 = vld [vmem:[#allocation2 + $0xc8] sm:$0xff]
      %v793 = vld [vmem:[#allocation2 + $0xd0] sm:$0xff]
      %v794 = vld [vmem:[#allocation2 + $0xd8] sm:$0xff]
      %v795 = vld [vmem:[#allocation2 + $0xe0] sm:$0xff]
      %v796 = vld [vmem:[#allocation2 + $0xe8] sm:$0xff]
      %v797 = vld [vmem:[#allocation2 + $0xf0] sm:$0xff]
      %v798 = vld [vmem:[#allocation2 + $0xf8] sm:$0xff]
      %v799 = vld [vmem:[#allocation2 + $0x100] sm:$0xff]
      %v800 = vld [vmem:[#allocation2 + $0x108] sm:$0xff]
      %v801 = vld [vmem:[#allocation2 + $0x110] sm:$0xff]
      %v802 = vld [vmem:[#allocation2 + $0x118] sm:$0xff]
      %v803 = vld [vmem:[#allocation2 + $0x120] sm:$0xff]
      %v804 = vld [vmem:[#allocation2 + $0x128] sm:$0xff]
      %v805 = vld [vmem:[#allocation2 + $0x130] sm:$0xff]
      %v806 = vld [vmem:[#allocation2 + $0x138] sm:$0xff]
      %v807 = vld [vmem:[#allocation2 + $0x140] sm:$0xff]
      %v808 = vld [vmem:[#allocation2 + $0x148] sm:$0xff]
      %v809 = vld [vmem:[#allocation2 + $0x150] sm:$0xff]
      %v810 = vld [vmem:[#allocation2 + $0x158] sm:$0xff]
      %v811 = vld [vmem:[#allocation2 + $0x160] sm:$0xff]
      %v812 = vld [vmem:[#allocation2 + $0x168] sm:$0xff]
      %v813 = vld [vmem:[#allocation2 + $0x170] sm:$0xff]
      %v814 = vld [vmem:[#allocation2 + $0x178] sm:$0xff]
      %v815 = vld [vmem:[%s3] sm:$0xf]
      %v816 = vld [vmem:[%s3 + $0x4] sm:$0xf]
      %v817 = vld [vmem:[%s3 + $0x8] sm:$0xf]
      %v818 = vld [vmem:[%s3 + $0xc] sm:$0xf]
      %v819 = vld [vmem:[%s3 + $0x10] sm:$0xf]
      %v820 = vld [vmem:[%s3 + $0x14] sm:$0xf]
      %v821 = vld [vmem:[%s3 + $0x18] sm:$0xf]
      %v822 = vld [vmem:[%s3 + $0x1c] sm:$0xf]
      %v823 = vld [vmem:[%s3 + $0x20] sm:$0xf]
      %v824 = vld [vmem:[%s3 + $0x24] sm:$0xf]
      %v825 = vld [vmem:[%s3 + $0x28] sm:$0xf]
      %v826 = vld [vmem:[%s3 + $0x2c] sm:$0xf]
      %v827 = vld [vmem:[%s3 + $0x30] sm:$0xf]
      %v828 = vld [vmem:[%s3 + $0x34] sm:$0xf]
      %v829 = vld [vmem:[%s3 + $0x38] sm:$0xf]
      %v830 = vld [vmem:[%s3 + $0x3c] sm:$0xf]
      %v831 = vld [vmem:[%s3 + $0x40] sm:$0xf]
      %v832 = vld [vmem:[%s3 + $0x44] sm:$0xf]
      %v833 = vld [vmem:[%s3 + $0x48] sm:$0xf]
      %v834 = vld [vmem:[%s3 + $0x4c] sm:$0xf]
      %v835 = vld [vmem:[%s3 + $0x50] sm:$0xf]
      %v836 = vld [vmem:[%s3 + $0x54] sm:$0xf]
      %v837 = vld [vmem:[%s3 + $0x58] sm:$0xf]
      %v838 = vld [vmem:[%s3 + $0x5c] sm:$0xf]
      %v839 = vld [vmem:[%s3 + $0x60] sm:$0xf]
      %v840 = vld [vmem:[%s3 + $0x64] sm:$0xf]
      %v841 = vld [vmem:[%s3 + $0x68] sm:$0xf]
      %v842 = vld [vmem:[%s3 + $0x6c] sm:$0xf]
      %v843 = vld [vmem:[%s3 + $0x70] sm:$0xf]
      %v844 = vld [vmem:[%s3 + $0x74] sm:$0xf]
      %v845 = vld [vmem:[%s3 + $0x78] sm:$0xf]
      %v846 = vld [vmem:[%s3 + $0x7c] sm:$0xf]
      %v847 = vld [vmem:[%s3 + $0x80] sm:$0xf]
      %v848 = vld [vmem:[%s3 + $0x84] sm:$0xf]
      %v849 = vld [vmem:[%s3 + $0x88] sm:$0xf]
      %v850 = vld [vmem:[%s3 + $0x8c] sm:$0xf]
      %v851 = vld [vmem:[%s3 + $0x90] sm:$0xf]
      %v852 = vld [vmem:[%s3 + $0x94] sm:$0xf]
      %v853 = vld [vmem:[%s3 + $0x98] sm:$0xf]
      %v854 = vld [vmem:[%s3 + $0x9c] sm:$0xf]
      %v855 = vld [vmem:[%s3 + $0xa0] sm:$0xf]
      %v856 = vld [vmem:[%s3 + $0xa4] sm:$0xf]
      %v857 = vld [vmem:[%s3 + $0xa8] sm:$0xf]
      %v858 = vld [vmem:[%s3 + $0xac] sm:$0xf]
      %v859 = vld [vmem:[%s3 + $0xb0] sm:$0xf]
      %v860 = vld [vmem:[%s3 + $0xb4] sm:$0xf]
      %v861 = vld [vmem:[%s3 + $0xb8] sm:$0xf]
      %v862 = vld [vmem:[%s3 + $0xbc] sm:$0xf]
      %v863 = vld [vmem:[#allocation2 + $0x180] sm:$0xff]
      %v864 = vld [vmem:[#allocation2 + $0x188] sm:$0xff]
      %v865 = vld [vmem:[#allocation2 + $0x190] sm:$0xff]
      %s866 = scalar_lea.vmem %s3, 192
      %v867 = vld [vmem:[%s866] sm:$0xf]
      %v868 = vld [vmem:[%s866 + $0x4] sm:$0xf]
      %v869 = vld [vmem:[%s866 + $0x8] sm:$0xf]
      %v870 = vld [vmem:[%s866 + $0xc] sm:$0xf]
      %v871 = vld [vmem:[%s866 + $0x10] sm:$0xf]
      %v872 = vld [vmem:[%s866 + $0x14] sm:$0xf]
      %v873 = vld [vmem:[%s866 + $0x18] sm:$0xf]
      %v874 = vld [vmem:[%s866 + $0x1c] sm:$0xf]
      %v875 = vld [vmem:[%s866 + $0x20] sm:$0xf]
      %v876 = vld [vmem:[%s866 + $0x24] sm:$0xf]
      %v877 = vld [vmem:[%s866 + $0x28] sm:$0xf]
      %v878 = vld [vmem:[%s866 + $0x2c] sm:$0xf]
      %v879 = vld [vmem:[%s866 + $0x30] sm:$0xf]
      %v880 = vld [vmem:[%s866 + $0x34] sm:$0xf]
      %v881 = vld [vmem:[%s866 + $0x38] sm:$0xf]
      %v882 = vld [vmem:[%s866 + $0x3c] sm:$0xf]
      %v883 = vld [vmem:[%s866 + $0x40] sm:$0xf]
      %v884 = vld [vmem:[%s866 + $0x44] sm:$0xf]
      %v885 = vld [vmem:[%s866 + $0x48] sm:$0xf]
      %v886 = vld [vmem:[%s866 + $0x4c] sm:$0xf]
      %v887 = vld [vmem:[%s866 + $0x50] sm:$0xf]
      %v888 = vld [vmem:[%s866 + $0x54] sm:$0xf]
      %v889 = vld [vmem:[%s866 + $0x58] sm:$0xf]
      %v890 = vld [vmem:[%s866 + $0x5c] sm:$0xf]
      %v891 = vld [vmem:[%s866 + $0x60] sm:$0xf]
      %v892 = vld [vmem:[%s866 + $0x64] sm:$0xf]
      %v893 = vld [vmem:[%s866 + $0x68] sm:$0xf]
      %v894 = vld [vmem:[%s866 + $0x6c] sm:$0xf]
      %v895 = vld [vmem:[%s866 + $0x70] sm:$0xf]
      %v896 = vld [vmem:[%s866 + $0x74] sm:$0xf]
      %v897 = vld [vmem:[%s866 + $0x78] sm:$0xf]
      %v898 = vld [vmem:[%s866 + $0x7c] sm:$0xf]
      %v899 = vld [vmem:[%s866 + $0x80] sm:$0xf]
      %v900 = vld [vmem:[%s866 + $0x84] sm:$0xf]
      %v901 = vld [vmem:[%s866 + $0x88] sm:$0xf]
      %v902 = vld [vmem:[%s866 + $0x8c] sm:$0xf]
      %v903 = vld [vmem:[%s866 + $0x90] sm:$0xf]
      %v904 = vld [vmem:[%s866 + $0x94] sm:$0xf]
      %v905 = vld [vmem:[%s866 + $0x98] sm:$0xf]
      %v906 = vld [vmem:[%s866 + $0x9c] sm:$0xf]
      %v907 = vld [vmem:[%s866 + $0xa0] sm:$0xf]
      %v908 = vld [vmem:[%s866 + $0xa4] sm:$0xf]
      %v909 = vld [vmem:[%s866 + $0xa8] sm:$0xf]
      %v910 = vld [vmem:[%s866 + $0xac] sm:$0xf]
      %v911 = vld [vmem:[%s866 + $0xb0] sm:$0xf]
      %v912 = vld [vmem:[%s866 + $0xb4] sm:$0xf]
      %v913 = vld [vmem:[%s866 + $0xb8] sm:$0xf]
      %v914 = vld [vmem:[%s866 + $0xbc] sm:$0xf]
      %v963 = vunpack.c.l.b16 %v867
      %v964 = vunpack.c.l.b16 %v868
      %v965 = vunpack.c.l.b16 %v869
      %v966 = vunpack.c.l.b16 %v870
      %v967 = vunpack.c.l.b16 %v871
      %v968 = vunpack.c.l.b16 %v872
      %v969 = vunpack.c.l.b16 %v873
      %v970 = vunpack.c.l.b16 %v874
      %v971 = vunpack.c.l.b16 %v875
      %v972 = vunpack.c.l.b16 %v876
      %v973 = vunpack.c.l.b16 %v877
      %v974 = vunpack.c.l.b16 %v878
      %v975 = vunpack.c.l.b16 %v879
      %v976 = vunpack.c.l.b16 %v880
      %v977 = vunpack.c.l.b16 %v881
      %v978 = vunpack.c.l.b16 %v882
      %v979 = vunpack.c.l.b16 %v883
      %v980 = vunpack.c.l.b16 %v884
      %v981 = vunpack.c.l.b16 %v885
      %v982 = vunpack.c.l.b16 %v886
      %v983 = vunpack.c.l.b16 %v887
      %v984 = vunpack.c.l.b16 %v888
      %v985 = vunpack.c.l.b16 %v889
      %v986 = vunpack.c.l.b16 %v890
      %v987 = vunpack.c.l.b16 %v891
      %v988 = vunpack.c.l.b16 %v892
      %v989 = vunpack.c.l.b16 %v893
      %v990 = vunpack.c.l.b16 %v894
      %v991 = vunpack.c.l.b16 %v895
      %v992 = vunpack.c.l.b16 %v896
      %v993 = vunpack.c.l.b16 %v897
      %v994 = vunpack.c.l.b16 %v898
      %v995 = vunpack.c.l.b16 %v899
      %v996 = vunpack.c.l.b16 %v900
      %v997 = vunpack.c.l.b16 %v901
      %v998 = vunpack.c.l.b16 %v902
      %v999 = vunpack.c.l.b16 %v903
      %v1000 = vunpack.c.l.b16 %v904
      %v1001 = vunpack.c.l.b16 %v905
      %v1002 = vunpack.c.l.b16 %v906
      %v1003 = vunpack.c.l.b16 %v907
      %v1004 = vunpack.c.l.b16 %v908
      %v1005 = vunpack.c.l.b16 %v909
      %v1006 = vunpack.c.l.b16 %v910
      %v1007 = vunpack.c.l.b16 %v911
      %v1008 = vunpack.c.l.b16 %v912
      %v1009 = vunpack.c.l.b16 %v913
      %v1010 = vunpack.c.l.b16 %v914
      %v1011 = vpack.c.b16 %v964, %v963
      %v1012 = vpack.c.b16 %v966, %v965
      %v1013 = vpack.c.b16 %v968, %v967
      %v1014 = vpack.c.b16 %v970, %v969
      %v1015 = vpack.c.b16 %v972, %v971
      %v1016 = vpack.c.b16 %v974, %v973
      %v1017 = vpack.c.b16 %v976, %v975
      %v1018 = vpack.c.b16 %v978, %v977
      %v1019 = vpack.c.b16 %v980, %v979
      %v1020 = vpack.c.b16 %v982, %v981
      %v1021 = vpack.c.b16 %v984, %v983
      %v1022 = vpack.c.b16 %v986, %v985
      %v1023 = vpack.c.b16 %v988, %v987
      %v1024 = vpack.c.b16 %v990, %v989
      %v1025 = vpack.c.b16 %v992, %v991
      %v1026 = vpack.c.b16 %v994, %v993
      %v1027 = vpack.c.b16 %v996, %v995
      %v1028 = vpack.c.b16 %v998, %v997
      %v1029 = vpack.c.b16 %v1000, %v999
      %v1030 = vpack.c.b16 %v1002, %v1001
      %v1031 = vpack.c.b16 %v1004, %v1003
      %v1032 = vpack.c.b16 %v1006, %v1005
      %v1033 = vpack.c.b16 %v1008, %v1007
      %v1034 = vpack.c.b16 %v1010, %v1009
      %1059 = vmatprep.subr.bf16.mxu0 0
      %1060 = vmatpush1.bf16.msra.mxu0 %v1011
      %1061 = vmatprep.subr.bf16.mxu0 0
      %1062 = vmatpush1.bf16.msra.mxu0 %v1012
      %1063 = vmatprep.subr.bf16.mxu0 0
      %1064 = vmatpush1.bf16.msra.mxu0 %v1013
      %1065 = vmatprep.subr.bf16.mxu0 0
      %1066 = vmatpush1.bf16.msra.mxu0 %v1014
      %1067 = vmatprep.subr.bf16.mxu0 0
      %1068 = vmatpush1.bf16.msra.mxu0 %v1015
      %1069 = vmatprep.subr.bf16.mxu0 0
      %1070 = vmatpush1.bf16.msra.mxu0 %v1016
      %1071 = vmatprep.subr.bf16.mxu0 0
      %1072 = vmatpush1.bf16.msra.mxu0 %v1017
      %1073 = vmatprep.subr.bf16.mxu0 0
      %1074 = vmatpush1.bf16.msra.mxu0 %v1018
      %1075 = vmatprep.subr.bf16.mxu0 0
      %1076 = vmatpush1.bf16.msra.mxu0 %v1019
      %1077 = vmatprep.subr.bf16.mxu0 0
      %1078 = vmatpush1.bf16.msra.mxu0 %v1020
      %1079 = vmatprep.subr.bf16.mxu0 0
      %1080 = vmatpush1.bf16.msra.mxu0 %v1021
      %1081 = vmatprep.subr.bf16.mxu0 0
      %1082 = vmatpush1.bf16.msra.mxu0 %v1022
      %1083 = vmatprep.subr.bf16.mxu0 0
      %1084 = vmatpush1.bf16.msra.mxu0 %v1023
      %1085 = vmatprep.subr.bf16.mxu0 0
      %1086 = vmatpush1.bf16.msra.mxu0 %v1024
      %1087 = vmatprep.subr.bf16.mxu0 0
      %1088 = vmatpush1.bf16.msra.mxu0 %v1025
      %1089 = vmatprep.subr.bf16.mxu0 0
      %1090 = vmatpush1.bf16.msra.mxu0 %v1026
      %1091 = vmatprep.mubr.bf16.mxu0 %v771
      %1092 = vmatmul.mubr.bf16.gmra.mrb[0].mxu0 %v770
      %v1093 = vpop.f32.mrb[0].mxu0
      %v1094 = vadd.f32 0.0, %v1093
      %v1095 = vpop.f32.mrb[0].mxu0
      %v1096 = vpop.f32.mrb[0].mxu0
      %v1097 = vadd.f32 0.0, %v1096
      %v1098 = vpop.f32.mrb[0].mxu0
      %1099 = vmatprep.mubr.bf16.mxu0 %v774
      %1100 = vmatmul.mubr.bf16.gmra.mrb[0].mxu0 %v773
      %v1101 = vpop.f32.mrb[0].mxu0
      %v1102 = vadd.f32 0.0, %v1101
      %v1103 = vpop.f32.mrb[0].mxu0
      %v1104 = vpop.f32.mrb[0].mxu0
      %v1105 = vadd.f32 0.0, %v1104
      %v1106 = vpop.f32.mrb[0].mxu0
      %1107 = vmatprep.mubr.bf16.mxu0 %v777
      %1108 = vmatmul.mubr.bf16.gmra.mrb[0].mxu0 %v776
      %v1109 = vpop.f32.mrb[0].mxu0
      %v1110 = vadd.f32 0.0, %v1109
      %v1111 = vpop.f32.mrb[0].mxu0
      %v1112 = vpop.f32.mrb[0].mxu0
      %v1113 = vadd.f32 0.0, %v1112
      %v1114 = vpop.f32.mrb[0].mxu0
      %1115 = vmatprep.mubr.bf16.mxu0 %v780
      %1116 = vmatmul.mubr.bf16.gmra.mrb[0].mxu0 %v779
      %v1117 = vpop.f32.mrb[0].mxu0
      %v1118 = vadd.f32 0.0, %v1117
      %v1119 = vpop.f32.mrb[0].mxu0
      %v1120 = vpop.f32.mrb[0].mxu0
      %v1121 = vadd.f32 0.0, %v1120
      %v1122 = vpop.f32.mrb[0].mxu0
      %1123 = vmatprep.mubr.bf16.mxu0 %v783
      %1124 = vmatmul.mubr.bf16.gmra.mrb[0].mxu0 %v782
      %v1125 = vpop.f32.mrb[0].mxu0
      %v1126 = vadd.f32 0.0, %v1125
      %v1127 = vpop.f32.mrb[0].mxu0
      %v1128 = vpop.f32.mrb[0].mxu0
      %v1129 = vadd.f32 0.0, %v1128
      %v1130 = vpop.f32.mrb[0].mxu0
      %1131 = vmatprep.mubr.bf16.mxu0 %v786
      %1132 = vmatmul.mubr.bf16.gmra.mrb[0].mxu0 %v785
      %v1133 = vpop.f32.mrb[0].mxu0
      %v1134 = vadd.f32 0.0, %v1133
      %v1135 = vpop.f32.mrb[0].mxu0
      %v1136 = vpop.f32.mrb[0].mxu0
      %v1137 = vadd.f32 0.0, %v1136
      %v1138 = vpop.f32.mrb[0].mxu0
      %1139 = vmatprep.mubr.bf16.mxu0 %v789
      %1140 = vmatmul.mubr.bf16.gmra.mrb[0].mxu0 %v788
      %v1141 = vpop.f32.mrb[0].mxu0
      %v1142 = vadd.f32 0.0, %v1141
      %v1143 = vpop.f32.mrb[0].mxu0
      %v1144 = vpop.f32.mrb[0].mxu0
      %v1145 = vadd.f32 0.0, %v1144
      %v1146 = vpop.f32.mrb[0].mxu0
      %1147 = vmatprep.mubr.bf16.mxu0 %v792
      %1148 = vmatmul.mubr.bf16.gmra.mrb[0].mxu0 %v791
      %v1149 = vpop.f32.mrb[0].mxu0
      %v1150 = vadd.f32 0.0, %v1149
      %v1151 = vpop.f32.mrb[0].mxu0
      %v1152 = vpop.f32.mrb[0].mxu0
      %v1153 = vadd.f32 0.0, %v1152
      %v1154 = vpop.f32.mrb[0].mxu0
      %1155 = vmatprep.mubr.bf16.mxu0 %v795
      %1156 = vmatmul.mubr.bf16.gmra.mrb[0].mxu0 %v794
      %v1157 = vpop.f32.mrb[0].mxu0
      %v1158 = vadd.f32 0.0, %v1157
      %v1159 = vpop.f32.mrb[0].mxu0
      %v1160 = vpop.f32.mrb[0].mxu0
      %v1161 = vadd.f32 0.0, %v1160
      %v1162 = vpop.f32.mrb[0].mxu0
      %1163 = vmatprep.mubr.bf16.mxu0 %v798
      %1164 = vmatmul.mubr.bf16.gmra.mrb[0].mxu0 %v797
      %v1165 = vpop.f32.mrb[0].mxu0
      %v1166 = vadd.f32 0.0, %v1165
      %v1167 = vpop.f32.mrb[0].mxu0
      %v1168 = vpop.f32.mrb[0].mxu0
      %v1169 = vadd.f32 0.0, %v1168
      %v1170 = vpop.f32.mrb[0].mxu0
      %1171 = vmatprep.mubr.bf16.mxu0 %v801
      %1172 = vmatmul.mubr.bf16.gmra.mrb[0].mxu0 %v800
      %v1173 = vpop.f32.mrb[0].mxu0
      %v1174 = vadd.f32 0.0, %v1173
      %v1175 = vpop.f32.mrb[0].mxu0
      %v1176 = vpop.f32.mrb[0].mxu0
      %v1177 = vadd.f32 0.0, %v1176
      %v1178 = vpop.f32.mrb[0].mxu0
      %1179 = vmatprep.mubr.bf16.mxu0 %v804
      %1180 = vmatmul.mubr.bf16.gmra.mrb[0].mxu0 %v803
      %v1181 = vpop.f32.mrb[0].mxu0
      %v1182 = vadd.f32 0.0, %v1181
      %v1183 = vpop.f32.mrb[0].mxu0
      %v1184 = vpop.f32.mrb[0].mxu0
      %v1185 = vadd.f32 0.0, %v1184
      %v1186 = vpop.f32.mrb[0].mxu0
      %1187 = vmatprep.mubr.bf16.mxu0 %v807
      %1188 = vmatmul.mubr.bf16.gmra.mrb[0].mxu0 %v806
      %v1189 = vpop.f32.mrb[0].mxu0
      %v1190 = vadd.f32 0.0, %v1189
      %v1191 = vpop.f32.mrb[0].mxu0
      %v1192 = vpop.f32.mrb[0].mxu0
      %v1193 = vadd.f32 0.0, %v1192
      %v1194 = vpop.f32.mrb[0].mxu0
      %1195 = vmatprep.mubr.bf16.mxu0 %v810
      %1196 = vmatmul.mubr.bf16.gmra.mrb[0].mxu0 %v809
      %v1197 = vpop.f32.mrb[0].mxu0
      %v1198 = vadd.f32 0.0, %v1197
      %v1199 = vpop.f32.mrb[0].mxu0
      %v1200 = vpop.f32.mrb[0].mxu0
      %v1201 = vadd.f32 0.0, %v1200
      %v1202 = vpop.f32.mrb[0].mxu0
      %1203 = vmatprep.mubr.bf16.mxu0 %v813
      %1204 = vmatmul.mubr.bf16.gmra.mrb[0].mxu0 %v812
      %v1205 = vpop.f32.mrb[0].mxu0
      %v1206 = vadd.f32 0.0, %v1205
      %v1207 = vpop.f32.mrb[0].mxu0
      %v1208 = vpop.f32.mrb[0].mxu0
      %v1209 = vadd.f32 0.0, %v1208
      %v1210 = vpop.f32.mrb[0].mxu0
      %1211 = vmatprep.mubr.bf16.mxu0 %v864
      %1212 = vmatmul.mubr.bf16.gmra.mrb[0].mxu0 %v863
      %v1213 = vpop.f32.mrb[0].mxu0
      %v1214 = vadd.f32 0.0, %v1213
      %v1215 = vpop.f32.mrb[0].mxu0
      %v1216 = vpop.f32.mrb[0].mxu0
      %v1217 = vadd.f32 0.0, %v1216
      %v1218 = vpop.f32.mrb[0].mxu0
      %1219 = vdwg.mxu0
      %1220 = vmatprep.subr.bf16.mxu0 0
      %1221 = vmatpush1.bf16.msra.mxu0 %v1027
      %1222 = vmatprep.subr.bf16.mxu0 0
      %1223 = vmatpush1.bf16.msra.mxu0 %v1028
      %1224 = vmatprep.subr.bf16.mxu0 0
      %1225 = vmatpush1.bf16.msra.mxu0 %v1029
      %1226 = vmatprep.subr.bf16.mxu0 0
      %1227 = vmatpush1.bf16.msra.mxu0 %v1030
      %1228 = vmatprep.subr.bf16.mxu0 0
      %1229 = vmatpush1.bf16.msra.mxu0 %v1031
      %1230 = vmatprep.subr.bf16.mxu0 0
      %1231 = vmatpush1.bf16.msra.mxu0 %v1032
      %1232 = vmatprep.subr.bf16.mxu0 0
      %1233 = vmatpush1.bf16.msra.mxu0 %v1033
      %1234 = vmatprep.subr.bf16.mxu0 0
      %1235 = vmatpush1.bf16.msra.mxu0 %v1034
      %1236 = vmatprep.subr.bf16.mxu0 0
      %1237 = vmatpush1.bf16.msra.mxu0 0
      %1238 = vmatprep.subr.bf16.mxu0 0
      %1239 = vmatpush1.bf16.msra.mxu0 0
      %1240 = vmatprep.subr.bf16.mxu0 0
      %1241 = vmatpush1.bf16.msra.mxu0 0
      %1242 = vmatprep.subr.bf16.mxu0 0
      %1243 = vmatpush1.bf16.msra.mxu0 0
      %1244 = vmatprep.subr.bf16.mxu0 0
      %1245 = vmatpush1.bf16.msra.mxu0 0
      %1246 = vmatprep.subr.bf16.mxu0 0
      %1247 = vmatpush1.bf16.msra.mxu0 0
      %1248 = vmatprep.subr.bf16.mxu0 0
      %1249 = vmatpush1.bf16.msra.mxu0 0
      %1250 = vmatprep.subr.bf16.mxu0 0
      %1251 = vmatpush1.bf16.msra.mxu0 0
      %1252 = vmatprep.mubr.bf16.mxu0 0
      %1253 = vmatmul.mubr.bf16.gmra.mrb[0].mxu0 %v772
      %v1254 = vpop.f32.mrb[0].mxu0
      %v1255 = vadd.f32 %v1094, %v1254
      %v1256 = vpop.f32.mrb[0].mxu0
      %v1257 = vpop.f32.mrb[0].mxu0
      %v1258 = vadd.f32 %v1097, %v1257
      %v1259 = vpop.f32.mrb[0].mxu0
      %1260 = vmatprep.mubr.bf16.mxu0 0
      %1261 = vmatmul.mubr.bf16.gmra.mrb[0].mxu0 %v775
      %v1262 = vpop.f32.mrb[0].mxu0
      %v1263 = vadd.f32 %v1102, %v1262
      %v1264 = vpop.f32.mrb[0].mxu0
      %v1265 = vpop.f32.mrb[0].mxu0
      %v1266 = vadd.f32 %v1105, %v1265
      %v1267 = vpop.f32.mrb[0].mxu0
      %1268 = vmatprep.mubr.bf16.mxu0 0
      %1269 = vmatmul.mubr.bf16.gmra.mrb[0].mxu0 %v778
      %v1270 = vpop.f32.mrb[0].mxu0
      %v1271 = vadd.f32 %v1110, %v1270
      %v1272 = vpop.f32.mrb[0].mxu0
      %v1273 = vpop.f32.mrb[0].mxu0
      %v1274 = vadd.f32 %v1113, %v1273
      %v1275 = vpop.f32.mrb[0].mxu0
      %1276 = vmatprep.mubr.bf16.mxu0 0
      %1277 = vmatmul.mubr.bf16.gmra.mrb[0].mxu0 %v781
      %v1278 = vpop.f32.mrb[0].mxu0
      %v1279 = vadd.f32 %v1118, %v1278
      %v1280 = vpop.f32.mrb[0].mxu0
      %v1281 = vpop.f32.mrb[0].mxu0
      %v1282 = vadd.f32 %v1121, %v1281
      %v1283 = vpop.f32.mrb[0].mxu0
      %1284 = vmatprep.mubr.bf16.mxu0 0
      %1285 = vmatmul.mubr.bf16.gmra.mrb[0].mxu0 %v784
      %v1286 = vpop.f32.mrb[0].mxu0
      %v1287 = vadd.f32 %v1126, %v1286
      %v1288 = vpop.f32.mrb[0].mxu0
      %v1289 = vpop.f32.mrb[0].mxu0
      %v1290 = vadd.f32 %v1129, %v1289
      %v1291 = vpop.f32.mrb[0].mxu0
      %1292 = vmatprep.mubr.bf16.mxu0 0
      %1293 = vmatmul.mubr.bf16.gmra.mrb[0].mxu0 %v787
      %v1294 = vpop.f32.mrb[0].mxu0
      %v1295 = vadd.f32 %v1134, %v1294
      %v1296 = vpop.f32.mrb[0].mxu0
      %v1297 = vpop.f32.mrb[0].mxu0
      %v1298 = vadd.f32 %v1137, %v1297
      %v1299 = vpop.f32.mrb[0].mxu0
      %1300 = vmatprep.mubr.bf16.mxu0 0
      %1301 = vmatmul.mubr.bf16.gmra.mrb[0].mxu0 %v790
      %v1302 = vpop.f32.mrb[0].mxu0
      %v1303 = vadd.f32 %v1142, %v1302
      %v1304 = vpop.f32.mrb[0].mxu0
      %v1305 = vpop.f32.mrb[0].mxu0
      %v1306 = vadd.f32 %v1145, %v1305
      %v1307 = vpop.f32.mrb[0].mxu0
      %1308 = vmatprep.mubr.bf16.mxu0 0
      %1309 = vmatmul.mubr.bf16.gmra.mrb[0].mxu0 %v793
      %v1310 = vpop.f32.mrb[0].mxu0
      %v1311 = vadd.f32 %v1150, %v1310
      %v1312 = vpop.f32.mrb[0].mxu0
      %v1313 = vpop.f32.mrb[0].mxu0
      %v1314 = vadd.f32 %v1153, %v1313
      %v1315 = vpop.f32.mrb[0].mxu0
      %1316 = vmatprep.mubr.bf16.mxu0 0
      %1317 = vmatmul.mubr.bf16.gmra.mrb[0].mxu0 %v796
      %v1318 = vpop.f32.mrb[0].mxu0
      %v1319 = vadd.f32 %v1158, %v1318
      %v1320 = vpop.f32.mrb[0].mxu0
      %v1321 = vpop.f32.mrb[0].mxu0
      %v1322 = vadd.f32 %v1161, %v1321
      %v1323 = vpop.f32.mrb[0].mxu0
      %1324 = vmatprep.mubr.bf16.mxu0 0
      %1325 = vmatmul.mubr.bf16.gmra.mrb[0].mxu0 %v799
      %v1326 = vpop.f32.mrb[0].mxu0
      %v1327 = vadd.f32 %v1166, %v1326
      %v1328 = vpop.f32.mrb[0].mxu0
      %v1329 = vpop.f32.mrb[0].mxu0
      %v1330 = vadd.f32 %v1169, %v1329
      %v1331 = vpop.f32.mrb[0].mxu0
      %1332 = vmatprep.mubr.bf16.mxu0 0
      %1333 = vmatmul.mubr.bf16.gmra.mrb[0].mxu0 %v802
      %v1334 = vpop.f32.mrb[0].mxu0
      %v1335 = vadd.f32 %v1174, %v1334
      %v1336 = vpop.f32.mrb[0].mxu0
      %v1337 = vpop.f32.mrb[0].mxu0
      %v1338 = vadd.f32 %v1177, %v1337
      %v1339 = vpop.f32.mrb[0].mxu0
      %1340 = vmatprep.mubr.bf16.mxu0 0
      %1341 = vmatmul.mubr.bf16.gmra.mrb[0].mxu0 %v805
      %v1342 = vpop.f32.mrb[0].mxu0
      %v1343 = vadd.f32 %v1182, %v1342
      %v1344 = vpop.f32.mrb[0].mxu0
      %v1345 = vpop.f32.mrb[0].mxu0
      %v1346 = vadd.f32 %v1185, %v1345
      %v1347 = vpop.f32.mrb[0].mxu0
      %1348 = vmatprep.mubr.bf16.mxu0 0
      %1349 = vmatmul.mubr.bf16.gmra.mrb[0].mxu0 %v808
      %v1350 = vpop.f32.mrb[0].mxu0
      %v1351 = vadd.f32 %v1190, %v1350
      %v1352 = vpop.f32.mrb[0].mxu0
      %v1353 = vpop.f32.mrb[0].mxu0
      %v1354 = vadd.f32 %v1193, %v1353
      %v1355 = vpop.f32.mrb[0].mxu0
      %1356 = vmatprep.mubr.bf16.mxu0 0
      %1357 = vmatmul.mubr.bf16.gmra.mrb[0].mxu0 %v811
      %v1358 = vpop.f32.mrb[0].mxu0
      %v1359 = vadd.f32 %v1198, %v1358
      %v1360 = vpop.f32.mrb[0].mxu0
      %v1361 = vpop.f32.mrb[0].mxu0
      %v1362 = vadd.f32 %v1201, %v1361
      %v1363 = vpop.f32.mrb[0].mxu0
      %1364 = vmatprep.mubr.bf16.mxu0 0
      %1365 = vmatmul.mubr.bf16.gmra.mrb[0].mxu0 %v814
      %v1366 = vpop.f32.mrb[0].mxu0
      %v1367 = vadd.f32 %v1206, %v1366
      %v1368 = vpop.f32.mrb[0].mxu0
      %v1369 = vpop.f32.mrb[0].mxu0
      %v1370 = vadd.f32 %v1209, %v1369
      %v1371 = vpop.f32.mrb[0].mxu0
      %1372 = vmatprep.mubr.bf16.mxu0 0
      %1373 = vmatmul.mubr.bf16.gmra.mrb[0].mxu0 %v865
      %v1374 = vpop.f32.mrb[0].mxu0
      %v1375 = vadd.f32 %v1214, %v1374
      %v1376 = vpop.f32.mrb[0].mxu0
      %v1377 = vpop.f32.mrb[0].mxu0
      %v1378 = vadd.f32 %v1217, %v1377
      %v1379 = vpop.f32.mrb[0].mxu0
      %1380 = vdwg.mxu0
      %v1429 = vunpack.c.l.b16 %v815
      %v1430 = vunpack.c.l.b16 %v816
      %v1431 = vunpack.c.l.b16 %v817
      %v1432 = vunpack.c.l.b16 %v818
      %v1433 = vunpack.c.l.b16 %v819
      %v1434 = vunpack.c.l.b16 %v820
      %v1435 = vunpack.c.l.b16 %v821
      %v1436 = vunpack.c.l.b16 %v822
      %v1437 = vunpack.c.l.b16 %v823
      %v1438 = vunpack.c.l.b16 %v824
      %v1439 = vunpack.c.l.b16 %v825
      %v1440 = vunpack.c.l.b16 %v826
      %v1441 = vunpack.c.l.b16 %v827
      %v1442 = vunpack.c.l.b16 %v828
      %v1443 = vunpack.c.l.b16 %v829
      %v1444 = vunpack.c.l.b16 %v830
      %v1445 = vunpack.c.l.b16 %v831
      %v1446 = vunpack.c.l.b16 %v832
      %v1447 = vunpack.c.l.b16 %v833
      %v1448 = vunpack.c.l.b16 %v834
      %v1449 = vunpack.c.l.b16 %v835
      %v1450 = vunpack.c.l.b16 %v836
      %v1451 = vunpack.c.l.b16 %v837
      %v1452 = vunpack.c.l.b16 %v838
      %v1453 = vunpack.c.l.b16 %v839
      %v1454 = vunpack.c.l.b16 %v840
      %v1455 = vunpack.c.l.b16 %v841
      %v1456 = vunpack.c.l.b16 %v842
      %v1457 = vunpack.c.l.b16 %v843
      %v1458 = vunpack.c.l.b16 %v844
      %v1459 = vunpack.c.l.b16 %v845
      %v1460 = vunpack.c.l.b16 %v846
      %v1461 = vunpack.c.l.b16 %v847
      %v1462 = vunpack.c.l.b16 %v848
      %v1463 = vunpack.c.l.b16 %v849
      %v1464 = vunpack.c.l.b16 %v850
      %v1465 = vunpack.c.l.b16 %v851
      %v1466 = vunpack.c.l.b16 %v852
      %v1467 = vunpack.c.l.b16 %v853
      %v1468 = vunpack.c.l.b16 %v854
      %v1469 = vunpack.c.l.b16 %v855
      %v1470 = vunpack.c.l.b16 %v856
      %v1471 = vunpack.c.l.b16 %v857
      %v1472 = vunpack.c.l.b16 %v858
      %v1473 = vunpack.c.l.b16 %v859
      %v1474 = vunpack.c.l.b16 %v860
      %v1475 = vunpack.c.l.b16 %v861
      %v1476 = vunpack.c.l.b16 %v862
      %v1477 = vpack.c.b16 %v1430, %v1429
      %v1478 = vpack.c.b16 %v1432, %v1431
      %v1479 = vpack.c.b16 %v1434, %v1433
      %v1480 = vpack.c.b16 %v1436, %v1435
      %v1481 = vpack.c.b16 %v1438, %v1437
      %v1482 = vpack.c.b16 %v1440, %v1439
      %v1483 = vpack.c.b16 %v1442, %v1441
      %v1484 = vpack.c.b16 %v1444, %v1443
      %v1485 = vpack.c.b16 %v1446, %v1445
      %v1486 = vpack.c.b16 %v1448, %v1447
      %v1487 = vpack.c.b16 %v1450, %v1449
      %v1488 = vpack.c.b16 %v1452, %v1451
      %v1489 = vpack.c.b16 %v1454, %v1453
      %v1490 = vpack.c.b16 %v1456, %v1455
      %v1491 = vpack.c.b16 %v1458, %v1457
      %v1492 = vpack.c.b16 %v1460, %v1459
      %v1493 = vpack.c.b16 %v1462, %v1461
      %v1494 = vpack.c.b16 %v1464, %v1463
      %v1495 = vpack.c.b16 %v1466, %v1465
      %v1496 = vpack.c.b16 %v1468, %v1467
      %v1497 = vpack.c.b16 %v1470, %v1469
      %v1498 = vpack.c.b16 %v1472, %v1471
      %v1499 = vpack.c.b16 %v1474, %v1473
      %v1500 = vpack.c.b16 %v1476, %v1475
      %1525 = vmatprep.subr.bf16.mxu0 0
      %1526 = vmatpush1.bf16.msra.mxu0 %v1477
      %1527 = vmatprep.subr.bf16.mxu0 0
      %1528 = vmatpush1.bf16.msra.mxu0 %v1478
      %1529 = vmatprep.subr.bf16.mxu0 0
      %1530 = vmatpush1.bf16.msra.mxu0 %v1479
      %1531 = vmatprep.subr.bf16.mxu0 0
      %1532 = vmatpush1.bf16.msra.mxu0 %v1480
      %1533 = vmatprep.subr.bf16.mxu0 0
      %1534 = vmatpush1.bf16.msra.mxu0 %v1481
      %1535 = vmatprep.subr.bf16.mxu0 0
      %1536 = vmatpush1.bf16.msra.mxu0 %v1482
      %1537 = vmatprep.subr.bf16.mxu0 0
      %1538 = vmatpush1.bf16.msra.mxu0 %v1483
      %1539 = vmatprep.subr.bf16.mxu0 0
      %1540 = vmatpush1.bf16.msra.mxu0 %v1484
      %1541 = vmatprep.subr.bf16.mxu0 0
      %1542 = vmatpush1.bf16.msra.mxu0 %v1485
      %1543 = vmatprep.subr.bf16.mxu0 0
      %1544 = vmatpush1.bf16.msra.mxu0 %v1486
      %1545 = vmatprep.subr.bf16.mxu0 0
      %1546 = vmatpush1.bf16.msra.mxu0 %v1487
      %1547 = vmatprep.subr.bf16.mxu0 0
      %1548 = vmatpush1.bf16.msra.mxu0 %v1488
      %1549 = vmatprep.subr.bf16.mxu0 0
      %1550 = vmatpush1.bf16.msra.mxu0 %v1489
      %1551 = vmatprep.subr.bf16.mxu0 0
      %1552 = vmatpush1.bf16.msra.mxu0 %v1490
      %1553 = vmatprep.subr.bf16.mxu0 0
      %1554 = vmatpush1.bf16.msra.mxu0 %v1491
      %1555 = vmatprep.subr.bf16.mxu0 0
      %1556 = vmatpush1.bf16.msra.mxu0 %v1492
      %1557 = vmatprep.mubr.bf16.mxu0 %v768
      %1558 = vmatmul.mubr.bf16.gmra.mrb[0].mxu0 %v767
      %v1559 = vpop.f32.mrb[0].mxu0
      %v1560 = vadd.f32 %v1255, %v1559
      %v1561 = vpop.f32.mrb[0].mxu0
      %v1562 = vpop.f32.mrb[0].mxu0
      %v1563 = vadd.f32 %v1258, %v1562
      %v1564 = vpop.f32.mrb[0].mxu0
      %1565 = vmatprep.mubr.bf16.mxu0 %v771
      %1566 = vmatmul.mubr.bf16.gmra.mrb[0].mxu0 %v770
      %v1567 = vpop.f32.mrb[0].mxu0
      %v1568 = vadd.f32 %v1263, %v1567
      %v1569 = vpop.f32.mrb[0].mxu0
      %v1570 = vpop.f32.mrb[0].mxu0
      %v1571 = vadd.f32 %v1266, %v1570
      %v1572 = vpop.f32.mrb[0].mxu0
      %1573 = vmatprep.mubr.bf16.mxu0 %v774
      %1574 = vmatmul.mubr.bf16.gmra.mrb[0].mxu0 %v773
      %v1575 = vpop.f32.mrb[0].mxu0
      %v1576 = vadd.f32 %v1271, %v1575
      %v1577 = vpop.f32.mrb[0].mxu0
      %v1578 = vpop.f32.mrb[0].mxu0
      %v1579 = vadd.f32 %v1274, %v1578
      %v1580 = vpop.f32.mrb[0].mxu0
      %1581 = vmatprep.mubr.bf16.mxu0 %v777
      %1582 = vmatmul.mubr.bf16.gmra.mrb[0].mxu0 %v776
      %v1583 = vpop.f32.mrb[0].mxu0
      %v1584 = vadd.f32 %v1279, %v1583
      %v1585 = vpop.f32.mrb[0].mxu0
      %v1586 = vpop.f32.mrb[0].mxu0
      %v1587 = vadd.f32 %v1282, %v1586
      %v1588 = vpop.f32.mrb[0].mxu0
      %1589 = vmatprep.mubr.bf16.mxu0 %v780
      %1590 = vmatmul.mubr.bf16.gmra.mrb[0].mxu0 %v779
      %v1591 = vpop.f32.mrb[0].mxu0
      %v1592 = vadd.f32 %v1287, %v1591
      %v1593 = vpop.f32.mrb[0].mxu0
      %v1594 = vpop.f32.mrb[0].mxu0
      %v1595 = vadd.f32 %v1290, %v1594
      %v1596 = vpop.f32.mrb[0].mxu0
      %1597 = vmatprep.mubr.bf16.mxu0 %v783
      %1598 = vmatmul.mubr.bf16.gmra.mrb[0].mxu0 %v782
      %v1599 = vpop.f32.mrb[0].mxu0
      %v1600 = vadd.f32 %v1295, %v1599
      %v1601 = vpop.f32.mrb[0].mxu0
      %v1602 = vpop.f32.mrb[0].mxu0
      %v1603 = vadd.f32 %v1298, %v1602
      %v1604 = vpop.f32.mrb[0].mxu0
      %1605 = vmatprep.mubr.bf16.mxu0 %v786
      %1606 = vmatmul.mubr.bf16.gmra.mrb[0].mxu0 %v785
      %v1607 = vpop.f32.mrb[0].mxu0
      %v1608 = vadd.f32 %v1303, %v1607
      %v1609 = vpop.f32.mrb[0].mxu0
      %v1610 = vpop.f32.mrb[0].mxu0
      %v1611 = vadd.f32 %v1306, %v1610
      %v1612 = vpop.f32.mrb[0].mxu0
      %1613 = vmatprep.mubr.bf16.mxu0 %v789
      %1614 = vmatmul.mubr.bf16.gmra.mrb[0].mxu0 %v788
      %v1615 = vpop.f32.mrb[0].mxu0
      %v1616 = vadd.f32 %v1311, %v1615
      %v1617 = vpop.f32.mrb[0].mxu0
      %v1618 = vpop.f32.mrb[0].mxu0
      %v1619 = vadd.f32 %v1314, %v1618
      %v1620 = vpop.f32.mrb[0].mxu0
      %1621 = vmatprep.mubr.bf16.mxu0 %v792
      %1622 = vmatmul.mubr.bf16.gmra.mrb[0].mxu0 %v791
      %v1623 = vpop.f32.mrb[0].mxu0
      %v1624 = vadd.f32 %v1319, %v1623
      %v1625 = vpop.f32.mrb[0].mxu0
      %v1626 = vpop.f32.mrb[0].mxu0
      %v1627 = vadd.f32 %v1322, %v1626
      %v1628 = vpop.f32.mrb[0].mxu0
      %1629 = vmatprep.mubr.bf16.mxu0 %v795
      %1630 = vmatmul.mubr.bf16.gmra.mrb[0].mxu0 %v794
      %v1631 = vpop.f32.mrb[0].mxu0
      %v1632 = vadd.f32 %v1327, %v1631
      %v1633 = vpop.f32.mrb[0].mxu0
      %v1634 = vpop.f32.mrb[0].mxu0
      %v1635 = vadd.f32 %v1330, %v1634
      %v1636 = vpop.f32.mrb[0].mxu0
      %1637 = vmatprep.mubr.bf16.mxu0 %v798
      %1638 = vmatmul.mubr.bf16.gmra.mrb[0].mxu0 %v797
      %v1639 = vpop.f32.mrb[0].mxu0
      %v1640 = vadd.f32 %v1335, %v1639
      %v1641 = vpop.f32.mrb[0].mxu0
      %v1642 = vpop.f32.mrb[0].mxu0
      %v1643 = vadd.f32 %v1338, %v1642
      %v1644 = vpop.f32.mrb[0].mxu0
      %1645 = vmatprep.mubr.bf16.mxu0 %v801
      %1646 = vmatmul.mubr.bf16.gmra.mrb[0].mxu0 %v800
      %v1647 = vpop.f32.mrb[0].mxu0
      %v1648 = vadd.f32 %v1343, %v1647
      %v1649 = vpop.f32.mrb[0].mxu0
      %v1650 = vpop.f32.mrb[0].mxu0
      %v1651 = vadd.f32 %v1346, %v1650
      %v1652 = vpop.f32.mrb[0].mxu0
      %1653 = vmatprep.mubr.bf16.mxu0 %v804
      %1654 = vmatmul.mubr.bf16.gmra.mrb[0].mxu0 %v803
      %v1655 = vpop.f32.mrb[0].mxu0
      %v1656 = vadd.f32 %v1351, %v1655
      %v1657 = vpop.f32.mrb[0].mxu0
      %v1658 = vpop.f32.mrb[0].mxu0
      %v1659 = vadd.f32 %v1354, %v1658
      %v1660 = vpop.f32.mrb[0].mxu0
      %1661 = vmatprep.mubr.bf16.mxu0 %v807
      %1662 = vmatmul.mubr.bf16.gmra.mrb[0].mxu0 %v806
      %v1663 = vpop.f32.mrb[0].mxu0
      %v1664 = vadd.f32 %v1359, %v1663
      %v1665 = vpop.f32.mrb[0].mxu0
      %v1666 = vpop.f32.mrb[0].mxu0
      %v1667 = vadd.f32 %v1362, %v1666
      %v1668 = vpop.f32.mrb[0].mxu0
      %1669 = vmatprep.mubr.bf16.mxu0 %v810
      %1670 = vmatmul.mubr.bf16.gmra.mrb[0].mxu0 %v809
      %v1671 = vpop.f32.mrb[0].mxu0
      %v1672 = vadd.f32 %v1367, %v1671
      %v1673 = vpop.f32.mrb[0].mxu0
      %v1674 = vpop.f32.mrb[0].mxu0
      %v1675 = vadd.f32 %v1370, %v1674
      %v1676 = vpop.f32.mrb[0].mxu0
      %1677 = vmatprep.mubr.bf16.mxu0 %v813
      %1678 = vmatmul.mubr.bf16.gmra.mrb[0].mxu0 %v812
      %v1679 = vpop.f32.mrb[0].mxu0
      %v1680 = vadd.f32 %v1375, %v1679
      %v1681 = vpop.f32.mrb[0].mxu0
      %v1682 = vpop.f32.mrb[0].mxu0
      %v1683 = vadd.f32 %v1378, %v1682
      %v1684 = vpop.f32.mrb[0].mxu0
      %1685 = vdwg.mxu0
      %1686 = vmatprep.subr.bf16.mxu0 0
      %1687 = vmatpush1.bf16.msra.mxu0 %v1493
      %1688 = vmatprep.subr.bf16.mxu0 0
      %1689 = vmatpush1.bf16.msra.mxu0 %v1494
      %1690 = vmatprep.subr.bf16.mxu0 0
      %1691 = vmatpush1.bf16.msra.mxu0 %v1495
      %1692 = vmatprep.subr.bf16.mxu0 0
      %1693 = vmatpush1.bf16.msra.mxu0 %v1496
      %1694 = vmatprep.subr.bf16.mxu0 0
      %1695 = vmatpush1.bf16.msra.mxu0 %v1497
      %1696 = vmatprep.subr.bf16.mxu0 0
      %1697 = vmatpush1.bf16.msra.mxu0 %v1498
      %1698 = vmatprep.subr.bf16.mxu0 0
      %1699 = vmatpush1.bf16.msra.mxu0 %v1499
      %1700 = vmatprep.subr.bf16.mxu0 0
      %1701 = vmatpush1.bf16.msra.mxu0 %v1500
      %1702 = vmatprep.subr.bf16.mxu0 0
      %1703 = vmatpush1.bf16.msra.mxu0 0
      %1704 = vmatprep.subr.bf16.mxu0 0
      %1705 = vmatpush1.bf16.msra.mxu0 0
      %1706 = vmatprep.subr.bf16.mxu0 0
      %1707 = vmatpush1.bf16.msra.mxu0 0
      %1708 = vmatprep.subr.bf16.mxu0 0
      %1709 = vmatpush1.bf16.msra.mxu0 0
      %1710 = vmatprep.subr.bf16.mxu0 0
      %1711 = vmatpush1.bf16.msra.mxu0 0
      %1712 = vmatprep.subr.bf16.mxu0 0
      %1713 = vmatpush1.bf16.msra.mxu0 0
      %1714 = vmatprep.subr.bf16.mxu0 0
      %1715 = vmatpush1.bf16.msra.mxu0 0
      %1716 = vmatprep.subr.bf16.mxu0 0
      %1717 = vmatpush1.bf16.msra.mxu0 0
      %1718 = vmatprep.mubr.bf16.mxu0 0
      %1719 = vmatmul.mubr.bf16.gmra.mrb[0].mxu0 %v769
      %v1720 = vpop.f32.mrb[0].mxu0
      %v1721 = vadd.f32 %v1560, %v1720
      %v1722 = vpop.f32.mrb[0].mxu0
      %v1723 = vpop.f32.mrb[0].mxu0
      %v1724 = vadd.f32 %v1563, %v1723
      %v1725 = vpop.f32.mrb[0].mxu0
      %1726 = vmatprep.mubr.bf16.mxu0 0
      %1727 = vmatmul.mubr.bf16.gmra.mrb[0].mxu0 %v772
      %v1728 = vpop.f32.mrb[0].mxu0
      %v1729 = vadd.f32 %v1568, %v1728
      %v1730 = vpop.f32.mrb[0].mxu0
      %v1731 = vpop.f32.mrb[0].mxu0
      %v1732 = vadd.f32 %v1571, %v1731
      %v1733 = vpop.f32.mrb[0].mxu0
      %1734 = vmatprep.mubr.bf16.mxu0 0
      %1735 = vmatmul.mubr.bf16.gmra.mrb[0].mxu0 %v775
      %v1736 = vpop.f32.mrb[0].mxu0
      %v1737 = vadd.f32 %v1576, %v1736
      %v1738 = vpop.f32.mrb[0].mxu0
      %v1739 = vpop.f32.mrb[0].mxu0
      %v1740 = vadd.f32 %v1579, %v1739
      %v1741 = vpop.f32.mrb[0].mxu0
      %1742 = vmatprep.mubr.bf16.mxu0 0
      %1743 = vmatmul.mubr.bf16.gmra.mrb[0].mxu0 %v778
      %v1744 = vpop.f32.mrb[0].mxu0
      %v1745 = vadd.f32 %v1584, %v1744
      %v1746 = vpop.f32.mrb[0].mxu0
      %v1747 = vpop.f32.mrb[0].mxu0
      %v1748 = vadd.f32 %v1587, %v1747
      %v1749 = vpop.f32.mrb[0].mxu0
      %1750 = vmatprep.mubr.bf16.mxu0 0
      %1751 = vmatmul.mubr.bf16.gmra.mrb[0].mxu0 %v781
      %v1752 = vpop.f32.mrb[0].mxu0
      %v1753 = vadd.f32 %v1592, %v1752
      %v1754 = vpop.f32.mrb[0].mxu0
      %v1755 = vpop.f32.mrb[0].mxu0
      %v1756 = vadd.f32 %v1595, %v1755
      %v1757 = vpop.f32.mrb[0].mxu0
      %1758 = vmatprep.mubr.bf16.mxu0 0
      %1759 = vmatmul.mubr.bf16.gmra.mrb[0].mxu0 %v784
      %v1760 = vpop.f32.mrb[0].mxu0
      %v1761 = vadd.f32 %v1600, %v1760
      %v1762 = vpop.f32.mrb[0].mxu0
      %v1763 = vpop.f32.mrb[0].mxu0
      %v1764 = vadd.f32 %v1603, %v1763
      %v1765 = vpop.f32.mrb[0].mxu0
      %1766 = vmatprep.mubr.bf16.mxu0 0
      %1767 = vmatmul.mubr.bf16.gmra.mrb[0].mxu0 %v787
      %v1768 = vpop.f32.mrb[0].mxu0
      %v1769 = vadd.f32 %v1608, %v1768
      %v1770 = vpop.f32.mrb[0].mxu0
      %v1771 = vpop.f32.mrb[0].mxu0
      %v1772 = vadd.f32 %v1611, %v1771
      %v1773 = vpop.f32.mrb[0].mxu0
      %1774 = vmatprep.mubr.bf16.mxu0 0
      %1775 = vmatmul.mubr.bf16.gmra.mrb[0].mxu0 %v790
      %v1776 = vpop.f32.mrb[0].mxu0
      %v1777 = vadd.f32 %v1616, %v1776
      %v1778 = vpop.f32.mrb[0].mxu0
      %v1779 = vpop.f32.mrb[0].mxu0
      %v1780 = vadd.f32 %v1619, %v1779
      %v1781 = vpop.f32.mrb[0].mxu0
      %1782 = vmatprep.mubr.bf16.mxu0 0
      %1783 = vmatmul.mubr.bf16.gmra.mrb[0].mxu0 %v793
      %v1784 = vpop.f32.mrb[0].mxu0
      %v1785 = vadd.f32 %v1624, %v1784
      %v1786 = vpop.f32.mrb[0].mxu0
      %v1787 = vpop.f32.mrb[0].mxu0
      %v1788 = vadd.f32 %v1627, %v1787
      %v1789 = vpop.f32.mrb[0].mxu0
      %1790 = vmatprep.mubr.bf16.mxu0 0
      %1791 = vmatmul.mubr.bf16.gmra.mrb[0].mxu0 %v796
      %v1792 = vpop.f32.mrb[0].mxu0
      %v1793 = vadd.f32 %v1632, %v1792
      %v1794 = vpop.f32.mrb[0].mxu0
      %v1795 = vpop.f32.mrb[0].mxu0
      %v1796 = vadd.f32 %v1635, %v1795
      %v1797 = vpop.f32.mrb[0].mxu0
      %1798 = vmatprep.mubr.bf16.mxu0 0
      %1799 = vmatmul.mubr.bf16.gmra.mrb[0].mxu0 %v799
      %v1800 = vpop.f32.mrb[0].mxu0
      %v1801 = vadd.f32 %v1640, %v1800
      %v1802 = vpop.f32.mrb[0].mxu0
      %v1803 = vpop.f32.mrb[0].mxu0
      %v1804 = vadd.f32 %v1643, %v1803
      %v1805 = vpop.f32.mrb[0].mxu0
      %1806 = vmatprep.mubr.bf16.mxu0 0
      %1807 = vmatmul.mubr.bf16.gmra.mrb[0].mxu0 %v802
      %v1808 = vpop.f32.mrb[0].mxu0
      %v1809 = vadd.f32 %v1648, %v1808
      %v1810 = vpop.f32.mrb[0].mxu0
      %v1811 = vpop.f32.mrb[0].mxu0
      %v1812 = vadd.f32 %v1651, %v1811
      %v1813 = vpop.f32.mrb[0].mxu0
      %1814 = vmatprep.mubr.bf16.mxu0 0
      %1815 = vmatmul.mubr.bf16.gmra.mrb[0].mxu0 %v805
      %v1816 = vpop.f32.mrb[0].mxu0
      %v1817 = vadd.f32 %v1656, %v1816
      %v1818 = vpop.f32.mrb[0].mxu0
      %v1819 = vpop.f32.mrb[0].mxu0
      %v1820 = vadd.f32 %v1659, %v1819
      %v1821 = vpop.f32.mrb[0].mxu0
      %1822 = vmatprep.mubr.bf16.mxu0 0
      %1823 = vmatmul.mubr.bf16.gmra.mrb[0].mxu0 %v808
      %v1824 = vpop.f32.mrb[0].mxu0
      %v1825 = vadd.f32 %v1664, %v1824
      %v1826 = vpop.f32.mrb[0].mxu0
      %v1827 = vpop.f32.mrb[0].mxu0
      %v1828 = vadd.f32 %v1667, %v1827
      %v1829 = vpop.f32.mrb[0].mxu0
      %1830 = vmatprep.mubr.bf16.mxu0 0
      %1831 = vmatmul.mubr.bf16.gmra.mrb[0].mxu0 %v811
      %v1832 = vpop.f32.mrb[0].mxu0
      %v1833 = vadd.f32 %v1672, %v1832
      %v1834 = vpop.f32.mrb[0].mxu0
      %v1835 = vpop.f32.mrb[0].mxu0
      %v1836 = vadd.f32 %v1675, %v1835
      %v1837 = vpop.f32.mrb[0].mxu0
      %1838 = vmatprep.mubr.bf16.mxu0 0
      %1839 = vmatmul.mubr.bf16.gmra.mrb[0].mxu0 %v814
      %v1840 = vpop.f32.mrb[0].mxu0
      %v1841 = vadd.f32 %v1680, %v1840
      %v1842 = vpop.f32.mrb[0].mxu0
      %v1843 = vpop.f32.mrb[0].mxu0
      %v1844 = vadd.f32 %v1683, %v1843
      %v1845 = vpop.f32.mrb[0].mxu0
      %1846 = vdwg.mxu0
      %v1847 = vld [vmem:[#allocation2 + $0x30] sm:$0xff]
      %v1848 = vld [vmem:[#allocation2 + $0x38] sm:$0xff]
      %v1849 = vld [vmem:[#allocation2 + $0x40] sm:$0xff]
      %v1850 = vld [vmem:[#allocation2 + $0x48] sm:$0xff]
      %v1851 = vld [vmem:[#allocation2 + $0x50] sm:$0xff]
      %v1852 = vld [vmem:[#allocation2 + $0x58] sm:$0xff]
      %v1853 = vld [vmem:[#allocation2 + $0x60] sm:$0xff]
      %v1854 = vld [vmem:[#allocation2 + $0x68] sm:$0xff]
      %v1855 = vld [vmem:[#allocation2 + $0x70] sm:$0xff]
      %v1856 = vld [vmem:[#allocation2 + $0x78] sm:$0xff]
      %v1857 = vld [vmem:[#allocation2 + $0x80] sm:$0xff]
      %v1858 = vld [vmem:[#allocation2 + $0x88] sm:$0xff]
      %v1859 = vld [vmem:[#allocation2 + $0x90] sm:$0xff]
      %v1860 = vld [vmem:[#allocation2 + $0x98] sm:$0xff]
      %v1861 = vld [vmem:[#allocation2 + $0xa0] sm:$0xff]
      %v1862 = vld [vmem:[#allocation2 + $0xa8] sm:$0xff]
      %v1863 = vld [vmem:[#allocation2 + $0xb0] sm:$0xff]
      %v1864 = vld [vmem:[#allocation2 + $0xb8] sm:$0xff]
      %v1865 = vld [vmem:[#allocation2 + $0xc0] sm:$0xff]
      %v1866 = vld [vmem:[#allocation2 + $0xc8] sm:$0xff]
      %v1867 = vld [vmem:[#allocation2 + $0xd0] sm:$0xff]
      %v1868 = vld [vmem:[#allocation2 + $0xd8] sm:$0xff]
      %v1869 = vld [vmem:[#allocation2 + $0xe0] sm:$0xff]
      %v1870 = vld [vmem:[#allocation2 + $0xe8] sm:$0xff]
      %v1871 = vld [vmem:[#allocation2 + $0xf0] sm:$0xff]
      %v1872 = vld [vmem:[#allocation2 + $0xf8] sm:$0xff]
      %v1873 = vld [vmem:[#allocation2 + $0x100] sm:$0xff]
      %v1874 = vld [vmem:[#allocation2 + $0x108] sm:$0xff]
      %v1875 = vld [vmem:[#allocation2 + $0x110] sm:$0xff]
      %v1876 = vld [vmem:[#allocation2 + $0x118] sm:$0xff]
      %v1877 = vld [vmem:[#allocation2 + $0x120] sm:$0xff]
      %v1878 = vld [vmem:[#allocation2 + $0x128] sm:$0xff]
      %v1879 = vld [vmem:[#allocation2 + $0x130] sm:$0xff]
      %v1880 = vld [vmem:[#allocation2 + $0x138] sm:$0xff]
      %v1881 = vld [vmem:[#allocation2 + $0x140] sm:$0xff]
      %v1882 = vld [vmem:[#allocation2 + $0x148] sm:$0xff]
      %v1883 = vld [vmem:[#allocation2 + $0x150] sm:$0xff]
      %v1884 = vld [vmem:[#allocation2 + $0x158] sm:$0xff]
      %v1885 = vld [vmem:[#allocation2 + $0x160] sm:$0xff]
      %v1886 = vld [vmem:[#allocation2 + $0x168] sm:$0xff]
      %v1887 = vld [vmem:[#allocation2 + $0x170] sm:$0xff]
      %v1888 = vld [vmem:[#allocation2 + $0x178] sm:$0xff]
      %v1889 = vld [vmem:[#allocation2 + $0x180] sm:$0xff]
      %v1890 = vld [vmem:[#allocation2 + $0x188] sm:$0xff]
      %v1891 = vld [vmem:[#allocation2 + $0x190] sm:$0xff]
      %v1892 = vld [vmem:[#allocation2 + $0x198] sm:$0xff]
      %v1893 = vld [vmem:[#allocation2 + $0x1a0] sm:$0xff]
      %v1894 = vld [vmem:[#allocation2 + $0x1a8] sm:$0xff]
      %s1895 = scalar_lea.vmem %s3, 384
      %v1896 = vld [vmem:[%s1895] sm:$0xf]
      %v1897 = vld [vmem:[%s1895 + $0x4] sm:$0xf]
      %v1898 = vld [vmem:[%s1895 + $0x8] sm:$0xf]
      %v1899 = vld [vmem:[%s1895 + $0xc] sm:$0xf]
      %v1900 = vld [vmem:[%s1895 + $0x10] sm:$0xf]
      %v1901 = vld [vmem:[%s1895 + $0x14] sm:$0xf]
      %v1902 = vld [vmem:[%s1895 + $0x18] sm:$0xf]
      %v1903 = vld [vmem:[%s1895 + $0x1c] sm:$0xf]
      %v1904 = vld [vmem:[%s1895 + $0x20] sm:$0xf]
      %v1905 = vld [vmem:[%s1895 + $0x24] sm:$0xf]
      %v1906 = vld [vmem:[%s1895 + $0x28] sm:$0xf]
      %v1907 = vld [vmem:[%s1895 + $0x2c] sm:$0xf]
      %v1908 = vld [vmem:[%s1895 + $0x30] sm:$0xf]
      %v1909 = vld [vmem:[%s1895 + $0x34] sm:$0xf]
      %v1910 = vld [vmem:[%s1895 + $0x38] sm:$0xf]
      %v1911 = vld [vmem:[%s1895 + $0x3c] sm:$0xf]
      %v1912 = vld [vmem:[%s1895 + $0x40] sm:$0xf]
      %v1913 = vld [vmem:[%s1895 + $0x44] sm:$0xf]
      %v1914 = vld [vmem:[%s1895 + $0x48] sm:$0xf]
      %v1915 = vld [vmem:[%s1895 + $0x4c] sm:$0xf]
      %v1916 = vld [vmem:[%s1895 + $0x50] sm:$0xf]
      %v1917 = vld [vmem:[%s1895 + $0x54] sm:$0xf]
      %v1918 = vld [vmem:[%s1895 + $0x58] sm:$0xf]
      %v1919 = vld [vmem:[%s1895 + $0x5c] sm:$0xf]
      %v1920 = vld [vmem:[%s1895 + $0x60] sm:$0xf]
      %v1921 = vld [vmem:[%s1895 + $0x64] sm:$0xf]
      %v1922 = vld [vmem:[%s1895 + $0x68] sm:$0xf]
      %v1923 = vld [vmem:[%s1895 + $0x6c] sm:$0xf]
      %v1924 = vld [vmem:[%s1895 + $0x70] sm:$0xf]
      %v1925 = vld [vmem:[%s1895 + $0x74] sm:$0xf]
      %v1926 = vld [vmem:[%s1895 + $0x78] sm:$0xf]
      %v1927 = vld [vmem:[%s1895 + $0x7c] sm:$0xf]
      %v1928 = vld [vmem:[%s1895 + $0x80] sm:$0xf]
      %v1929 = vld [vmem:[%s1895 + $0x84] sm:$0xf]
      %v1930 = vld [vmem:[%s1895 + $0x88] sm:$0xf]
      %v1931 = vld [vmem:[%s1895 + $0x8c] sm:$0xf]
      %v1932 = vld [vmem:[%s1895 + $0x90] sm:$0xf]
      %v1933 = vld [vmem:[%s1895 + $0x94] sm:$0xf]
      %v1934 = vld [vmem:[%s1895 + $0x98] sm:$0xf]
      %v1935 = vld [vmem:[%s1895 + $0x9c] sm:$0xf]
      %v1936 = vld [vmem:[%s1895 + $0xa0] sm:$0xf]
      %v1937 = vld [vmem:[%s1895 + $0xa4] sm:$0xf]
      %v1938 = vld [vmem:[%s1895 + $0xa8] sm:$0xf]
      %v1939 = vld [vmem:[%s1895 + $0xac] sm:$0xf]
      %v1940 = vld [vmem:[%s1895 + $0xb0] sm:$0xf]
      %v1941 = vld [vmem:[%s1895 + $0xb4] sm:$0xf]
      %v1942 = vld [vmem:[%s1895 + $0xb8] sm:$0xf]
      %v1943 = vld [vmem:[%s1895 + $0xbc] sm:$0xf]
      %v1992 = vunpack.c.l.b16 %v1896
      %v1993 = vunpack.c.l.b16 %v1897
      %v1994 = vunpack.c.l.b16 %v1898
      %v1995 = vunpack.c.l.b16 %v1899
      %v1996 = vunpack.c.l.b16 %v1900
      %v1997 = vunpack.c.l.b16 %v1901
      %v1998 = vunpack.c.l.b16 %v1902
      %v1999 = vunpack.c.l.b16 %v1903
      %v2000 = vunpack.c.l.b16 %v1904
      %v2001 = vunpack.c.l.b16 %v1905
      %v2002 = vunpack.c.l.b16 %v1906
      %v2003 = vunpack.c.l.b16 %v1907
      %v2004 = vunpack.c.l.b16 %v1908
      %v2005 = vunpack.c.l.b16 %v1909
      %v2006 = vunpack.c.l.b16 %v1910
      %v2007 = vunpack.c.l.b16 %v1911
      %v2008 = vunpack.c.l.b16 %v1912
      %v2009 = vunpack.c.l.b16 %v1913
      %v2010 = vunpack.c.l.b16 %v1914
      %v2011 = vunpack.c.l.b16 %v1915
      %v2012 = vunpack.c.l.b16 %v1916
      %v2013 = vunpack.c.l.b16 %v1917
      %v2014 = vunpack.c.l.b16 %v1918
      %v2015 = vunpack.c.l.b16 %v1919
      %v2016 = vunpack.c.l.b16 %v1920
      %v2017 = vunpack.c.l.b16 %v1921
      %v2018 = vunpack.c.l.b16 %v1922
      %v2019 = vunpack.c.l.b16 %v1923
      %v2020 = vunpack.c.l.b16 %v1924
      %v2021 = vunpack.c.l.b16 %v1925
      %v2022 = vunpack.c.l.b16 %v1926
      %v2023 = vunpack.c.l.b16 %v1927
      %v2024 = vunpack.c.l.b16 %v1928
      %v2025 = vunpack.c.l.b16 %v1929
      %v2026 = vunpack.c.l.b16 %v1930
      %v2027 = vunpack.c.l.b16 %v1931
      %v2028 = vunpack.c.l.b16 %v1932
      %v2029 = vunpack.c.l.b16 %v1933
      %v2030 = vunpack.c.l.b16 %v1934
      %v2031 = vunpack.c.l.b16 %v1935
      %v2032 = vunpack.c.l.b16 %v1936
      %v2033 = vunpack.c.l.b16 %v1937
      %v2034 = vunpack.c.l.b16 %v1938
      %v2035 = vunpack.c.l.b16 %v1939
      %v2036 = vunpack.c.l.b16 %v1940
      %v2037 = vunpack.c.l.b16 %v1941
      %v2038 = vunpack.c.l.b16 %v1942
      %v2039 = vunpack.c.l.b16 %v1943
      %v2040 = vpack.c.b16 %v1993, %v1992
      %v2041 = vpack.c.b16 %v1995, %v1994
      %v2042 = vpack.c.b16 %v1997, %v1996
      %v2043 = vpack.c.b16 %v1999, %v1998
      %v2044 = vpack.c.b16 %v2001, %v2000
      %v2045 = vpack.c.b16 %v2003, %v2002
      %v2046 = vpack.c.b16 %v2005, %v2004
      %v2047 = vpack.c.b16 %v2007, %v2006
      %v2048 = vpack.c.b16 %v2009, %v2008
      %v2049 = vpack.c.b16 %v2011, %v2010
      %v2050 = vpack.c.b16 %v2013, %v2012
      %v2051 = vpack.c.b16 %v2015, %v2014
      %v2052 = vpack.c.b16 %v2017, %v2016
      %v2053 = vpack.c.b16 %v2019, %v2018
      %v2054 = vpack.c.b16 %v2021, %v2020
      %v2055 = vpack.c.b16 %v2023, %v2022
      %v2056 = vpack.c.b16 %v2025, %v2024
      %v2057 = vpack.c.b16 %v2027, %v2026
      %v2058 = vpack.c.b16 %v2029, %v2028
      %v2059 = vpack.c.b16 %v2031, %v2030
      %v2060 = vpack.c.b16 %v2033, %v2032
      %v2061 = vpack.c.b16 %v2035, %v2034
      %v2062 = vpack.c.b16 %v2037, %v2036
      %v2063 = vpack.c.b16 %v2039, %v2038
      %2088 = vmatprep.subr.bf16.mxu0 0
      %2089 = vmatpush1.bf16.msra.mxu0 %v2040
      %2090 = vmatprep.subr.bf16.mxu0 0
      %2091 = vmatpush1.bf16.msra.mxu0 %v2041
      %2092 = vmatprep.subr.bf16.mxu0 0
      %2093 = vmatpush1.bf16.msra.mxu0 %v2042
      %2094 = vmatprep.subr.bf16.mxu0 0
      %2095 = vmatpush1.bf16.msra.mxu0 %v2043
      %2096 = vmatprep.subr.bf16.mxu0 0
      %2097 = vmatpush1.bf16.msra.mxu0 %v2044
      %2098 = vmatprep.subr.bf16.mxu0 0
      %2099 = vmatpush1.bf16.msra.mxu0 %v2045
      %2100 = vmatprep.subr.bf16.mxu0 0
      %2101 = vmatpush1.bf16.msra.mxu0 %v2046
      %2102 = vmatprep.subr.bf16.mxu0 0
      %2103 = vmatpush1.bf16.msra.mxu0 %v2047
      %2104 = vmatprep.subr.bf16.mxu0 0
      %2105 = vmatpush1.bf16.msra.mxu0 %v2048
      %2106 = vmatprep.subr.bf16.mxu0 0
      %2107 = vmatpush1.bf16.msra.mxu0 %v2049
      %2108 = vmatprep.subr.bf16.mxu0 0
      %2109 = vmatpush1.bf16.msra.mxu0 %v2050
      %2110 = vmatprep.subr.bf16.mxu0 0
      %2111 = vmatpush1.bf16.msra.mxu0 %v2051
      %2112 = vmatprep.subr.bf16.mxu0 0
      %2113 = vmatpush1.bf16.msra.mxu0 %v2052
      %2114 = vmatprep.subr.bf16.mxu0 0
      %2115 = vmatpush1.bf16.msra.mxu0 %v2053
      %2116 = vmatprep.subr.bf16.mxu0 0
      %2117 = vmatpush1.bf16.msra.mxu0 %v2054
      %2118 = vmatprep.subr.bf16.mxu0 0
      %2119 = vmatpush1.bf16.msra.mxu0 %v2055
      %2120 = vmatprep.mubr.bf16.mxu0 %v1848
      %2121 = vmatmul.mubr.bf16.gmra.mrb[0].mxu0 %v1847
      %v2122 = vpop.f32.mrb[0].mxu0
      %v2123 = vadd.f32 0.0, %v2122
      %v2124 = vpop.f32.mrb[0].mxu0
      %v2125 = vpop.f32.mrb[0].mxu0
      %v2126 = vadd.f32 0.0, %v2125
      %v2127 = vpop.f32.mrb[0].mxu0
      %2128 = vmatprep.mubr.bf16.mxu0 %v1851
      %2129 = vmatmul.mubr.bf16.gmra.mrb[0].mxu0 %v1850
      %v2130 = vpop.f32.mrb[0].mxu0
      %v2131 = vadd.f32 0.0, %v2130
      %v2132 = vpop.f32.mrb[0].mxu0
      %v2133 = vpop.f32.mrb[0].mxu0
      %v2134 = vadd.f32 0.0, %v2133
      %v2135 = vpop.f32.mrb[0].mxu0
      %2136 = vmatprep.mubr.bf16.mxu0 %v1854
      %2137 = vmatmul.mubr.bf16.gmra.mrb[0].mxu0 %v1853
      %v2138 = vpop.f32.mrb[0].mxu0
      %v2139 = vadd.f32 0.0, %v2138
      %v2140 = vpop.f32.mrb[0].mxu0
      %v2141 = vpop.f32.mrb[0].mxu0
      %v2142 = vadd.f32 0.0, %v2141
      %v2143 = vpop.f32.mrb[0].mxu0
      %2144 = vmatprep.mubr.bf16.mxu0 %v1857
      %2145 = vmatmul.mubr.bf16.gmra.mrb[0].mxu0 %v1856
      %v2146 = vpop.f32.mrb[0].mxu0
      %v2147 = vadd.f32 0.0, %v2146
      %v2148 = vpop.f32.mrb[0].mxu0
      %v2149 = vpop.f32.mrb[0].mxu0
      %v2150 = vadd.f32 0.0, %v2149
      %v2151 = vpop.f32.mrb[0].mxu0
      %2152 = vmatprep.mubr.bf16.mxu0 %v1860
      %2153 = vmatmul.mubr.bf16.gmra.mrb[0].mxu0 %v1859
      %v2154 = vpop.f32.mrb[0].mxu0
      %v2155 = vadd.f32 0.0, %v2154
      %v2156 = vpop.f32.mrb[0].mxu0
      %v2157 = vpop.f32.mrb[0].mxu0
      %v2158 = vadd.f32 0.0, %v2157
      %v2159 = vpop.f32.mrb[0].mxu0
      %2160 = vmatprep.mubr.bf16.mxu0 %v1863
      %2161 = vmatmul.mubr.bf16.gmra.mrb[0].mxu0 %v1862
      %v2162 = vpop.f32.mrb[0].mxu0
      %v2163 = vadd.f32 0.0, %v2162
      %v2164 = vpop.f32.mrb[0].mxu0
      %v2165 = vpop.f32.mrb[0].mxu0
      %v2166 = vadd.f32 0.0, %v2165
      %v2167 = vpop.f32.mrb[0].mxu0
      %2168 = vmatprep.mubr.bf16.mxu0 %v1866
      %2169 = vmatmul.mubr.bf16.gmra.mrb[0].mxu0 %v1865
      %v2170 = vpop.f32.mrb[0].mxu0
      %v2171 = vadd.f32 0.0, %v2170
      %v2172 = vpop.f32.mrb[0].mxu0
      %v2173 = vpop.f32.mrb[0].mxu0
      %v2174 = vadd.f32 0.0, %v2173
      %v2175 = vpop.f32.mrb[0].mxu0
      %2176 = vmatprep.mubr.bf16.mxu0 %v1869
      %2177 = vmatmul.mubr.bf16.gmra.mrb[0].mxu0 %v1868
      %v2178 = vpop.f32.mrb[0].mxu0
      %v2179 = vadd.f32 0.0, %v2178
      %v2180 = vpop.f32.mrb[0].mxu0
      %v2181 = vpop.f32.mrb[0].mxu0
      %v2182 = vadd.f32 0.0, %v2181
      %v2183 = vpop.f32.mrb[0].mxu0
      %2184 = vmatprep.mubr.bf16.mxu0 %v1872
      %2185 = vmatmul.mubr.bf16.gmra.mrb[0].mxu0 %v1871
      %v2186 = vpop.f32.mrb[0].mxu0
      %v2187 = vadd.f32 0.0, %v2186
      %v2188 = vpop.f32.mrb[0].mxu0
      %v2189 = vpop.f32.mrb[0].mxu0
      %v2190 = vadd.f32 0.0, %v2189
      %v2191 = vpop.f32.mrb[0].mxu0
      %2192 = vmatprep.mubr.bf16.mxu0 %v1875
      %2193 = vmatmul.mubr.bf16.gmra.mrb[0].mxu0 %v1874
      %v2194 = vpop.f32.mrb[0].mxu0
      %v2195 = vadd.f32 0.0, %v2194
      %v2196 = vpop.f32.mrb[0].mxu0
      %v2197 = vpop.f32.mrb[0].mxu0
      %v2198 = vadd.f32 0.0, %v2197
      %v2199 = vpop.f32.mrb[0].mxu0
      %2200 = vmatprep.mubr.bf16.mxu0 %v1878
      %2201 = vmatmul.mubr.bf16.gmra.mrb[0].mxu0 %v1877
      %v2202 = vpop.f32.mrb[0].mxu0
      %v2203 = vadd.f32 0.0, %v2202
      %v2204 = vpop.f32.mrb[0].mxu0
      %v2205 = vpop.f32.mrb[0].mxu0
      %v2206 = vadd.f32 0.0, %v2205
      %v2207 = vpop.f32.mrb[0].mxu0
      %2208 = vmatprep.mubr.bf16.mxu0 %v1881
      %2209 = vmatmul.mubr.bf16.gmra.mrb[0].mxu0 %v1880
      %v2210 = vpop.f32.mrb[0].mxu0
      %v2211 = vadd.f32 0.0, %v2210
      %v2212 = vpop.f32.mrb[0].mxu0
      %v2213 = vpop.f32.mrb[0].mxu0
      %v2214 = vadd.f32 0.0, %v2213
      %v2215 = vpop.f32.mrb[0].mxu0
      %2216 = vmatprep.mubr.bf16.mxu0 %v1884
      %2217 = vmatmul.mubr.bf16.gmra.mrb[0].mxu0 %v1883
      %v2218 = vpop.f32.mrb[0].mxu0
      %v2219 = vadd.f32 0.0, %v2218
      %v2220 = vpop.f32.mrb[0].mxu0
      %v2221 = vpop.f32.mrb[0].mxu0
      %v2222 = vadd.f32 0.0, %v2221
      %v2223 = vpop.f32.mrb[0].mxu0
      %2224 = vmatprep.mubr.bf16.mxu0 %v1887
      %2225 = vmatmul.mubr.bf16.gmra.mrb[0].mxu0 %v1886
      %v2226 = vpop.f32.mrb[0].mxu0
      %v2227 = vadd.f32 0.0, %v2226
      %v2228 = vpop.f32.mrb[0].mxu0
      %v2229 = vpop.f32.mrb[0].mxu0
      %v2230 = vadd.f32 0.0, %v2229
      %v2231 = vpop.f32.mrb[0].mxu0
      %2232 = vmatprep.mubr.bf16.mxu0 %v1890
      %2233 = vmatmul.mubr.bf16.gmra.mrb[0].mxu0 %v1889
      %v2234 = vpop.f32.mrb[0].mxu0
      %v2235 = vadd.f32 0.0, %v2234
      %v2236 = vpop.f32.mrb[0].mxu0
      %v2237 = vpop.f32.mrb[0].mxu0
      %v2238 = vadd.f32 0.0, %v2237
      %v2239 = vpop.f32.mrb[0].mxu0
      %2240 = vmatprep.mubr.bf16.mxu0 %v1893
      %2241 = vmatmul.mubr.bf16.gmra.mrb[0].mxu0 %v1892
      %v2242 = vpop.f32.mrb[0].mxu0
      %v2243 = vadd.f32 0.0, %v2242
      %v2244 = vpop.f32.mrb[0].mxu0
      %v2245 = vpop.f32.mrb[0].mxu0
      %v2246 = vadd.f32 0.0, %v2245
      %v2247 = vpop.f32.mrb[0].mxu0
      %2248 = vdwg.mxu0
      %2249 = vmatprep.subr.bf16.mxu0 0
      %2250 = vmatpush1.bf16.msra.mxu0 %v2056
      %2251 = vmatprep.subr.bf16.mxu0 0
      %2252 = vmatpush1.bf16.msra.mxu0 %v2057
      %2253 = vmatprep.subr.bf16.mxu0 0
      %2254 = vmatpush1.bf16.msra.mxu0 %v2058
      %2255 = vmatprep.subr.bf16.mxu0 0
      %2256 = vmatpush1.bf16.msra.mxu0 %v2059
      %2257 = vmatprep.subr.bf16.mxu0 0
      %2258 = vmatpush1.bf16.msra.mxu0 %v2060
      %2259 = vmatprep.subr.bf16.mxu0 0
      %2260 = vmatpush1.bf16.msra.mxu0 %v2061
      %2261 = vmatprep.subr.bf16.mxu0 0
      %2262 = vmatpush1.bf16.msra.mxu0 %v2062
      %2263 = vmatprep.subr.bf16.mxu0 0
      %2264 = vmatpush1.bf16.msra.mxu0 %v2063
      %2265 = vmatprep.subr.bf16.mxu0 0
      %2266 = vmatpush1.bf16.msra.mxu0 0
      %2267 = vmatprep.subr.bf16.mxu0 0
      %2268 = vmatpush1.bf16.msra.mxu0 0
      %2269 = vmatprep.subr.bf16.mxu0 0
      %2270 = vmatpush1.bf16.msra.mxu0 0
      %2271 = vmatprep.subr.bf16.mxu0 0
      %2272 = vmatpush1.bf16.msra.mxu0 0
      %2273 = vmatprep.subr.bf16.mxu0 0
      %2274 = vmatpush1.bf16.msra.mxu0 0
      %2275 = vmatprep.subr.bf16.mxu0 0
      %2276 = vmatpush1.bf16.msra.mxu0 0
      %2277 = vmatprep.subr.bf16.mxu0 0
      %2278 = vmatpush1.bf16.msra.mxu0 0
      %2279 = vmatprep.subr.bf16.mxu0 0
      %2280 = vmatpush1.bf16.msra.mxu0 0
      %2281 = vmatprep.mubr.bf16.mxu0 0
      %2282 = vmatmul.mubr.bf16.gmra.mrb[0].mxu0 %v1849
      %v2283 = vpop.f32.mrb[0].mxu0
      %v2284 = vadd.f32 %v2123, %v2283
      %v2285 = vpop.f32.mrb[0].mxu0
      %v2286 = vpop.f32.mrb[0].mxu0
      %v2287 = vadd.f32 %v2126, %v2286
      %v2288 = vpop.f32.mrb[0].mxu0
      %2289 = vmatprep.mubr.bf16.mxu0 0
      %2290 = vmatmul.mubr.bf16.gmra.mrb[0].mxu0 %v1852
      %v2291 = vpop.f32.mrb[0].mxu0
      %v2292 = vadd.f32 %v2131, %v2291
      %v2293 = vpop.f32.mrb[0].mxu0
      %v2294 = vpop.f32.mrb[0].mxu0
      %v2295 = vadd.f32 %v2134, %v2294
      %v2296 = vpop.f32.mrb[0].mxu0
      %2297 = vmatprep.mubr.bf16.mxu0 0
      %2298 = vmatmul.mubr.bf16.gmra.mrb[0].mxu0 %v1855
      %v2299 = vpop.f32.mrb[0].mxu0
      %v2300 = vadd.f32 %v2139, %v2299
      %v2301 = vpop.f32.mrb[0].mxu0
      %v2302 = vpop.f32.mrb[0].mxu0
      %v2303 = vadd.f32 %v2142, %v2302
      %v2304 = vpop.f32.mrb[0].mxu0
      %2305 = vmatprep.mubr.bf16.mxu0 0
      %2306 = vmatmul.mubr.bf16.gmra.mrb[0].mxu0 %v1858
      %v2307 = vpop.f32.mrb[0].mxu0
      %v2308 = vadd.f32 %v2147, %v2307
      %v2309 = vpop.f32.mrb[0].mxu0
      %v2310 = vpop.f32.mrb[0].mxu0
      %v2311 = vadd.f32 %v2150, %v2310
      %v2312 = vpop.f32.mrb[0].mxu0
      %2313 = vmatprep.mubr.bf16.mxu0 0
      %2314 = vmatmul.mubr.bf16.gmra.mrb[0].mxu0 %v1861
      %v2315 = vpop.f32.mrb[0].mxu0
      %v2316 = vadd.f32 %v2155, %v2315
      %v2317 = vpop.f32.mrb[0].mxu0
      %v2318 = vpop.f32.mrb[0].mxu0
      %v2319 = vadd.f32 %v2158, %v2318
      %v2320 = vpop.f32.mrb[0].mxu0
      %2321 = vmatprep.mubr.bf16.mxu0 0
      %2322 = vmatmul.mubr.bf16.gmra.mrb[0].mxu0 %v1864
      %v2323 = vpop.f32.mrb[0].mxu0
      %v2324 = vadd.f32 %v2163, %v2323
      %v2325 = vpop.f32.mrb[0].mxu0
      %v2326 = vpop.f32.mrb[0].mxu0
      %v2327 = vadd.f32 %v2166, %v2326
      %v2328 = vpop.f32.mrb[0].mxu0
      %2329 = vmatprep.mubr.bf16.mxu0 0
      %2330 = vmatmul.mubr.bf16.gmra.mrb[0].mxu0 %v1867
      %v2331 = vpop.f32.mrb[0].mxu0
      %v2332 = vadd.f32 %v2171, %v2331
      %v2333 = vpop.f32.mrb[0].mxu0
      %v2334 = vpop.f32.mrb[0].mxu0
      %v2335 = vadd.f32 %v2174, %v2334
      %v2336 = vpop.f32.mrb[0].mxu0
      %2337 = vmatprep.mubr.bf16.mxu0 0
      %2338 = vmatmul.mubr.bf16.gmra.mrb[0].mxu0 %v1870
      %v2339 = vpop.f32.mrb[0].mxu0
      %v2340 = vadd.f32 %v2179, %v2339
      %v2341 = vpop.f32.mrb[0].mxu0
      %v2342 = vpop.f32.mrb[0].mxu0
      %v2343 = vadd.f32 %v2182, %v2342
      %v2344 = vpop.f32.mrb[0].mxu0
      %2345 = vmatprep.mubr.bf16.mxu0 0
      %2346 = vmatmul.mubr.bf16.gmra.mrb[0].mxu0 %v1873
      %v2347 = vpop.f32.mrb[0].mxu0
      %v2348 = vadd.f32 %v2187, %v2347
      %v2349 = vpop.f32.mrb[0].mxu0
      %v2350 = vpop.f32.mrb[0].mxu0
      %v2351 = vadd.f32 %v2190, %v2350
      %v2352 = vpop.f32.mrb[0].mxu0
      %2353 = vmatprep.mubr.bf16.mxu0 0
      %2354 = vmatmul.mubr.bf16.gmra.mrb[0].mxu0 %v1876
      %v2355 = vpop.f32.mrb[0].mxu0
      %v2356 = vadd.f32 %v2195, %v2355
      %v2357 = vpop.f32.mrb[0].mxu0
      %v2358 = vpop.f32.mrb[0].mxu0
      %v2359 = vadd.f32 %v2198, %v2358
      %v2360 = vpop.f32.mrb[0].mxu0
      %2361 = vmatprep.mubr.bf16.mxu0 0
      %2362 = vmatmul.mubr.bf16.gmra.mrb[0].mxu0 %v1879
      %v2363 = vpop.f32.mrb[0].mxu0
      %v2364 = vadd.f32 %v2203, %v2363
      %v2365 = vpop.f32.mrb[0].mxu0
      %v2366 = vpop.f32.mrb[0].mxu0
      %v2367 = vadd.f32 %v2206, %v2366
      %v2368 = vpop.f32.mrb[0].mxu0
      %2369 = vmatprep.mubr.bf16.mxu0 0
      %2370 = vmatmul.mubr.bf16.gmra.mrb[0].mxu0 %v1882
      %v2371 = vpop.f32.mrb[0].mxu0
      %v2372 = vadd.f32 %v2211, %v2371
      %v2373 = vpop.f32.mrb[0].mxu0
      %v2374 = vpop.f32.mrb[0].mxu0
      %v2375 = vadd.f32 %v2214, %v2374
      %v2376 = vpop.f32.mrb[0].mxu0
      %2377 = vmatprep.mubr.bf16.mxu0 0
      %2378 = vmatmul.mubr.bf16.gmra.mrb[0].mxu0 %v1885
      %v2379 = vpop.f32.mrb[0].mxu0
      %v2380 = vadd.f32 %v2219, %v2379
      %v2381 = vpop.f32.mrb[0].mxu0
      %v2382 = vpop.f32.mrb[0].mxu0
      %v2383 = vadd.f32 %v2222, %v2382
      %v2384 = vpop.f32.mrb[0].mxu0
      %2385 = vmatprep.mubr.bf16.mxu0 0
      %2386 = vmatmul.mubr.bf16.gmra.mrb[0].mxu0 %v1888
      %v2387 = vpop.f32.mrb[0].mxu0
      %v2388 = vadd.f32 %v2227, %v2387
      %v2389 = vpop.f32.mrb[0].mxu0
      %v2390 = vpop.f32.mrb[0].mxu0
      %v2391 = vadd.f32 %v2230, %v2390
      %v2392 = vpop.f32.mrb[0].mxu0
      %2393 = vmatprep.mubr.bf16.mxu0 0
      %2394 = vmatmul.mubr.bf16.gmra.mrb[0].mxu0 %v1891
      %v2395 = vpop.f32.mrb[0].mxu0
      %v2396 = vadd.f32 %v2235, %v2395
      %v2397 = vpop.f32.mrb[0].mxu0
      %v2398 = vpop.f32.mrb[0].mxu0
      %v2399 = vadd.f32 %v2238, %v2398
      %v2400 = vpop.f32.mrb[0].mxu0
      %2401 = vmatprep.mubr.bf16.mxu0 0
      %2402 = vmatmul.mubr.bf16.gmra.mrb[0].mxu0 %v1894
      %v2403 = vpop.f32.mrb[0].mxu0
      %v2404 = vadd.f32 %v2243, %v2403
      %v2405 = vpop.f32.mrb[0].mxu0
      %v2406 = vpop.f32.mrb[0].mxu0
      %v2407 = vadd.f32 %v2246, %v2406
      %v2408 = vpop.f32.mrb[0].mxu0
      %2409 = vdwg.mxu0
      %v2410 = vadd.f32 %v1721, %v2284
      %v2411 = vadd.f32 %v1724, %v2287
      %v2412 = vadd.f32 %v1729, %v2292
      %v2413 = vadd.f32 %v1732, %v2295
      %v2414 = vadd.f32 %v1737, %v2300
      %v2415 = vadd.f32 %v1740, %v2303
      %v2416 = vadd.f32 %v1745, %v2308
      %v2417 = vadd.f32 %v1748, %v2311
      %v2418 = vadd.f32 %v1753, %v2316
      %v2419 = vadd.f32 %v1756, %v2319
      %v2420 = vadd.f32 %v1761, %v2324
      %v2421 = vadd.f32 %v1764, %v2327
      %v2422 = vadd.f32 %v1769, %v2332
      %v2423 = vadd.f32 %v1772, %v2335
      %v2424 = vadd.f32 %v1777, %v2340
      %v2425 = vadd.f32 %v1780, %v2343
      %v2426 = vadd.f32 %v1785, %v2348
      %v2427 = vadd.f32 %v1788, %v2351
      %v2428 = vadd.f32 %v1793, %v2356
      %v2429 = vadd.f32 %v1796, %v2359
      %v2430 = vadd.f32 %v1801, %v2364
      %v2431 = vadd.f32 %v1804, %v2367
      %v2432 = vadd.f32 %v1809, %v2372
      %v2433 = vadd.f32 %v1812, %v2375
      %v2434 = vadd.f32 %v1817, %v2380
      %v2435 = vadd.f32 %v1820, %v2383
      %v2436 = vadd.f32 %v1825, %v2388
      %v2437 = vadd.f32 %v1828, %v2391
      %v2438 = vadd.f32 %v1833, %v2396
      %v2439 = vadd.f32 %v1836, %v2399
      %v2440 = vadd.f32 %v1841, %v2404
      %v2441 = vadd.f32 %v1844, %v2407
      %v2442 = vld [vmem:[%s4] sm:$0x1]
      %v2444 = vlaneseq
      %v2445 = vshrl.u32 %v2444, 7
      %v2446 = vsub.s32 0, %v2445
      %v2447 = vrot.slane %v2442, %v2446
      %v2449 = vadd.f32 %v2410, %v2447
      %v2450 = vadd.f32 %v2411, %v2447
      %v2451 = vadd.f32 %v2412, %v2447
      %v2452 = vadd.f32 %v2413, %v2447
      %v2453 = vadd.f32 %v2414, %v2447
      %v2454 = vadd.f32 %v2415, %v2447
      %v2455 = vadd.f32 %v2416, %v2447
      %v2456 = vadd.f32 %v2417, %v2447
      %v2457 = vadd.f32 %v2418, %v2447
      %v2458 = vadd.f32 %v2419, %v2447
      %v2459 = vadd.f32 %v2420, %v2447
      %v2460 = vadd.f32 %v2421, %v2447
      %v2461 = vadd.f32 %v2422, %v2447
      %v2462 = vadd.f32 %v2423, %v2447
      %v2463 = vadd.f32 %v2424, %v2447
      %v2464 = vadd.f32 %v2425, %v2447
      %v2465 = vadd.f32 %v2426, %v2447
      %v2466 = vadd.f32 %v2427, %v2447
      %v2467 = vadd.f32 %v2428, %v2447
      %v2468 = vadd.f32 %v2429, %v2447
      %v2469 = vadd.f32 %v2430, %v2447
      %v2470 = vadd.f32 %v2431, %v2447
      %v2471 = vadd.f32 %v2432, %v2447
      %v2472 = vadd.f32 %v2433, %v2447
      %v2473 = vadd.f32 %v2434, %v2447
      %v2474 = vadd.f32 %v2435, %v2447
      %v2475 = vadd.f32 %v2436, %v2447
      %v2476 = vadd.f32 %v2437, %v2447
      %v2477 = vadd.f32 %v2438, %v2447
      %v2478 = vadd.f32 %v2439, %v2447
      %v2479 = vadd.f32 %v2440, %v2447
      %v2480 = vadd.f32 %v2441, %v2447
      %v2481 = vadd.f32 %v297, %v2449
      %v2482 = vadd.f32 %v298, %v2450
      %v2483 = vadd.f32 %v299, %v2451
      %v2484 = vadd.f32 %v300, %v2452
      %v2485 = vadd.f32 %v301, %v2453
      %v2486 = vadd.f32 %v302, %v2454
      %v2487 = vadd.f32 %v303, %v2455
      %v2488 = vadd.f32 %v304, %v2456
      %v2489 = vadd.f32 %v305, %v2457
      %v2490 = vadd.f32 %v306, %v2458
      %v2491 = vadd.f32 %v307, %v2459
      %v2492 = vadd.f32 %v308, %v2460
      %v2493 = vadd.f32 %v309, %v2461
      %v2494 = vadd.f32 %v310, %v2462
      %v2495 = vadd.f32 %v311, %v2463
      %v2496 = vadd.f32 %v312, %v2464
      %v2497 = vadd.f32 %v313, %v2465
      %v2498 = vadd.f32 %v314, %v2466
      %v2499 = vadd.f32 %v315, %v2467
      %v2500 = vadd.f32 %v316, %v2468
      %v2501 = vadd.f32 %v317, %v2469
      %v2502 = vadd.f32 %v318, %v2470
      %v2503 = vadd.f32 %v319, %v2471
      %v2504 = vadd.f32 %v320, %v2472
      %v2505 = vadd.f32 %v321, %v2473
      %v2506 = vadd.f32 %v322, %v2474
      %v2507 = vadd.f32 %v323, %v2475
      %v2508 = vadd.f32 %v324, %v2476
      %v2509 = vadd.f32 %v325, %v2477
      %v2510 = vadd.f32 %v326, %v2478
      %v2511 = vadd.f32 %v327, %v2479
      %v2512 = vadd.f32 %v328, %v2480
      %2513 = vst [vmem:[%s289] sm:$0xff] %v2481
      %2514 = vst [vmem:[%s289 + $0x8] sm:$0xff] %v2482
      %2515 = vst [vmem:[%s289 + $0x10] sm:$0xff] %v2483
      %2516 = vst [vmem:[%s289 + $0x18] sm:$0xff] %v2484
      %2517 = vst [vmem:[%s289 + $0x20] sm:$0xff] %v2485
      %2518 = vst [vmem:[%s289 + $0x28] sm:$0xff] %v2486
      %2519 = vst [vmem:[%s289 + $0x30] sm:$0xff] %v2487
      %2520 = vst [vmem:[%s289 + $0x38] sm:$0xff] %v2488
      %2521 = vst [vmem:[%s289 + $0x40] sm:$0xff] %v2489
      %2522 = vst [vmem:[%s289 + $0x48] sm:$0xff] %v2490
      %2523 = vst [vmem:[%s289 + $0x50] sm:$0xff] %v2491
      %2524 = vst [vmem:[%s289 + $0x58] sm:$0xff] %v2492
      %2525 = vst [vmem:[%s289 + $0x60] sm:$0xff] %v2493
      %2526 = vst [vmem:[%s289 + $0x68] sm:$0xff] %v2494
      %2527 = vst [vmem:[%s289 + $0x70] sm:$0xff] %v2495
      %2528 = vst [vmem:[%s289 + $0x78] sm:$0xff] %v2496
      %2529 = vst [vmem:[%s289 + $0x80] sm:$0xff] %v2497
      %2530 = vst [vmem:[%s289 + $0x88] sm:$0xff] %v2498
      %2531 = vst [vmem:[%s289 + $0x90] sm:$0xff] %v2499
      %2532 = vst [vmem:[%s289 + $0x98] sm:$0xff] %v2500
      %2533 = vst [vmem:[%s289 + $0xa0] sm:$0xff] %v2501
      %2534 = vst [vmem:[%s289 + $0xa8] sm:$0xff] %v2502
      %2535 = vst [vmem:[%s289 + $0xb0] sm:$0xff] %v2503
      %2536 = vst [vmem:[%s289 + $0xb8] sm:$0xff] %v2504
      %2537 = vst [vmem:[%s289 + $0xc0] sm:$0xff] %v2505
      %2538 = vst [vmem:[%s289 + $0xc8] sm:$0xff] %v2506
      %2539 = vst [vmem:[%s289 + $0xd0] sm:$0xff] %v2507
      %2540 = vst [vmem:[%s289 + $0xd8] sm:$0xff] %v2508
      %2541 = vst [vmem:[%s289 + $0xe0] sm:$0xff] %v2509
      %2542 = vst [vmem:[%s289 + $0xe8] sm:$0xff] %v2510
      %2543 = vst [vmem:[%s289 + $0xf0] sm:$0xff] %v2511
      %2544 = vst [vmem:[%s289 + $0xf8] sm:$0xff] %v2512
      %v2545 = vmax.f32 %v2481, 0.0
      %v2546 = vmax.f32 %v2482, 0.0
      %v2547 = vmax.f32 %v2483, 0.0
      %v2548 = vmax.f32 %v2484, 0.0
      %v2549 = vmax.f32 %v2485, 0.0
      %v2550 = vmax.f32 %v2486, 0.0
      %v2551 = vmax.f32 %v2487, 0.0
      %v2552 = vmax.f32 %v2488, 0.0
      %v2553 = vmax.f32 %v2489, 0.0
      %v2554 = vmax.f32 %v2490, 0.0
      %v2555 = vmax.f32 %v2491, 0.0
      %v2556 = vmax.f32 %v2492, 0.0
      %v2557 = vmax.f32 %v2493, 0.0
      %v2558 = vmax.f32 %v2494, 0.0
      %v2559 = vmax.f32 %v2495, 0.0
      %v2560 = vmax.f32 %v2496, 0.0
      %v2561 = vmax.f32 %v2497, 0.0
      %v2562 = vmax.f32 %v2498, 0.0
      %v2563 = vmax.f32 %v2499, 0.0
      %v2564 = vmax.f32 %v2500, 0.0
      %v2565 = vmax.f32 %v2501, 0.0
      %v2566 = vmax.f32 %v2502, 0.0
      %v2567 = vmax.f32 %v2503, 0.0
      %v2568 = vmax.f32 %v2504, 0.0
      %v2569 = vmax.f32 %v2505, 0.0
      %v2570 = vmax.f32 %v2506, 0.0
      %v2571 = vmax.f32 %v2507, 0.0
      %v2572 = vmax.f32 %v2508, 0.0
      %v2573 = vmax.f32 %v2509, 0.0
      %v2574 = vmax.f32 %v2510, 0.0
      %v2575 = vmax.f32 %v2511, 0.0
      %v2576 = vmax.f32 %v2512, 0.0
      %v2577 = vadd.f32 %v2545, %v2547
      %v2578 = vadd.f32 %v2577, %v2549
      %v2579 = vadd.f32 %v2578, %v2551
      %v2580 = vadd.f32 %v2579, %v2553
      %v2581 = vadd.f32 %v2580, %v2555
      %v2582 = vadd.f32 %v2581, %v2557
      %v2583 = vadd.f32 %v2582, %v2559
      %v2584 = vadd.f32 %v2583, %v2561
      %v2585 = vadd.f32 %v2584, %v2563
      %v2586 = vadd.f32 %v2585, %v2565
      %v2587 = vadd.f32 %v2586, %v2567
      %v2588 = vadd.f32 %v2587, %v2569
      %v2589 = vadd.f32 %v2588, %v2571
      %v2590 = vadd.f32 %v2589, %v2573
      %v2591 = vadd.f32 %v2590, %v2575
      %v2592 = vadd.f32 %v2546, %v2548
      %v2593 = vadd.f32 %v2592, %v2550
      %v2594 = vadd.f32 %v2593, %v2552
      %v2595 = vadd.f32 %v2594, %v2554
      %v2596 = vadd.f32 %v2595, %v2556
      %v2597 = vadd.f32 %v2596, %v2558
      %v2598 = vadd.f32 %v2597, %v2560
      %v2599 = vadd.f32 %v2598, %v2562
      %v2600 = vadd.f32 %v2599, %v2564
      %v2601 = vadd.f32 %v2600, %v2566
      %v2602 = vadd.f32 %v2601, %v2568
      %v2603 = vadd.f32 %v2602, %v2570
      %v2604 = vadd.f32 %v2603, %v2572
      %v2605 = vadd.f32 %v2604, %v2574
      %v2606 = vadd.f32 %v2605, %v2576
      %v2607 = vadd.f32 %v2591, %v2606
      %v2608 = vrot.slane %v2607, 4
      %v2609 = vadd.f32 %v2607, %v2608
      %v2610 = vrot.slane %v2609, 2
      %v2611 = vadd.f32 %v2609, %v2610
      %v2612 = vrot.slane %v2611, 1
      %v2613 = vadd.f32 %v2611, %v2612
      %2614 = vst [vmem:[%s292] sm:$0x1] %v2613
      %v2615 = vmul.f32 %v2545, %v2545
      %v2616 = vmul.f32 %v2546, %v2546
      %v2617 = vmul.f32 %v2547, %v2547
      %v2618 = vmul.f32 %v2548, %v2548
      %v2619 = vmul.f32 %v2549, %v2549
      %v2620 = vmul.f32 %v2550, %v2550
      %v2621 = vmul.f32 %v2551, %v2551
      %v2622 = vmul.f32 %v2552, %v2552
      %v2623 = vmul.f32 %v2553, %v2553
      %v2624 = vmul.f32 %v2554, %v2554
      %v2625 = vmul.f32 %v2555, %v2555
      %v2626 = vmul.f32 %v2556, %v2556
      %v2627 = vmul.f32 %v2557, %v2557
      %v2628 = vmul.f32 %v2558, %v2558
      %v2629 = vmul.f32 %v2559, %v2559
      %v2630 = vmul.f32 %v2560, %v2560
      %v2631 = vmul.f32 %v2561, %v2561
      %v2632 = vmul.f32 %v2562, %v2562
      %v2633 = vmul.f32 %v2563, %v2563
      %v2634 = vmul.f32 %v2564, %v2564
      %v2635 = vmul.f32 %v2565, %v2565
      %v2636 = vmul.f32 %v2566, %v2566
      %v2637 = vmul.f32 %v2567, %v2567
      %v2638 = vmul.f32 %v2568, %v2568
      %v2639 = vmul.f32 %v2569, %v2569
      %v2640 = vmul.f32 %v2570, %v2570
      %v2641 = vmul.f32 %v2571, %v2571
      %v2642 = vmul.f32 %v2572, %v2572
      %v2643 = vmul.f32 %v2573, %v2573
      %v2644 = vmul.f32 %v2574, %v2574
      %v2645 = vmul.f32 %v2575, %v2575
      %v2646 = vmul.f32 %v2576, %v2576
      %v2647 = vadd.f32 %v2615, %v2617
      %v2648 = vadd.f32 %v2647, %v2619
      %v2649 = vadd.f32 %v2648, %v2621
      %v2650 = vadd.f32 %v2649, %v2623
      %v2651 = vadd.f32 %v2650, %v2625
      %v2652 = vadd.f32 %v2651, %v2627
      %v2653 = vadd.f32 %v2652, %v2629
      %v2654 = vadd.f32 %v2653, %v2631
      %v2655 = vadd.f32 %v2654, %v2633
      %v2656 = vadd.f32 %v2655, %v2635
      %v2657 = vadd.f32 %v2656, %v2637
      %v2658 = vadd.f32 %v2657, %v2639
      %v2659 = vadd.f32 %v2658, %v2641
      %v2660 = vadd.f32 %v2659, %v2643
      %v2661 = vadd.f32 %v2660, %v2645
      %v2662 = vadd.f32 %v2616, %v2618
      %v2663 = vadd.f32 %v2662, %v2620
      %v2664 = vadd.f32 %v2663, %v2622
      %v2665 = vadd.f32 %v2664, %v2624
      %v2666 = vadd.f32 %v2665, %v2626
      %v2667 = vadd.f32 %v2666, %v2628
      %v2668 = vadd.f32 %v2667, %v2630
      %v2669 = vadd.f32 %v2668, %v2632
      %v2670 = vadd.f32 %v2669, %v2634
      %v2671 = vadd.f32 %v2670, %v2636
      %v2672 = vadd.f32 %v2671, %v2638
      %v2673 = vadd.f32 %v2672, %v2640
      %v2674 = vadd.f32 %v2673, %v2642
      %v2675 = vadd.f32 %v2674, %v2644
      %v2676 = vadd.f32 %v2675, %v2646
      %v2677 = vadd.f32 %v2661, %v2676
      %v2678 = vrot.slane %v2677, 4
      %v2679 = vadd.f32 %v2677, %v2678
      %v2680 = vrot.slane %v2679, 2
      %v2681 = vadd.f32 %v2679, %v2680
      %v2682 = vrot.slane %v2681, 1
      %v2683 = vadd.f32 %v2681, %v2682
      %2684 = vst [vmem:[%s295] sm:$0x1] %v2683
      %p2685 = scmp.lt.s32.totalorder %s19, 1
      %s2686 = scalar_select %p2685, %s19, 1
      %s2687 = smul.addr %s2686, 32
      %s2688 = smul.addr %s2687, 8
      %s2689 = scalar_lea.vmem %s5, %s2688
      %p2690 = scmp.lt.s32.totalorder %s19, 1
      %s2691 = scalar_select %p2690, %s19, 1
      %s2692 = scalar_lea.vmem %s6, %s2691
      %p2693 = scmp.lt.s32.totalorder %s19, 1
      %s2694 = scalar_select %p2693, %s19, 1
      %s2695 = scalar_lea.vmem %s7, %s2694
      // Predicated region
      $region41: #{dense_block_forward.4} parent=39 // pred_check
        %p2696 = pneg %p147
      $region42: #{dense_block_forward.4} parent=39 // pred_check_branch
        %2698 = sbr.rel (%p2696) target = $region44
      $region43: #{dense_block_forward.4} parent=39 // pred_region
        _
      $region44: #{dense_block_forward.4} parent=39 // pred_fallthru
        _
      // Predicated region
      $region45: #{dense_block_forward.4} parent=39 // pred_check
        %p2699 = pneg %p173
      $region46: #{dense_block_forward.4} parent=39 // pred_check_branch
        %2701 = sbr.rel (%p2699) target = $region48
      $region47: #{dense_block_forward.4} parent=39 // pred_region
        _
      $region48: #{dense_block_forward.4} parent=39 // pred_fallthru
        _
      // Predicated region
      $region49: #{dense_block_forward.4} parent=39 // pred_check
        %p2702 = pneg %p199
      $region50: #{dense_block_forward.4} parent=39 // pred_check_branch
        %2704 = sbr.rel (%p2702) target = $region52
      $region51: #{dense_block_forward.4} parent=39 // pred_region
        _
      $region52: #{dense_block_forward.4} parent=39 // pred_fallthru
        _
    $region40: #{dense_block_forward.4} parent=5 // pred_fallthru
      _
    %p2705 = scmp.le.s32.totalorder 2, %s14
    // Predicated region
    $region53: #{dense_block_forward.4} parent=5 // pred_check
      %p2706 = pneg %p2705
    $region54: #{dense_block_forward.4} parent=5 // pred_check_branch
      %2708 = sbr.rel (%p2706) target = $region56
    $region55: #{dense_block_forward.4} parent=5 // pred_region
      %s2709 = ssub.s32 %s14, 2
      // Predicated region
      $region57: #{dense_block_forward.4} parent=55 // pred_check
        %p2710 = pneg %p153
      $region58: #{dense_block_forward.4} parent=55 // pred_check_branch
        %2712 = sbr.rel (%p2710) target = $region60
      $region59: #{dense_block_forward.4} parent=55 // pred_region
        %p2713 = scmp.lt.s32.totalorder %s20, 1
        %s2714 = scalar_select %p2713, %s20, 1
        %s2715 = smul.addr %s2714, 32
        %s2716 = smul.addr %s2715, 8
        %s2717 = scalar_lea.vmem %s5, %s2716
      $region60: #{dense_block_forward.4} parent=55 // pred_fallthru
        _
      // Predicated region
      $region61: #{dense_block_forward.4} parent=55 // pred_check
        %p2718 = pneg %p179
      $region62: #{dense_block_forward.4} parent=55 // pred_check_branch
        %2720 = sbr.rel (%p2718) target = $region64
      $region63: #{dense_block_forward.4} parent=55 // pred_region
        %p2721 = scmp.lt.s32.totalorder %s20, 1
        %s2722 = scalar_select %p2721, %s20, 1
        %s2723 = scalar_lea.vmem %s6, %s2722
      $region64: #{dense_block_forward.4} parent=55 // pred_fallthru
        _
      // Predicated region
      $region65: #{dense_block_forward.4} parent=55 // pred_check
        %p2724 = pneg %p205
      $region66: #{dense_block_forward.4} parent=55 // pred_check_branch
        %2726 = sbr.rel (%p2724) target = $region68
      $region67: #{dense_block_forward.4} parent=55 // pred_region
        %p2727 = scmp.lt.s32.totalorder %s20, 1
        %s2728 = scalar_select %p2727, %s20, 1
        %s2729 = scalar_lea.vmem %s7, %s2728
      $region68: #{dense_block_forward.4} parent=55 // pred_fallthru
        _
    $region56: #{dense_block_forward.4} parent=5 // pred_fallthru
      _
  $region6: #{dense_block_forward.4} parent=0 // loop_footer
    %s18 = sadd.s32 1, %s14
  $region7: #{dense_block_forward.4} parent=0 // loop_footer_branch
    %13 = sbr.rel target = $region3
  $region8: #{dense_block_forward.4} parent=0 // loop_exit
    _

// kernel: dense_block_forward.7
$region0: #{dense_block_forward.7}
  #allocation0 [shape = 'u32[]', space=smem, size = 0x4, offset = 0x4, fixed_abs, tag = 'smem constant byte address 0x4 - core index']
  #allocation1 [shape = 'u32[144,128]{1,0:T(1,128)}', space=vmem, size = 0x12000, scoped, tag = 'internal scratch']
  #allocation2 [shape = 'bf16[288,384]{1,0:T(16,128)(2,1)}', space=vmem, size = 0x36000, scoped, tag = 'scratch operand']
  %s0 = inlined_call_operand.vmem [shape: f32[2,16,16,128], index: 0, kind: input, shape index: {}, may-alias: {0,5}]
  %s1 = inlined_call_operand.vmem [shape: f32[1,128], index: 1, kind: input, shape index: {}]
  %s2 = inlined_call_operand.vmem [shape: f32[1,128], index: 2, kind: input, shape index: {}]
  %s3 = inlined_call_operand.vmem [shape: bf16[3,384,128], index: 3, kind: input, shape index: {}]
  %s4 = inlined_call_operand.vmem [shape: f32[1,128], index: 4, kind: input, shape index: {}]
  %s5 = inlined_call_operand.vmem [shape: f32[2,16,16,128], index: 5, kind: output, shape index: {0}, may-alias: {0,5}]
  %s6 = inlined_call_operand.hbm [shape: f32[2,1,128], index: 6, kind: output, shape index: {1}]
  %s7 = inlined_call_operand.hbm [shape: f32[2,1,128], index: 7, kind: output, shape index: {2}]
  %8 = xla_tuple %s5, %s6, %s7
  %s9 = sld [smem:[#allocation0]]
  $region69: #{dense_block_forward.7} parent=0
    _
  %s11 = ssub.s32 1, %s9
  %s12 = scalar_select 0, %s11, %s9
  $region1: #{dense_block_forward.7} parent=0
    #allocation3 [shape = 'u8[1024]{0}', space=vmem, size = 0x400, scoped, tag = 'output window, operand 1']
    #allocation4 [shape = 's32[2]{0}', space=sflag, size = 0x8, scoped, tag = 'scoped memory for dense_block_forward.7']
    #allocation5 [shape = 'u8[1024]{0}', space=vmem, size = 0x400, scoped, tag = 'output window, operand 2']
    #allocation6 [shape = 's32[2]{0}', space=sflag, size = 0x8, scoped, tag = 'scoped memory for dense_block_forward.7']
    %13 = vsyncpa [#allocation4], 0
    %s14 = scalar_lea.sflag [#allocation4], 1
    %15 = vsyncpa %s14, 0
    %16 = vsyncpa [#allocation6], 0
    %s17 = scalar_lea.sflag [#allocation6], 1
    %18 = vsyncpa %s17, 0
    loop: start=0, step=1, limit=4
    $region2: #{dense_block_forward.7} parent=1 // loop_pre_header
      _
    $region3: #{dense_block_forward.7} parent=1 // loop_header
      %s20 = sphi 0, %s24
      %p21 = scmp.ge.s32.totalorder %s20, 4
      %s30 = sphi 0, %s32
      %s33 = sphi 0, %s30
      %s34 = sphi 0, %s33
      %s50 = sphi 0, %s34
      %s54 = sphi 0, %s54
      %s56 = sphi 0, %s54
      %s57 = sphi 0, %s56
      %s71 = sphi 0, %s57
      %s75 = sphi 0, %s75
      %s77 = sphi 0, %s75
      %s78 = sphi 0, %s77
      %s92 = sphi 0, %s78
      %s96 = sphi 0, %s96
      %s98 = sphi 0, %s96
      %s99 = sphi 0, %s98
      %s113 = sphi 0, %s99
      %s117 = sphi 0, %s117
      %s119 = sphi 0, %s117
      %s120 = sphi 0, %s119
      %s134 = sphi 0, %s120
      %s140 = sphi 0, %s142
      %s143 = sphi 0, %s140
      %s144 = sphi 0, %s143
      %s160 = sphi 0, %s144
      %s166 = sphi 0, %s168
      %s169 = sphi 0, %s166
      %s170 = sphi 0, %s169
      %s186 = sphi 0, %s170
      %s192 = sphi 0, %s194
      %s195 = sphi 0, %s192
      %s196 = sphi 0, %s195
      %s212 = sphi 0, %s196
    $region4: #{dense_block_forward.7} parent=1 // loop_header_branch
      %23 = sbr.rel (%p21) target = $region8
    $region5: #{dense_block_forward.7} parent=1 // loop_body
      %s25 = ssub.s32 %s20, 1
      %s26 = ssub.s32 %s20, 2
      %s27 = sadd.s32 %s20, 1
      %s28 = ssub.s32 %s20, %s27
      %p29 = scmp.eq.s32.totalorder %s28, 0
      %s31 = sadd.s32 %s30, 1
      %s32 = scalar_select %p29, %s30, %s31
      %p35 = pneg %p29
      %p36 = scmp.eq.s32.totalorder %s20, 1
      %p37 = por %p35, %p36
      %p38 = scmp.ne.s32.totalorder %s30, %s33
      %p39 = scmp.eq.s32.totalorder %s20, 0
      %p40 = por %p38, %p39
      %p41 = scmp.ne.s32.totalorder %s30, %s33
      %p42 = scmp.eq.s32.totalorder %s25, 1
      %p43 = por %p41, %p42
      %p44 = scmp.ne.s32.totalorder %s33, %s34
      %p45 = scmp.eq.s32.totalorder %s25, 0
      %p46 = por %p44, %p45
      %p47 = scmp.ne.s32.totalorder %s33, %s34
      %p48 = scmp.eq.s32.totalorder %s26, 1
      %p49 = por %p47, %p48
      %p51 = scmp.ne.s32.totalorder %s34, %s50
      %p52 = scmp.eq.s32.totalorder %s26, 0
      %p53 = por %p51, %p52
      %s55 = sadd.s32 %s54, 1
      %p58 = scmp.eq.s32.totalorder %s20, 1
      %p59 = scmp.ne.s32.totalorder %s54, %s56
      %p60 = scmp.eq.s32.totalorder %s20, 0
      %p61 = por %p59, %p60
      %p62 = scmp.ne.s32.totalorder %s54, %s56
      %p63 = scmp.eq.s32.totalorder %s25, 1
      %p64 = por %p62, %p63
      %p65 = scmp.ne.s32.totalorder %s56, %s57
      %p66 = scmp.eq.s32.totalorder %s25, 0
      %p67 = por %p65, %p66
      %p68 = scmp.ne.s32.totalorder %s56, %s57
      %p69 = scmp.eq.s32.totalorder %s26, 1
      %p70 = por %p68, %p69
      %p72 = scmp.ne.s32.totalorder %s57, %s71
      %p73 = scmp.eq.s32.totalorder %s26, 0
      %p74 = por %p72, %p73
      %s76 = sadd.s32 %s75, 1
      %p79 = scmp.eq.s32.totalorder %s20, 1
      %p80 = scmp.ne.s32.totalorder %s75, %s77
      %p81 = scmp.eq.s32.totalorder %s20, 0
      %p82 = por %p80, %p81
      %p83 = scmp.ne.s32.totalorder %s75, %s77
      %p84 = scmp.eq.s32.totalorder %s25, 1
      %p85 = por %p83, %p84
      %p86 = scmp.ne.s32.totalorder %s77, %s78
      %p87 = scmp.eq.s32.totalorder %s25, 0
      %p88 = por %p86, %p87
      %p89 = scmp.ne.s32.totalorder %s77, %s78
      %p90 = scmp.eq.s32.totalorder %s26, 1
      %p91 = por %p89, %p90
      %p93 = scmp.ne.s32.totalorder %s78, %s92
      %p94 = scmp.eq.s32.totalorder %s26, 0
      %p95 = por %p93, %p94
      %s97 = sadd.s32 %s96, 1
      %p100 = scmp.eq.s32.totalorder %s20, 1
      %p101 = scmp.ne.s32.totalorder %s96, %s98
      %p102 = scmp.eq.s32.totalorder %s20, 0
      %p103 = por %p101, %p102
      %p104 = scmp.ne.s32.totalorder %s96, %s98
      %p105 = scmp.eq.s32.totalorder %s25, 1
      %p106 = por %p104, %p105
      %p107 = scmp.ne.s32.totalorder %s98, %s99
      %p108 = scmp.eq.s32.totalorder %s25, 0
      %p109 = por %p107, %p108
      %p110 = scmp.ne.s32.totalorder %s98, %s99
      %p111 = scmp.eq.s32.totalorder %s26, 1
      %p112 = por %p110, %p111
      %p114 = scmp.ne.s32.totalorder %s99, %s113
      %p115 = scmp.eq.s32.totalorder %s26, 0
      %p116 = por %p114, %p115
      %s118 = sadd.s32 %s117, 1
      %p121 = scmp.eq.s32.totalorder %s20, 1
      %p122 = scmp.ne.s32.totalorder %s117, %s119
      %p123 = scmp.eq.s32.totalorder %s20, 0
      %p124 = por %p122, %p123
      %p125 = scmp.ne.s32.totalorder %s117, %s119
      %p126 = scmp.eq.s32.totalorder %s25, 1
      %p127 = por %p125, %p126
      %p128 = scmp.ne.s32.totalorder %s119, %s120
      %p129 = scmp.eq.s32.totalorder %s25, 0
      %p130 = por %p128, %p129
      %p131 = scmp.ne.s32.totalorder %s119, %s120
      %p132 = scmp.eq.s32.totalorder %s26, 1
      %p133 = por %p131, %p132
      %p135 = scmp.ne.s32.totalorder %s120, %s134
      %p136 = scmp.eq.s32.totalorder %s26, 0
      %p137 = por %p135, %p136
      %s138 = ssub.s32 %s20, %s27
      %p139 = scmp.eq.s32.totalorder %s138, 0
      %s141 = sadd.s32 %s140, 1
      %s142 = scalar_select %p139, %s140, %s141
      %p145 = pneg %p139
      %p146 = scmp.eq.s32.totalorder %s20, 1
      %p147 = por %p145, %p146
      %p148 = scmp.ne.s32.totalorder %s140, %s143
      %p149 = scmp.eq.s32.totalorder %s20, 0
      %p150 = por %p148, %p149
      %p151 = scmp.ne.s32.totalorder %s140, %s143
      %p152 = scmp.eq.s32.totalorder %s25, 1
      %p153 = por %p151, %p152
      %p154 = scmp.ne.s32.totalorder %s143, %s144
      %p155 = scmp.eq.s32.totalorder %s25, 0
      %p156 = por %p154, %p155
      %p157 = scmp.ne.s32.totalorder %s143, %s144
      %p158 = scmp.eq.s32.totalorder %s26, 1
      %p159 = por %p157, %p158
      %p161 = scmp.ne.s32.totalorder %s144, %s160
      %p162 = scmp.eq.s32.totalorder %s26, 0
      %p163 = por %p161, %p162
      %s164 = ssub.s32 %s20, %s27
      %p165 = scmp.eq.s32.totalorder %s164, 0
      %s167 = sadd.s32 %s166, 1
      %s168 = scalar_select %p165, %s166, %s167
      %p171 = pneg %p165
      %p172 = scmp.eq.s32.totalorder %s20, 1
      %p173 = por %p171, %p172
      %p174 = scmp.ne.s32.totalorder %s166, %s169
      %p175 = scmp.eq.s32.totalorder %s20, 0
      %p176 = por %p174, %p175
      %p177 = scmp.ne.s32.totalorder %s166, %s169
      %p178 = scmp.eq.s32.totalorder %s25, 1
      %p179 = por %p177, %p178
      %p180 = scmp.ne.s32.totalorder %s169, %s170
      %p181 = scmp.eq.s32.totalorder %s25, 0
      %p182 = por %p180, %p181
      %p183 = scmp.ne.s32.totalorder %s169, %s170
      %p184 = scmp.eq.s32.totalorder %s26, 1
      %p185 = por %p183, %p184
      %p187 = scmp.ne.s32.totalorder %s170, %s186
      %p188 = scmp.eq.s32.totalorder %s26, 0
      %p189 = por %p187, %p188
      %s190 = ssub.s32 %s20, %s27
      %p191 = scmp.eq.s32.totalorder %s190, 0
      %s193 = sadd.s32 %s192, 1
      %s194 = scalar_select %p191, %s192, %s193
      %p197 = pneg %p191
      %p198 = scmp.eq.s32.totalorder %s20, 1
      %p199 = por %p197, %p198
      %p200 = scmp.ne.s32.totalorder %s192, %s195
      %p201 = scmp.eq.s32.totalorder %s20, 0
      %p202 = por %p200, %p201
      %p203 = scmp.ne.s32.totalorder %s192, %s195
      %p204 = scmp.eq.s32.totalorder %s25, 1
      %p205 = por %p203, %p204
      %p206 = scmp.ne.s32.totalorder %s195, %s196
      %p207 = scmp.eq.s32.totalorder %s25, 0
      %p208 = por %p206, %p207
      %p209 = scmp.ne.s32.totalorder %s195, %s196
      %p210 = scmp.eq.s32.totalorder %s26, 1
      %p211 = por %p209, %p210
      %p213 = scmp.ne.s32.totalorder %s196, %s212
      %p214 = scmp.eq.s32.totalorder %s26, 0
      %p215 = por %p213, %p214
      %p216 = scmp.le.s32.totalorder 1, %s20
      %p217 = scmp.lt.s32.totalorder %s20, 3
      %p218 = pnand %p216, %p217
      %p219 = pneg %p218
      // Predicated region
      $region9: #{dense_block_forward.7} parent=5 // pred_check
        _
      $region10: #{dense_block_forward.7} parent=5 // pred_check_branch
        %221 = sbr.rel (%p218) target = $region12
      $region11: #{dense_block_forward.7} parent=5 // pred_region
        %s222 = ssub.s32 %s20, 1
        // Predicated region
        $region13: #{dense_block_forward.7} parent=11 // pred_check
          %p223 = pneg %p67
        $region14: #{dense_block_forward.7} parent=11 // pred_check_branch
          %225 = sbr.rel (%p223) target = $region16
        $region15: #{dense_block_forward.7} parent=11 // pred_region
          _
        $region16: #{dense_block_forward.7} parent=11 // pred_fallthru
          _
        // Predicated region
        $region17: #{dense_block_forward.7} parent=11 // pred_check
          %p226 = pneg %p88
        $region18: #{dense_block_forward.7} parent=11 // pred_check_branch
          %228 = sbr.rel (%p226) target = $region20
        $region19: #{dense_block_forward.7} parent=11 // pred_region
          _
        $region20: #{dense_block_forward.7} parent=11 // pred_fallthru
          _
        // Predicated region
        $region21: #{dense_block_forward.7} parent=11 // pred_check
          %p229 = pneg %p109
        $region22: #{dense_block_forward.7} parent=11 // pred_check_branch
          %231 = sbr.rel (%p229) target = $region24
        $region23: #{dense_block_forward.7} parent=11 // pred_region
          _
        $region24: #{dense_block_forward.7} parent=11 // pred_fallthru
          _
        // Predicated region
        $region25: #{dense_block_forward.7} parent=11 // pred_check
          %p232 = pneg %p130
        $region26: #{dense_block_forward.7} parent=11 // pred_check_branch
          %234 = sbr.rel (%p232) target = $region28
        $region27: #{dense_block_forward.7} parent=11 // pred_region
          _
        $region28: #{dense_block_forward.7} parent=11 // pred_fallthru
          _
      $region12: #{dense_block_forward.7} parent=5 // pred_fallthru
        _
      %p235 = scmp.lt.s32.totalorder %s20, 2
      // Predicated region
      $region29: #{dense_block_forward.7} parent=5 // pred_check
        %p236 = pneg %p235
      $region30: #{dense_block_forward.7} parent=5 // pred_check_branch
        %238 = sbr.rel (%p236) target = $region32
      $region31: #{dense_block_forward.7} parent=5 // pred_region
        // Predicated region
        $region33: #{dense_block_forward.7} parent=31 // pred_check
          %p239 = pneg %p40
        $region34: #{dense_block_forward.7} parent=31 // pred_check_branch
          %241 = sbr.rel (%p239) target = $region36
        $region35: #{dense_block_forward.7} parent=31 // pred_region
          %p242 = scmp.lt.s32.totalorder %s20, 1
          %s243 = scalar_select %p242, %s20, 1
          %s244 = smul.addr %s243, 32
          %s245 = smul.addr %s244, 8
          %s246 = scalar_lea.vmem %s0, %s245
        $region36: #{dense_block_forward.7} parent=31 // pred_fallthru
          _
      $region32: #{dense_block_forward.7} parent=5 // pred_fallthru
        _
      %p247 = scmp.le.s32.totalorder 1, %s20
      %p248 = scmp.lt.s32.totalorder %s20, 3
      %p249 = pnand %p247, %p248
      %p250 = pneg %p249
      // Predicated region
      $region37: #{dense_block_forward.7} parent=5 // pred_check
        _
      $region38: #{dense_block_forward.7} parent=5 // pred_check_branch
        %252 = sbr.rel (%p249) target = $region40
      $region39: #{dense_block_forward.7} parent=5 // pred_region
        %s253 = ssub.s32 %s20, 1
        %p254 = scmp.lt.s32.totalorder %s25, 1
        %s255 = scalar_select %p254, %s25, 1
        %s256 = smul.addr %s255, 32
        %s257 = smul.addr %s256, 8
        %s258 = scalar_lea.vmem %s0, %s257
        %p259 = pneg %p46
        %p260 = pneg %p43
        %p261 = pneg %p67
        %p262 = pneg %p64
        %p263 = pneg %p88
        %p264 = pneg %p85
        %p265 = pneg %p109
        %p266 = pneg %p106
        %p267 = pneg %p130
        %p268 = pneg %p127
        %p269 = pneg %p156
        %p270 = pneg %p153
        %p271 = scmp.lt.s32.totalorder %s25, 1
        %s272 = scalar_select %p271, %s25, 1
        %s273 = smul.addr %s272, 32
        %s274 = smul.addr %s273, 8
        %s275 = scalar_lea.vmem %s5, %s274
        %p276 = pneg %p182
        %p277 = pneg %p179
        %s278 = sand.u32 %s169, 1
        %s279 = scalar_lea.sflag [#allocation4], %s278
        %s280 = sand.u32 %s169, 1
        %s281 = scalar_lea.vmem [#allocation3], %s280
        %p282 = pneg %p208
        %p283 = pneg %p205
        %s284 = sand.u32 %s195, 1
        %s285 = scalar_lea.sflag [#allocation6], %s284
        %s286 = sand.u32 %s195, 1
        %s287 = scalar_lea.vmem [#allocation5], %s286
        %p288 = scmp.lt.s32.totalorder %s25, 1
        %s289 = scalar_select %p288, %s25, 1
        %s290 = smul.addr %s289, 32
        %s291 = smul.addr %s290, 8
        %s292 = scalar_lea.vmem %s0, %s291
        %p293 = scmp.lt.s32.totalorder %s25, 1
        %s294 = scalar_select %p293, %s25, 1
        %s295 = smul.addr %s294, 32
        %s296 = smul.addr %s295, 8
        %s297 = scalar_lea.vmem %s5, %s296
        %v299 = vld [vmem:[%s292] sm:$0xff]
        %v300 = vld [vmem:[%s292 + $0x8] sm:$0xff]
        %v301 = vld [vmem:[%s292 + $0x10] sm:$0xff]
        %v302 = vld [vmem:[%s292 + $0x18] sm:$0xff]
        %v303 = vld [vmem:[%s292 + $0x20] sm:$0xff]
        %v304 = vld [vmem:[%s292 + $0x28] sm:$0xff]
        %v305 = vld [vmem:[%s292 + $0x30] sm:$0xff]
        %v306 = vld [vmem:[%s292 + $0x38] sm:$0xff]
        %v307 = vld [vmem:[%s292 + $0x40] sm:$0xff]
        %v308 = vld [vmem:[%s292 + $0x48] sm:$0xff]
        %v309 = vld [vmem:[%s292 + $0x50] sm:$0xff]
        %v310 = vld [vmem:[%s292 + $0x58] sm:$0xff]
        %v311 = vld [vmem:[%s292 + $0x60] sm:$0xff]
        %v312 = vld [vmem:[%s292 + $0x68] sm:$0xff]
        %v313 = vld [vmem:[%s292 + $0x70] sm:$0xff]
        %v314 = vld [vmem:[%s292 + $0x78] sm:$0xff]
        %v315 = vld [vmem:[%s292 + $0x80] sm:$0xff]
        %v316 = vld [vmem:[%s292 + $0x88] sm:$0xff]
        %v317 = vld [vmem:[%s292 + $0x90] sm:$0xff]
        %v318 = vld [vmem:[%s292 + $0x98] sm:$0xff]
        %v319 = vld [vmem:[%s292 + $0xa0] sm:$0xff]
        %v320 = vld [vmem:[%s292 + $0xa8] sm:$0xff]
        %v321 = vld [vmem:[%s292 + $0xb0] sm:$0xff]
        %v322 = vld [vmem:[%s292 + $0xb8] sm:$0xff]
        %v323 = vld [vmem:[%s292 + $0xc0] sm:$0xff]
        %v324 = vld [vmem:[%s292 + $0xc8] sm:$0xff]
        %v325 = vld [vmem:[%s292 + $0xd0] sm:$0xff]
        %v326 = vld [vmem:[%s292 + $0xd8] sm:$0xff]
        %v327 = vld [vmem:[%s292 + $0xe0] sm:$0xff]
        %v328 = vld [vmem:[%s292 + $0xe8] sm:$0xff]
        %v329 = vld [vmem:[%s292 + $0xf0] sm:$0xff]
        %v330 = vld [vmem:[%s292 + $0xf8] sm:$0xff]
        %v331 = vld [vmem:[%s1] sm:$0x1]
        %v332 = vld [vmem:[%s2] sm:$0x1]
        %v333 = vmax.f32 %v299, 0.0
        %v334 = vmax.f32 %v300, 0.0
        %v335 = vmax.f32 %v301, 0.0
        %v336 = vmax.f32 %v302, 0.0
        %v337 = vmax.f32 %v303, 0.0
        %v338 = vmax.f32 %v304, 0.0
        %v339 = vmax.f32 %v305, 0.0
        %v340 = vmax.f32 %v306, 0.0
        %v341 = vmax.f32 %v307, 0.0
        %v342 = vmax.f32 %v308, 0.0
        %v343 = vmax.f32 %v309, 0.0
        %v344 = vmax.f32 %v310, 0.0
        %v345 = vmax.f32 %v311, 0.0
        %v346 = vmax.f32 %v312, 0.0
        %v347 = vmax.f32 %v313, 0.0
        %v348 = vmax.f32 %v314, 0.0
        %v349 = vmax.f32 %v315, 0.0
        %v350 = vmax.f32 %v316, 0.0
        %v351 = vmax.f32 %v317, 0.0
        %v352 = vmax.f32 %v318, 0.0
        %v353 = vmax.f32 %v319, 0.0
        %v354 = vmax.f32 %v320, 0.0
        %v355 = vmax.f32 %v321, 0.0
        %v356 = vmax.f32 %v322, 0.0
        %v357 = vmax.f32 %v323, 0.0
        %v358 = vmax.f32 %v324, 0.0
        %v359 = vmax.f32 %v325, 0.0
        %v360 = vmax.f32 %v326, 0.0
        %v361 = vmax.f32 %v327, 0.0
        %v362 = vmax.f32 %v328, 0.0
        %v363 = vmax.f32 %v329, 0.0
        %v364 = vmax.f32 %v330, 0.0
        %v366 = vlaneseq
        %v367 = vshrl.u32 %v366, 7
        %v368 = vsub.s32 0, %v367
        %v369 = vrot.slane %v331, %v368
        %v371 = vmul.f32 %v333, %v369
        %v372 = vmul.f32 %v334, %v369
        %v373 = vmul.f32 %v335, %v369
        %v374 = vmul.f32 %v336, %v369
        %v375 = vmul.f32 %v337, %v369
        %v376 = vmul.f32 %v338, %v369
        %v377 = vmul.f32 %v339, %v369
        %v378 = vmul.f32 %v340, %v369
        %v379 = vmul.f32 %v341, %v369
        %v380 = vmul.f32 %v342, %v369
        %v381 = vmul.f32 %v343, %v369
        %v382 = vmul.f32 %v344, %v369
        %v383 = vmul.f32 %v345, %v369
        %v384 = vmul.f32 %v346, %v369
        %v385 = vmul.f32 %v347, %v369
        %v386 = vmul.f32 %v348, %v369
        %v387 = vmul.f32 %v349, %v369
        %v388 = vmul.f32 %v350, %v369
        %v389 = vmul.f32 %v351, %v369
        %v390 = vmul.f32 %v352, %v369
        %v391 = vmul.f32 %v353, %v369
        %v392 = vmul.f32 %v354, %v369
        %v393 = vmul.f32 %v355, %v369
        %v394 = vmul.f32 %v356, %v369
        %v395 = vmul.f32 %v357, %v369
        %v396 = vmul.f32 %v358, %v369
        %v397 = vmul.f32 %v359, %v369
        %v398 = vmul.f32 %v360, %v369
        %v399 = vmul.f32 %v361, %v369
        %v400 = vmul.f32 %v362, %v369
        %v401 = vmul.f32 %v363, %v369
        %v402 = vmul.f32 %v364, %v369
        %v404 = vlaneseq
        %v405 = vshrl.u32 %v404, 7
        %v406 = vsub.s32 0, %v405
        %v407 = vrot.slane %v332, %v406
        %v409 = vadd.f32 %v371, %v407
        %v410 = vadd.f32 %v372, %v407
        %v411 = vadd.f32 %v373, %v407
        %v412 = vadd.f32 %v374, %v407
        %v413 = vadd.f32 %v375, %v407
        %v414 = vadd.f32 %v376, %v407
        %v415 = vadd.f32 %v377, %v407
        %v416 = vadd.f32 %v378, %v407
        %v417 = vadd.f32 %v379, %v407
        %v418 = vadd.f32 %v380, %v407
        %v419 = vadd.f32 %v381, %v407
        %v420 = vadd.f32 %v382, %v407
        %v421 = vadd.f32 %v383, %v407
        %v422 = vadd.f32 %v384, %v407
        %v423 = vadd.f32 %v385, %v407
        %v424 = vadd.f32 %v386, %v407
        %v425 = vadd.f32 %v387, %v407
        %v426 = vadd.f32 %v388, %v407
        %v427 = vadd.f32 %v389, %v407
        %v428 = vadd.f32 %v390, %v407
        %v429 = vadd.f32 %v391, %v407
        %v430 = vadd.f32 %v392, %v407
        %v431 = vadd.f32 %v393, %v407
        %v432 = vadd.f32 %v394, %v407
        %v433 = vadd.f32 %v395, %v407
        %v434 = vadd.f32 %v396, %v407
        %v435 = vadd.f32 %v397, %v407
        %v436 = vadd.f32 %v398, %v407
        %v437 = vadd.f32 %v399, %v407
        %v438 = vadd.f32 %v400, %v407
        %v439 = vadd.f32 %v401, %v407
        %v440 = vadd.f32 %v402, %v407
        %vm473 = vcmask 1040384
        %v474 = vrot.slane %v409, 7
        %v475 = vrot.slane %v410, 7
        %v476 = vsel %vm473, %v474, %v475
        %v477 = vrot.slane %v411, 7
        %v478 = vrot.slane %v412, 7
        %v479 = vsel %vm473, %v477, %v478
        %v480 = vrot.slane %v413, 7
        %v481 = vrot.slane %v414, 7
        %v482 = vsel %vm473, %v480, %v481
        %v483 = vrot.slane %v415, 7
        %v484 = vrot.slane %v416, 7
        %v485 = vsel %vm473, %v483, %v484
        %v486 = vrot.slane %v417, 7
        %v487 = vrot.slane %v418, 7
        %v488 = vsel %vm473, %v486, %v487
        %v489 = vrot.slane %v419, 7
        %v490 = vrot.slane %v420, 7
        %v491 = vsel %vm473, %v489, %v490
        %v492 = vrot.slane %v421, 7
        %v493 = vrot.slane %v422, 7
        %v494 = vsel %vm473, %v492, %v493
        %v495 = vrot.slane %v423, 7
        %v496 = vrot.slane %v424, 7
        %v497 = vsel %vm473, %v495, %v496
        %v498 = vrot.slane %v425, 7
        %v499 = vrot.slane %v426, 7
        %v500 = vsel %vm473, %v498, %v499
        %v501 = vrot.slane %v427, 7
        %v502 = vrot.slane %v428, 7
        %v503 = vsel %vm473, %v501, %v502
        %v504 = vrot.slane %v429, 7
        %v505 = vrot.slane %v430, 7
        %v506 = vsel %vm473, %v504, %v505
        %v507 = vrot.slane %v431, 7
        %v508 = vrot.slane %v432, 7
        %v509 = vsel %vm473, %v507, %v508
        %v510 = vrot.slane %v433, 7
        %v511 = vrot.slane %v434, 7
        %v512 = vsel %vm473, %v510, %v511
        %v513 = vrot.slane %v435, 7
        %v514 = vrot.slane %v436, 7
        %v515 = vsel %vm473, %v513, %v514
        %v516 = vrot.slane %v437, 7
        %v517 = vrot.slane %v438, 7
        %v518 = vsel %vm473, %v516, %v517
        %v519 = vrot.slane %v439, 7
        %v520 = vrot.slane %v440, 7
        %v521 = vsel %vm473, %v519, %v520
        %v554 = vsel %vm473, 0.0, %v474
        %v555 = vsel %vm473, 0.0, %v477
        %v556 = vsel %vm473, 0.0, %v480
        %v557 = vsel %vm473, 0.0, %v483
        %v558 = vsel %vm473, 0.0, %v486
        %v559 = vsel %vm473, 0.0, %v489
        %v560 = vsel %vm473, 0.0, %v492
        %v561 = vsel %vm473, 0.0, %v495
        %v562 = vsel %vm473, 0.0, %v498
        %v563 = vsel %vm473, 0.0, %v501
        %v564 = vsel %vm473, 0.0, %v504
        %v565 = vsel %vm473, 0.0, %v507
        %v566 = vsel %vm473, 0.0, %v510
        %v567 = vsel %vm473, 0.0, %v513
        %v568 = vsel %vm473, 0.0, %v516
        %v569 = vsel %vm473, 0.0, %v519
        %vm570 = vcmask 1046528
        %v571 = vrot.slane %v409, 1
        %v572 = vrot.slane %v410, 1
        %v573 = vsel %vm570, %v571, %v572
        %v574 = vrot.slane %v411, 1
        %v575 = vrot.slane %v412, 1
        %v576 = vsel %vm570, %v574, %v575
        %v577 = vrot.slane %v413, 1
        %v578 = vrot.slane %v414, 1
        %v579 = vsel %vm570, %v577, %v578
        %v580 = vrot.slane %v415, 1
        %v581 = vrot.slane %v416, 1
        %v582 = vsel %vm570, %v580, %v581
        %v583 = vrot.slane %v417, 1
        %v584 = vrot.slane %v418, 1
        %v585 = vsel %vm570, %v583, %v584
        %v586 = vrot.slane %v419, 1
        %v587 = vrot.slane %v420, 1
        %v588 = vsel %vm570, %v586, %v587
        %v589 = vrot.slane %v421, 1
        %v590 = vrot.slane %v422, 1
        %v591 = vsel %vm570, %v589, %v590
        %v592 = vrot.slane %v423, 1
        %v593 = vrot.slane %v424, 1
        %v594 = vsel %vm570, %v592, %v593
        %v595 = vrot.slane %v425, 1
        %v596 = vrot.slane %v426, 1
        %v597 = vsel %vm570, %v595, %v596
        %v598 = vrot.slane %v427, 1
        %v599 = vrot.slane %v428, 1
        %v600 = vsel %vm570, %v598, %v599
        %v601 = vrot.slane %v429, 1
        %v602 = vrot.slane %v430, 1
        %v603 = vsel %vm570, %v601, %v602
        %v604 = vrot.slane %v431, 1
        %v605 = vrot.slane %v432, 1
        %v606 = vsel %vm570, %v604, %v605
        %v607 = vrot.slane %v433, 1
        %v608 = vrot.slane %v434, 1
        %v609 = vsel %vm570, %v607, %v608
        %v610 = vrot.slane %v435, 1
        %v611 = vrot.slane %v436, 1
        %v612 = vsel %vm570, %v610, %v611
        %v613 = vrot.slane %v437, 1
        %v614 = vrot.slane %v438, 1
        %v615 = vsel %vm570, %v613, %v614
        %v616 = vrot.slane %v439, 1
        %v617 = vrot.slane %v440, 1
        %v618 = vsel %vm570, %v616, %v617
        %v651 = vsel %vm570, %v572, 0.0
        %v652 = vsel %vm570, %v575, 0.0
        %v653 = vsel %vm570, %v578, 0.0
        %v654 = vsel %vm570, %v581, 0.0
        %v655 = vsel %vm570, %v584, 0.0
        %v656 = vsel %vm570, %v587, 0.0
        %v657 = vsel %vm570, %v590, 0.0
        %v658 = vsel %vm570, %v593, 0.0
        %v659 = vsel %vm570, %v596, 0.0
        %v660 = vsel %vm570, %v599, 0.0
        %v661 = vsel %vm570, %v602, 0.0
        %v662 = vsel %vm570, %v605, 0.0
        %v663 = vsel %vm570, %v608, 0.0
        %v664 = vsel %vm570, %v611, 0.0
        %v665 = vsel %vm570, %v614, 0.0
        %v666 = vsel %vm570, %v617, 0.0
        %667 = vst [vmem:[#allocation2] sm:$0xff] 0
        %668 = vst [vmem:[#allocation2 + $0x8] sm:$0xff] 0
        %669 = vst [vmem:[#allocation2 + $0x10] sm:$0xff] 0
        %670 = vst [vmem:[#allocation2 + $0x198] sm:$0xff] 0
        %671 = vst [vmem:[#allocation2 + $0x1a0] sm:$0xff] 0
        %672 = vst [vmem:[#allocation2 + $0x1a8] sm:$0xff] 0
        %v673 = vpack.c.bf16 %v476, %v554
        %v674 = vpack.c.bf16 %v479, %v555
        %v675 = vpack.c.bf16 %v482, %v556
        %v676 = vpack.c.bf16 %v485, %v557
        %v677 = vpack.c.bf16 %v488, %v558
        %v678 = vpack.c.bf16 %v491, %v559
        %v679 = vpack.c.bf16 %v494, %v560
        %v680 = vpack.c.bf16 %v497, %v561
        %v681 = vpack.c.bf16 %v500, %v562
        %v682 = vpack.c.bf16 %v503, %v563
        %v683 = vpack.c.bf16 %v506, %v564
        %v684 = vpack.c.bf16 %v509, %v565
        %v685 = vpack.c.bf16 %v512, %v566
        %v686 = vpack.c.bf16 %v515, %v567
        %v687 = vpack.c.bf16 %v518, %v568
        %v688 = vpack.c.bf16 %v521, %v569
        %689 = vst [vmem:[#allocation2 + $0x18] sm:$0xff] %v673
        %690 = vst [vmem:[#allocation2 + $0x30] sm:$0xff] %v674
        %691 = vst [vmem:[#allocation2 + $0x48] sm:$0xff] %v675
        %692 = vst [vmem:[#allocation2 + $0x60] sm:$0xff] %v676
        %693 = vst [vmem:[#allocation2 + $0x78] sm:$0xff] %v677
        %694 = vst [vmem:[#allocation2 + $0x90] sm:$0xff] %v678
        %695 = vst [vmem:[#allocation2 + $0xa8] sm:$0xff] %v679
        %696 = vst [vmem:[#allocation2 + $0xc0] sm:$0xff] %v680
        %697 = vst [vmem:[#allocation2 + $0xd8] sm:$0xff] %v681
        %698 = vst [vmem:[#allocation2 + $0xf0] sm:$0xff] %v682
        %699 = vst [vmem:[#allocation2 + $0x108] sm:$0xff] %v683
        %700 = vst [vmem:[#allocation2 + $0x120] sm:$0xff] %v684
        %701 = vst [vmem:[#allocation2 + $0x138] sm:$0xff] %v685
        %702 = vst [vmem:[#allocation2 + $0x150] sm:$0xff] %v686
        %703 = vst [vmem:[#allocation2 + $0x168] sm:$0xff] %v687
        %704 = vst [vmem:[#allocation2 + $0x180] sm:$0xff] %v688
        %v705 = vpack.c.bf16 %v410, %v409
        %v706 = vpack.c.bf16 %v412, %v411
        %v707 = vpack.c.bf16 %v414, %v413
        %v708 = vpack.c.bf16 %v416, %v415
        %v709 = vpack.c.bf16 %v418, %v417
        %v710 = vpack.c.bf16 %v420, %v419
        %v711 = vpack.c.bf16 %v422, %v421
        %v712 = vpack.c.bf16 %v424, %v423
        %v713 = vpack.c.bf16 %v426, %v425
        %v714 = vpack.c.bf16 %v428, %v427
        %v715 = vpack.c.bf16 %v430, %v429
        %v716 = vpack.c.bf16 %v432, %v431
        %v717 = vpack.c.bf16 %v434, %v433
        %v718 = vpack.c.bf16 %v436, %v435
        %v719 = vpack.c.bf16 %v438, %v437
        %v720 = vpack.c.bf16 %v440, %v439
        %721 = vst [vmem:[#allocation2 + $0x20] sm:$0xff] %v705
        %722 = vst [vmem:[#allocation2 + $0x38] sm:$0xff] %v706
        %723 = vst [vmem:[#allocation2 + $0x50] sm:$0xff] %v707
        %724 = vst [vmem:[#allocation2 + $0x68] sm:$0xff] %v708
        %725 = vst [vmem:[#allocation2 + $0x80] sm:$0xff] %v709
        %726 = vst [vmem:[#allocation2 + $0x98] sm:$0xff] %v710
        %727 = vst [vmem:[#allocation2 + $0xb0] sm:$0xff] %v711
        %728 = vst [vmem:[#allocation2 + $0xc8] sm:$0xff] %v712
        %729 = vst [vmem:[#allocation2 + $0xe0] sm:$0xff] %v713
        %730 = vst [vmem:[#allocation2 + $0xf8] sm:$0xff] %v714
        %731 = vst [vmem:[#allocation2 + $0x110] sm:$0xff] %v715
        %732 = vst [vmem:[#allocation2 + $0x128] sm:$0xff] %v716
        %733 = vst [vmem:[#allocation2 + $0x140] sm:$0xff] %v717
        %734 = vst [vmem:[#allocation2 + $0x158] sm:$0xff] %v718
        %735 = vst [vmem:[#allocation2 + $0x170] sm:$0xff] %v719
        %736 = vst [vmem:[#allocation2 + $0x188] sm:$0xff] %v720
        %v737 = vpack.c.bf16 %v651, %v573
        %v738 = vpack.c.bf16 %v652, %v576
        %v739 = vpack.c.bf16 %v653, %v579
        %v740 = vpack.c.bf16 %v654, %v582
        %v741 = vpack.c.bf16 %v655, %v585
        %v742 = vpack.c.bf16 %v656, %v588
        %v743 = vpack.c.bf16 %v657, %v591
        %v744 = vpack.c.bf16 %v658, %v594
        %v745 = vpack.c.bf16 %v659, %v597
        %v746 = vpack.c.bf16 %v660, %v600
        %v747 = vpack.c.bf16 %v661, %v603
        %v748 = vpack.c.bf16 %v662, %v606
        %v749 = vpack.c.bf16 %v663, %v609
        %v750 = vpack.c.bf16 %v664, %v612
        %v751 = vpack.c.bf16 %v665, %v615
        %v752 = vpack.c.bf16 %v666, %v618
        %753 = vst [vmem:[#allocation2 + $0x28] sm:$0xff] %v737
        %754 = vst [vmem:[#allocation2 + $0x40] sm:$0xff] %v738
        %755 = vst [vmem:[#allocation2 + $0x58] sm:$0xff] %v739
        %756 = vst [vmem:[#allocation2 + $0x70] sm:$0xff] %v740
        %757 = vst [vmem:[#allocation2 + $0x88] sm:$0xff] %v741
        %758 = vst [vmem:[#allocation2 + $0xa0] sm:$0xff] %v742
        %759 = vst [vmem:[#allocation2 + $0xb8] sm:$0xff] %v743
        %760 = vst [vmem:[#allocation2 + $0xd0] sm:$0xff] %v744
        %761 = vst [vmem:[#allocation2 + $0xe8] sm:$0xff] %v745
        %762 = vst [vmem:[#allocation2 + $0x100] sm:$0xff] %v746
        %763 = vst [vmem:[#allocation2 + $0x118] sm:$0xff] %v747
        %764 = vst [vmem:[#allocation2 + $0x130] sm:$0xff] %v748
        %765 = vst [vmem:[#allocation2 + $0x148] sm:$0xff] %v749
        %766 = vst [vmem:[#allocation2 + $0x160] sm:$0xff] %v750
        %767 = vst [vmem:[#allocation2 + $0x178] sm:$0xff] %v751
        %768 = vst [vmem:[#allocation2 + $0x190] sm:$0xff] %v752
        %v769 = vld [vmem:[#allocation2] sm:$0xff]
        %v770 = vld [vmem:[#allocation2 + $0x8] sm:$0xff]
        %v771 = vld [vmem:[#allocation2 + $0x10] sm:$0xff]
        %v772 = vld [vmem:[#allocation2 + $0x18] sm:$0xff]
        %v773 = vld [vmem:[#allocation2 + $0x20] sm:$0xff]
        %v774 = vld [vmem:[#allocation2 + $0x28] sm:$0xff]
        %v775 = vld [vmem:[#allocation2 + $0x30] sm:$0xff]
        %v776 = vld [vmem:[#allocation2 + $0x38] sm:$0xff]
        %v777 = vld [vmem:[#allocation2 + $0x40] sm:$0xff]
        %v778 = vld [vmem:[#allocation2 + $0x48] sm:$0xff]
        %v779 = vld [vmem:[#allocation2 + $0x50] sm:$0xff]
        %v780 = vld [vmem:[#allocation2 + $0x58] sm:$0xff]
        %v781 = vld [vmem:[#allocation2 + $0x60] sm:$0xff]
        %v782 = vld [vmem:[#allocation2 + $0x68] sm:$0xff]
        %v783 = vld [vmem:[#allocation2 + $0x70] sm:$0xff]
        %v784 = vld [vmem:[#allocation2 + $0x78] sm:$0xff]
        %v785 = vld [vmem:[#allocation2 + $0x80] sm:$0xff]
        %v786 = vld [vmem:[#allocation2 + $0x88] sm:$0xff]
        %v787 = vld [vmem:[#allocation2 + $0x90] sm:$0xff]
        %v788 = vld [vmem:[#allocation2 + $0x98] sm:$0xff]
        %v789 = vld [vmem:[#allocation2 + $0xa0] sm:$0xff]
        %v790 = vld [vmem:[#allocation2 + $0xa8] sm:$0xff]
        %v791 = vld [vmem:[#allocation2 + $0xb0] sm:$0xff]
        %v792 = vld [vmem:[#allocation2 + $0xb8] sm:$0xff]
        %v793 = vld [vmem:[#allocation2 + $0xc0] sm:$0xff]
        %v794 = vld [vmem:[#allocation2 + $0xc8] sm:$0xff]
        %v795 = vld [vmem:[#allocation2 + $0xd0] sm:$0xff]
        %v796 = vld [vmem:[#allocation2 + $0xd8] sm:$0xff]
        %v797 = vld [vmem:[#allocation2 + $0xe0] sm:$0xff]
        %v798 = vld [vmem:[#allocation2 + $0xe8] sm:$0xff]
        %v799 = vld [vmem:[#allocation2 + $0xf0] sm:$0xff]
        %v800 = vld [vmem:[#allocation2 + $0xf8] sm:$0xff]
        %v801 = vld [vmem:[#allocation2 + $0x100] sm:$0xff]
        %v802 = vld [vmem:[#allocation2 + $0x108] sm:$0xff]
        %v803 = vld [vmem:[#allocation2 + $0x110] sm:$0xff]
        %v804 = vld [vmem:[#allocation2 + $0x118] sm:$0xff]
        %v805 = vld [vmem:[#allocation2 + $0x120] sm:$0xff]
        %v806 = vld [vmem:[#allocation2 + $0x128] sm:$0xff]
        %v807 = vld [vmem:[#allocation2 + $0x130] sm:$0xff]
        %v808 = vld [vmem:[#allocation2 + $0x138] sm:$0xff]
        %v809 = vld [vmem:[#allocation2 + $0x140] sm:$0xff]
        %v810 = vld [vmem:[#allocation2 + $0x148] sm:$0xff]
        %v811 = vld [vmem:[#allocation2 + $0x150] sm:$0xff]
        %v812 = vld [vmem:[#allocation2 + $0x158] sm:$0xff]
        %v813 = vld [vmem:[#allocation2 + $0x160] sm:$0xff]
        %v814 = vld [vmem:[#allocation2 + $0x168] sm:$0xff]
        %v815 = vld [vmem:[#allocation2 + $0x170] sm:$0xff]
        %v816 = vld [vmem:[#allocation2 + $0x178] sm:$0xff]
        %v817 = vld [vmem:[%s3] sm:$0xf]
        %v818 = vld [vmem:[%s3 + $0x4] sm:$0xf]
        %v819 = vld [vmem:[%s3 + $0x8] sm:$0xf]
        %v820 = vld [vmem:[%s3 + $0xc] sm:$0xf]
        %v821 = vld [vmem:[%s3 + $0x10] sm:$0xf]
        %v822 = vld [vmem:[%s3 + $0x14] sm:$0xf]
        %v823 = vld [vmem:[%s3 + $0x18] sm:$0xf]
        %v824 = vld [vmem:[%s3 + $0x1c] sm:$0xf]
        %v825 = vld [vmem:[%s3 + $0x20] sm:$0xf]
        %v826 = vld [vmem:[%s3 + $0x24] sm:$0xf]
        %v827 = vld [vmem:[%s3 + $0x28] sm:$0xf]
        %v828 = vld [vmem:[%s3 + $0x2c] sm:$0xf]
        %v829 = vld [vmem:[%s3 + $0x30] sm:$0xf]
        %v830 = vld [vmem:[%s3 + $0x34] sm:$0xf]
        %v831 = vld [vmem:[%s3 + $0x38] sm:$0xf]
        %v832 = vld [vmem:[%s3 + $0x3c] sm:$0xf]
        %v833 = vld [vmem:[%s3 + $0x40] sm:$0xf]
        %v834 = vld [vmem:[%s3 + $0x44] sm:$0xf]
        %v835 = vld [vmem:[%s3 + $0x48] sm:$0xf]
        %v836 = vld [vmem:[%s3 + $0x4c] sm:$0xf]
        %v837 = vld [vmem:[%s3 + $0x50] sm:$0xf]
        %v838 = vld [vmem:[%s3 + $0x54] sm:$0xf]
        %v839 = vld [vmem:[%s3 + $0x58] sm:$0xf]
        %v840 = vld [vmem:[%s3 + $0x5c] sm:$0xf]
        %v841 = vld [vmem:[%s3 + $0x60] sm:$0xf]
        %v842 = vld [vmem:[%s3 + $0x64] sm:$0xf]
        %v843 = vld [vmem:[%s3 + $0x68] sm:$0xf]
        %v844 = vld [vmem:[%s3 + $0x6c] sm:$0xf]
        %v845 = vld [vmem:[%s3 + $0x70] sm:$0xf]
        %v846 = vld [vmem:[%s3 + $0x74] sm:$0xf]
        %v847 = vld [vmem:[%s3 + $0x78] sm:$0xf]
        %v848 = vld [vmem:[%s3 + $0x7c] sm:$0xf]
        %v849 = vld [vmem:[%s3 + $0x80] sm:$0xf]
        %v850 = vld [vmem:[%s3 + $0x84] sm:$0xf]
        %v851 = vld [vmem:[%s3 + $0x88] sm:$0xf]
        %v852 = vld [vmem:[%s3 + $0x8c] sm:$0xf]
        %v853 = vld [vmem:[%s3 + $0x90] sm:$0xf]
        %v854 = vld [vmem:[%s3 + $0x94] sm:$0xf]
        %v855 = vld [vmem:[%s3 + $0x98] sm:$0xf]
        %v856 = vld [vmem:[%s3 + $0x9c] sm:$0xf]
        %v857 = vld [vmem:[%s3 + $0xa0] sm:$0xf]
        %v858 = vld [vmem:[%s3 + $0xa4] sm:$0xf]
        %v859 = vld [vmem:[%s3 + $0xa8] sm:$0xf]
        %v860 = vld [vmem:[%s3 + $0xac] sm:$0xf]
        %v861 = vld [vmem:[%s3 + $0xb0] sm:$0xf]
        %v862 = vld [vmem:[%s3 + $0xb4] sm:$0xf]
        %v863 = vld [vmem:[%s3 + $0xb8] sm:$0xf]
        %v864 = vld [vmem:[%s3 + $0xbc] sm:$0xf]
        %v865 = vld [vmem:[#allocation2 + $0x180] sm:$0xff]
        %v866 = vld [vmem:[#allocation2 + $0x188] sm:$0xff]
        %v867 = vld [vmem:[#allocation2 + $0x190] sm:$0xff]
        %s868 = scalar_lea.vmem %s3, 192
        %v869 = vld [vmem:[%s868] sm:$0xf]
        %v870 = vld [vmem:[%s868 + $0x4] sm:$0xf]
        %v871 = vld [vmem:[%s868 + $0x8] sm:$0xf]
        %v872 = vld [vmem:[%s868 + $0xc] sm:$0xf]
        %v873 = vld [vmem:[%s868 + $0x10] sm:$0xf]
        %v874 = vld [vmem:[%s868 + $0x14] sm:$0xf]
        %v875 = vld [vmem:[%s868 + $0x18] sm:$0xf]
        %v876 = vld [vmem:[%s868 + $0x1c] sm:$0xf]
        %v877 = vld [vmem:[%s868 + $0x20] sm:$0xf]
        %v878 = vld [vmem:[%s868 + $0x24] sm:$0xf]
        %v879 = vld [vmem:[%s868 + $0x28] sm:$0xf]
        %v880 = vld [vmem:[%s868 + $0x2c] sm:$0xf]
        %v881 = vld [vmem:[%s868 + $0x30] sm:$0xf]
        %v882 = vld [vmem:[%s868 + $0x34] sm:$0xf]
        %v883 = vld [vmem:[%s868 + $0x38] sm:$0xf]
        %v884 = vld [vmem:[%s868 + $0x3c] sm:$0xf]
        %v885 = vld [vmem:[%s868 + $0x40] sm:$0xf]
        %v886 = vld [vmem:[%s868 + $0x44] sm:$0xf]
        %v887 = vld [vmem:[%s868 + $0x48] sm:$0xf]
        %v888 = vld [vmem:[%s868 + $0x4c] sm:$0xf]
        %v889 = vld [vmem:[%s868 + $0x50] sm:$0xf]
        %v890 = vld [vmem:[%s868 + $0x54] sm:$0xf]
        %v891 = vld [vmem:[%s868 + $0x58] sm:$0xf]
        %v892 = vld [vmem:[%s868 + $0x5c] sm:$0xf]
        %v893 = vld [vmem:[%s868 + $0x60] sm:$0xf]
        %v894 = vld [vmem:[%s868 + $0x64] sm:$0xf]
        %v895 = vld [vmem:[%s868 + $0x68] sm:$0xf]
        %v896 = vld [vmem:[%s868 + $0x6c] sm:$0xf]
        %v897 = vld [vmem:[%s868 + $0x70] sm:$0xf]
        %v898 = vld [vmem:[%s868 + $0x74] sm:$0xf]
        %v899 = vld [vmem:[%s868 + $0x78] sm:$0xf]
        %v900 = vld [vmem:[%s868 + $0x7c] sm:$0xf]
        %v901 = vld [vmem:[%s868 + $0x80] sm:$0xf]
        %v902 = vld [vmem:[%s868 + $0x84] sm:$0xf]
        %v903 = vld [vmem:[%s868 + $0x88] sm:$0xf]
        %v904 = vld [vmem:[%s868 + $0x8c] sm:$0xf]
        %v905 = vld [vmem:[%s868 + $0x90] sm:$0xf]
        %v906 = vld [vmem:[%s868 + $0x94] sm:$0xf]
        %v907 = vld [vmem:[%s868 + $0x98] sm:$0xf]
        %v908 = vld [vmem:[%s868 + $0x9c] sm:$0xf]
        %v909 = vld [vmem:[%s868 + $0xa0] sm:$0xf]
        %v910 = vld [vmem:[%s868 + $0xa4] sm:$0xf]
        %v911 = vld [vmem:[%s868 + $0xa8] sm:$0xf]
        %v912 = vld [vmem:[%s868 + $0xac] sm:$0xf]
        %v913 = vld [vmem:[%s868 + $0xb0] sm:$0xf]
        %v914 = vld [vmem:[%s868 + $0xb4] sm:$0xf]
        %v915 = vld [vmem:[%s868 + $0xb8] sm:$0xf]
        %v916 = vld [vmem:[%s868 + $0xbc] sm:$0xf]
        %v965 = vunpack.c.l.b16 %v869
        %v966 = vunpack.c.l.b16 %v870
        %v967 = vunpack.c.l.b16 %v871
        %v968 = vunpack.c.l.b16 %v872
        %v969 = vunpack.c.l.b16 %v873
        %v970 = vunpack.c.l.b16 %v874
        %v971 = vunpack.c.l.b16 %v875
        %v972 = vunpack.c.l.b16 %v876
        %v973 = vunpack.c.l.b16 %v877
        %v974 = vunpack.c.l.b16 %v878
        %v975 = vunpack.c.l.b16 %v879
        %v976 = vunpack.c.l.b16 %v880
        %v977 = vunpack.c.l.b16 %v881
        %v978 = vunpack.c.l.b16 %v882
        %v979 = vunpack.c.l.b16 %v883
        %v980 = vunpack.c.l.b16 %v884
        %v981 = vunpack.c.l.b16 %v885
        %v982 = vunpack.c.l.b16 %v886
        %v983 = vunpack.c.l.b16 %v887
        %v984 = vunpack.c.l.b16 %v888
        %v985 = vunpack.c.l.b16 %v889
        %v986 = vunpack.c.l.b16 %v890
        %v987 = vunpack.c.l.b16 %v891
        %v988 = vunpack.c.l.b16 %v892
        %v989 = vunpack.c.l.b16 %v893
        %v990 = vunpack.c.l.b16 %v894
        %v991 = vunpack.c.l.b16 %v895
        %v992 = vunpack.c.l.b16 %v896
        %v993 = vunpack.c.l.b16 %v897
        %v994 = vunpack.c.l.b16 %v898
        %v995 = vunpack.c.l.b16 %v899
        %v996 = vunpack.c.l.b16 %v900
        %v997 = vunpack.c.l.b16 %v901
        %v998 = vunpack.c.l.b16 %v902
        %v999 = vunpack.c.l.b16 %v903
        %v1000 = vunpack.c.l.b16 %v904
        %v1001 = vunpack.c.l.b16 %v905
        %v1002 = vunpack.c.l.b16 %v906
        %v1003 = vunpack.c.l.b16 %v907
        %v1004 = vunpack.c.l.b16 %v908
        %v1005 = vunpack.c.l.b16 %v909
        %v1006 = vunpack.c.l.b16 %v910
        %v1007 = vunpack.c.l.b16 %v911
        %v1008 = vunpack.c.l.b16 %v912
        %v1009 = vunpack.c.l.b16 %v913
        %v1010 = vunpack.c.l.b16 %v914
        %v1011 = vunpack.c.l.b16 %v915
        %v1012 = vunpack.c.l.b16 %v916
        %v1013 = vpack.c.b16 %v966, %v965
        %v1014 = vpack.c.b16 %v968, %v967
        %v1015 = vpack.c.b16 %v970, %v969
        %v1016 = vpack.c.b16 %v972, %v971
        %v1017 = vpack.c.b16 %v974, %v973
        %v1018 = vpack.c.b16 %v976, %v975
        %v1019 = vpack.c.b16 %v978, %v977
        %v1020 = vpack.c.b16 %v980, %v979
        %v1021 = vpack.c.b16 %v982, %v981
        %v1022 = vpack.c.b16 %v984, %v983
        %v1023 = vpack.c.b16 %v986, %v985
        %v1024 = vpack.c.b16 %v988, %v987
        %v1025 = vpack.c.b16 %v990, %v989
        %v1026 = vpack.c.b16 %v992, %v991
        %v1027 = vpack.c.b16 %v994, %v993
        %v1028 = vpack.c.b16 %v996, %v995
        %v1029 = vpack.c.b16 %v998, %v997
        %v1030 = vpack.c.b16 %v1000, %v999
        %v1031 = vpack.c.b16 %v1002, %v1001
        %v1032 = vpack.c.b16 %v1004, %v1003
        %v1033 = vpack.c.b16 %v1006, %v1005
        %v1034 = vpack.c.b16 %v1008, %v1007
        %v1035 = vpack.c.b16 %v1010, %v1009
        %v1036 = vpack.c.b16 %v1012, %v1011
        %1061 = vmatprep.subr.bf16.mxu0 0
        %1062 = vmatpush1.bf16.msra.mxu0 %v1013
        %1063 = vmatprep.subr.bf16.mxu0 0
        %1064 = vmatpush1.bf16.msra.mxu0 %v1014
        %1065 = vmatprep.subr.bf16.mxu0 0
        %1066 = vmatpush1.bf16.msra.mxu0 %v1015
        %1067 = vmatprep.subr.bf16.mxu0 0
        %1068 = vmatpush1.bf16.msra.mxu0 %v1016
        %1069 = vmatprep.subr.bf16.mxu0 0
        %1070 = vmatpush1.bf16.msra.mxu0 %v1017
        %1071 = vmatprep.subr.bf16.mxu0 0
        %1072 = vmatpush1.bf16.msra.mxu0 %v1018
        %1073 = vmatprep.subr.bf16.mxu0 0
        %1074 = vmatpush1.bf16.msra.mxu0 %v1019
        %1075 = vmatprep.subr.bf16.mxu0 0
        %1076 = vmatpush1.bf16.msra.mxu0 %v1020
        %1077 = vmatprep.subr.bf16.mxu0 0
        %1078 = vmatpush1.bf16.msra.mxu0 %v1021
        %1079 = vmatprep.subr.bf16.mxu0 0
        %1080 = vmatpush1.bf16.msra.mxu0 %v1022
        %1081 = vmatprep.subr.bf16.mxu0 0
        %1082 = vmatpush1.bf16.msra.mxu0 %v1023
        %1083 = vmatprep.subr.bf16.mxu0 0
        %1084 = vmatpush1.bf16.msra.mxu0 %v1024
        %1085 = vmatprep.subr.bf16.mxu0 0
        %1086 = vmatpush1.bf16.msra.mxu0 %v1025
        %1087 = vmatprep.subr.bf16.mxu0 0
        %1088 = vmatpush1.bf16.msra.mxu0 %v1026
        %1089 = vmatprep.subr.bf16.mxu0 0
        %1090 = vmatpush1.bf16.msra.mxu0 %v1027
        %1091 = vmatprep.subr.bf16.mxu0 0
        %1092 = vmatpush1.bf16.msra.mxu0 %v1028
        %1093 = vmatprep.mubr.bf16.mxu0 %v773
        %1094 = vmatmul.mubr.bf16.gmra.mrb[0].mxu0 %v772
        %v1095 = vpop.f32.mrb[0].mxu0
        %v1096 = vadd.f32 0.0, %v1095
        %v1097 = vpop.f32.mrb[0].mxu0
        %v1098 = vpop.f32.mrb[0].mxu0
        %v1099 = vadd.f32 0.0, %v1098
        %v1100 = vpop.f32.mrb[0].mxu0
        %1101 = vmatprep.mubr.bf16.mxu0 %v776
        %1102 = vmatmul.mubr.bf16.gmra.mrb[0].mxu0 %v775
        %v1103 = vpop.f32.mrb[0].mxu0
        %v1104 = vadd.f32 0.0, %v1103
        %v1105 = vpop.f32.mrb[0].mxu0
        %v1106 = vpop.f32.mrb[0].mxu0
        %v1107 = vadd.f32 0.0, %v1106
        %v1108 = vpop.f32.mrb[0].mxu0
        %1109 = vmatprep.mubr.bf16.mxu0 %v779
        %1110 = vmatmul.mubr.bf16.gmra.mrb[0].mxu0 %v778
        %v1111 = vpop.f32.mrb[0].mxu0
        %v1112 = vadd.f32 0.0, %v1111
        %v1113 = vpop.f32.mrb[0].mxu0
        %v1114 = vpop.f32.mrb[0].mxu0
        %v1115 = vadd.f32 0.0, %v1114
        %v1116 = vpop.f32.mrb[0].mxu0
        %1117 = vmatprep.mubr.bf16.mxu0 %v782
        %1118 = vmatmul.mubr.bf16.gmra.mrb[0].mxu0 %v781
        %v1119 = vpop.f32.mrb[0].mxu0
        %v1120 = vadd.f32 0.0, %v1119
        %v1121 = vpop.f32.mrb[0].mxu0
        %v1122 = vpop.f32.mrb[0].mxu0
        %v1123 = vadd.f32 0.0, %v1122
        %v1124 = vpop.f32.mrb[0].mxu0
        %1125 = vmatprep.mubr.bf16.mxu0 %v785
        %1126 = vmatmul.mubr.bf16.gmra.mrb[0].mxu0 %v784
        %v1127 = vpop.f32.mrb[0].mxu0
        %v1128 = vadd.f32 0.0, %v1127
        %v1129 = vpop.f32.mrb[0].mxu0
        %v1130 = vpop.f32.mrb[0].mxu0
        %v1131 = vadd.f32 0.0, %v1130
        %v1132 = vpop.f32.mrb[0].mxu0
        %1133 = vmatprep.mubr.bf16.mxu0 %v788
        %1134 = vmatmul.mubr.bf16.gmra.mrb[0].mxu0 %v787
        %v1135 = vpop.f32.mrb[0].mxu0
        %v1136 = vadd.f32 0.0, %v1135
        %v1137 = vpop.f32.mrb[0].mxu0
        %v1138 = vpop.f32.mrb[0].mxu0
        %v1139 = vadd.f32 0.0, %v1138
        %v1140 = vpop.f32.mrb[0].mxu0
        %1141 = vmatprep.mubr.bf16.mxu0 %v791
        %1142 = vmatmul.mubr.bf16.gmra.mrb[0].mxu0 %v790
        %v1143 = vpop.f32.mrb[0].mxu0
        %v1144 = vadd.f32 0.0, %v1143
        %v1145 = vpop.f32.mrb[0].mxu0
        %v1146 = vpop.f32.mrb[0].mxu0
        %v1147 = vadd.f32 0.0, %v1146
        %v1148 = vpop.f32.mrb[0].mxu0
        %1149 = vmatprep.mubr.bf16.mxu0 %v794
        %1150 = vmatmul.mubr.bf16.gmra.mrb[0].mxu0 %v793
        %v1151 = vpop.f32.mrb[0].mxu0
        %v1152 = vadd.f32 0.0, %v1151
        %v1153 = vpop.f32.mrb[0].mxu0
        %v1154 = vpop.f32.mrb[0].mxu0
        %v1155 = vadd.f32 0.0, %v1154
        %v1156 = vpop.f32.mrb[0].mxu0
        %1157 = vmatprep.mubr.bf16.mxu0 %v797
        %1158 = vmatmul.mubr.bf16.gmra.mrb[0].mxu0 %v796
        %v1159 = vpop.f32.mrb[0].mxu0
        %v1160 = vadd.f32 0.0, %v1159
        %v1161 = vpop.f32.mrb[0].mxu0
        %v1162 = vpop.f32.mrb[0].mxu0
        %v1163 = vadd.f32 0.0, %v1162
        %v1164 = vpop.f32.mrb[0].mxu0
        %1165 = vmatprep.mubr.bf16.mxu0 %v800
        %1166 = vmatmul.mubr.bf16.gmra.mrb[0].mxu0 %v799
        %v1167 = vpop.f32.mrb[0].mxu0
        %v1168 = vadd.f32 0.0, %v1167
        %v1169 = vpop.f32.mrb[0].mxu0
        %v1170 = vpop.f32.mrb[0].mxu0
        %v1171 = vadd.f32 0.0, %v1170
        %v1172 = vpop.f32.mrb[0].mxu0
        %1173 = vmatprep.mubr.bf16.mxu0 %v803
        %1174 = vmatmul.mubr.bf16.gmra.mrb[0].mxu0 %v802
        %v1175 = vpop.f32.mrb[0].mxu0
        %v1176 = vadd.f32 0.0, %v1175
        %v1177 = vpop.f32.mrb[0].mxu0
        %v1178 = vpop.f32.mrb[0].mxu0
        %v1179 = vadd.f32 0.0, %v1178
        %v1180 = vpop.f32.mrb[0].mxu0
        %1181 = vmatprep.mubr.bf16.mxu0 %v806
        %1182 = vmatmul.mubr.bf16.gmra.mrb[0].mxu0 %v805
        %v1183 = vpop.f32.mrb[0].mxu0
        %v1184 = vadd.f32 0.0, %v1183
        %v1185 = vpop.f32.mrb[0].mxu0
        %v1186 = vpop.f32.mrb[0].mxu0
        %v1187 = vadd.f32 0.0, %v1186
        %v1188 = vpop.f32.mrb[0].mxu0
        %1189 = vmatprep.mubr.bf16.mxu0 %v809
        %1190 = vmatmul.mubr.bf16.gmra.mrb[0].mxu0 %v808
        %v1191 = vpop.f32.mrb[0].mxu0
        %v1192 = vadd.f32 0.0, %v1191
        %v1193 = vpop.f32.mrb[0].mxu0
        %v1194 = vpop.f32.mrb[0].mxu0
        %v1195 = vadd.f32 0.0, %v1194
        %v1196 = vpop.f32.mrb[0].mxu0
        %1197 = vmatprep.mubr.bf16.mxu0 %v812
        %1198 = vmatmul.mubr.bf16.gmra.mrb[0].mxu0 %v811
        %v1199 = vpop.f32.mrb[0].mxu0
        %v1200 = vadd.f32 0.0, %v1199
        %v1201 = vpop.f32.mrb[0].mxu0
        %v1202 = vpop.f32.mrb[0].mxu0
        %v1203 = vadd.f32 0.0, %v1202
        %v1204 = vpop.f32.mrb[0].mxu0
        %1205 = vmatprep.mubr.bf16.mxu0 %v815
        %1206 = vmatmul.mubr.bf16.gmra.mrb[0].mxu0 %v814
        %v1207 = vpop.f32.mrb[0].mxu0
        %v1208 = vadd.f32 0.0, %v1207
        %v1209 = vpop.f32.mrb[0].mxu0
        %v1210 = vpop.f32.mrb[0].mxu0
        %v1211 = vadd.f32 0.0, %v1210
        %v1212 = vpop.f32.mrb[0].mxu0
        %1213 = vmatprep.mubr.bf16.mxu0 %v866
        %1214 = vmatmul.mubr.bf16.gmra.mrb[0].mxu0 %v865
        %v1215 = vpop.f32.mrb[0].mxu0
        %v1216 = vadd.f32 0.0, %v1215
        %v1217 = vpop.f32.mrb[0].mxu0
        %v1218 = vpop.f32.mrb[0].mxu0
        %v1219 = vadd.f32 0.0, %v1218
        %v1220 = vpop.f32.mrb[0].mxu0
        %1221 = vdwg.mxu0
        %1222 = vmatprep.subr.bf16.mxu0 0
        %1223 = vmatpush1.bf16.msra.mxu0 %v1029
        %1224 = vmatprep.subr.bf16.mxu0 0
        %1225 = vmatpush1.bf16.msra.mxu0 %v1030
        %1226 = vmatprep.subr.bf16.mxu0 0
        %1227 = vmatpush1.bf16.msra.mxu0 %v1031
        %1228 = vmatprep.subr.bf16.mxu0 0
        %1229 = vmatpush1.bf16.msra.mxu0 %v1032
        %1230 = vmatprep.subr.bf16.mxu0 0
        %1231 = vmatpush1.bf16.msra.mxu0 %v1033
        %1232 = vmatprep.subr.bf16.mxu0 0
        %1233 = vmatpush1.bf16.msra.mxu0 %v1034
        %1234 = vmatprep.subr.bf16.mxu0 0
        %1235 = vmatpush1.bf16.msra.mxu0 %v1035
        %1236 = vmatprep.subr.bf16.mxu0 0
        %1237 = vmatpush1.bf16.msra.mxu0 %v1036
        %1238 = vmatprep.subr.bf16.mxu0 0
        %1239 = vmatpush1.bf16.msra.mxu0 0
        %1240 = vmatprep.subr.bf16.mxu0 0
        %1241 = vmatpush1.bf16.msra.mxu0 0
        %1242 = vmatprep.subr.bf16.mxu0 0
        %1243 = vmatpush1.bf16.msra.mxu0 0
        %1244 = vmatprep.subr.bf16.mxu0 0
        %1245 = vmatpush1.bf16.msra.mxu0 0
        %1246 = vmatprep.subr.bf16.mxu0 0
        %1247 = vmatpush1.bf16.msra.mxu0 0
        %1248 = vmatprep.subr.bf16.mxu0 0
        %1249 = vmatpush1.bf16.msra.mxu0 0
        %1250 = vmatprep.subr.bf16.mxu0 0
        %1251 = vmatpush1.bf16.msra.mxu0 0
        %1252 = vmatprep.subr.bf16.mxu0 0
        %1253 = vmatpush1.bf16.msra.mxu0 0
        %1254 = vmatprep.mubr.bf16.mxu0 0
        %1255 = vmatmul.mubr.bf16.gmra.mrb[0].mxu0 %v774
        %v1256 = vpop.f32.mrb[0].mxu0
        %v1257 = vadd.f32 %v1096, %v1256
        %v1258 = vpop.f32.mrb[0].mxu0
        %v1259 = vpop.f32.mrb[0].mxu0
        %v1260 = vadd.f32 %v1099, %v1259
        %v1261 = vpop.f32.mrb[0].mxu0
        %1262 = vmatprep.mubr.bf16.mxu0 0
        %1263 = vmatmul.mubr.bf16.gmra.mrb[0].mxu0 %v777
        %v1264 = vpop.f32.mrb[0].mxu0
        %v1265 = vadd.f32 %v1104, %v1264
        %v1266 = vpop.f32.mrb[0].mxu0
        %v1267 = vpop.f32.mrb[0].mxu0
        %v1268 = vadd.f32 %v1107, %v1267
        %v1269 = vpop.f32.mrb[0].mxu0
        %1270 = vmatprep.mubr.bf16.mxu0 0
        %1271 = vmatmul.mubr.bf16.gmra.mrb[0].mxu0 %v780
        %v1272 = vpop.f32.mrb[0].mxu0
        %v1273 = vadd.f32 %v1112, %v1272
        %v1274 = vpop.f32.mrb[0].mxu0
        %v1275 = vpop.f32.mrb[0].mxu0
        %v1276 = vadd.f32 %v1115, %v1275
        %v1277 = vpop.f32.mrb[0].mxu0
        %1278 = vmatprep.mubr.bf16.mxu0 0
        %1279 = vmatmul.mubr.bf16.gmra.mrb[0].mxu0 %v783
        %v1280 = vpop.f32.mrb[0].mxu0
        %v1281 = vadd.f32 %v1120, %v1280
        %v1282 = vpop.f32.mrb[0].mxu0
        %v1283 = vpop.f32.mrb[0].mxu0
        %v1284 = vadd.f32 %v1123, %v1283
        %v1285 = vpop.f32.mrb[0].mxu0
        %1286 = vmatprep.mubr.bf16.mxu0 0
        %1287 = vmatmul.mubr.bf16.gmra.mrb[0].mxu0 %v786
        %v1288 = vpop.f32.mrb[0].mxu0
        %v1289 = vadd.f32 %v1128, %v1288
        %v1290 = vpop.f32.mrb[0].mxu0
        %v1291 = vpop.f32.mrb[0].mxu0
        %v1292 = vadd.f32 %v1131, %v1291
        %v1293 = vpop.f32.mrb[0].mxu0
        %1294 = vmatprep.mubr.bf16.mxu0 0
        %1295 = vmatmul.mubr.bf16.gmra.mrb[0].mxu0 %v789
        %v1296 = vpop.f32.mrb[0].mxu0
        %v1297 = vadd.f32 %v1136, %v1296
        %v1298 = vpop.f32.mrb[0].mxu0
        %v1299 = vpop.f32.mrb[0].mxu0
        %v1300 = vadd.f32 %v1139, %v1299
        %v1301 = vpop.f32.mrb[0].mxu0
        %1302 = vmatprep.mubr.bf16.mxu0 0
        %1303 = vmatmul.mubr.bf16.gmra.mrb[0].mxu0 %v792
        %v1304 = vpop.f32.mrb[0].mxu0
        %v1305 = vadd.f32 %v1144, %v1304
        %v1306 = vpop.f32.mrb[0].mxu0
        %v1307 = vpop.f32.mrb[0].mxu0
        %v1308 = vadd.f32 %v1147, %v1307
        %v1309 = vpop.f32.mrb[0].mxu0
        %1310 = vmatprep.mubr.bf16.mxu0 0
        %1311 = vmatmul.mubr.bf16.gmra.mrb[0].mxu0 %v795
        %v1312 = vpop.f32.mrb[0].mxu0
        %v1313 = vadd.f32 %v1152, %v1312
        %v1314 = vpop.f32.mrb[0].mxu0
        %v1315 = vpop.f32.mrb[0].mxu0
        %v1316 = vadd.f32 %v1155, %v1315
        %v1317 = vpop.f32.mrb[0].mxu0
        %1318 = vmatprep.mubr.bf16.mxu0 0
        %1319 = vmatmul.mubr.bf16.gmra.mrb[0].mxu0 %v798
        %v1320 = vpop.f32.mrb[0].mxu0
        %v1321 = vadd.f32 %v1160, %v1320
        %v1322 = vpop.f32.mrb[0].mxu0
        %v1323 = vpop.f32.mrb[0].mxu0
        %v1324 = vadd.f32 %v1163, %v1323
        %v1325 = vpop.f32.mrb[0].mxu0
        %1326 = vmatprep.mubr.bf16.mxu0 0
        %1327 = vmatmul.mubr.bf16.gmra.mrb[0].mxu0 %v801
        %v1328 = vpop.f32.mrb[0].mxu0
        %v1329 = vadd.f32 %v1168, %v1328
        %v1330 = vpop.f32.mrb[0].mxu0
        %v1331 = vpop.f32.mrb[0].mxu0
        %v1332 = vadd.f32 %v1171, %v1331
        %v1333 = vpop.f32.mrb[0].mxu0
        %1334 = vmatprep.mubr.bf16.mxu0 0
        %1335 = vmatmul.mubr.bf16.gmra.mrb[0].mxu0 %v804
        %v1336 = vpop.f32.mrb[0].mxu0
        %v1337 = vadd.f32 %v1176, %v1336
        %v1338 = vpop.f32.mrb[0].mxu0
        %v1339 = vpop.f32.mrb[0].mxu0
        %v1340 = vadd.f32 %v1179, %v1339
        %v1341 = vpop.f32.mrb[0].mxu0
        %1342 = vmatprep.mubr.bf16.mxu0 0
        %1343 = vmatmul.mubr.bf16.gmra.mrb[0].mxu0 %v807
        %v1344 = vpop.f32.mrb[0].mxu0
        %v1345 = vadd.f32 %v1184, %v1344
        %v1346 = vpop.f32.mrb[0].mxu0
        %v1347 = vpop.f32.mrb[0].mxu0
        %v1348 = vadd.f32 %v1187, %v1347
        %v1349 = vpop.f32.mrb[0].mxu0
        %1350 = vmatprep.mubr.bf16.mxu0 0
        %1351 = vmatmul.mubr.bf16.gmra.mrb[0].mxu0 %v810
        %v1352 = vpop.f32.mrb[0].mxu0
        %v1353 = vadd.f32 %v1192, %v1352
        %v1354 = vpop.f32.mrb[0].mxu0
        %v1355 = vpop.f32.mrb[0].mxu0
        %v1356 = vadd.f32 %v1195, %v1355
        %v1357 = vpop.f32.mrb[0].mxu0
        %1358 = vmatprep.mubr.bf16.mxu0 0
        %1359 = vmatmul.mubr.bf16.gmra.mrb[0].mxu0 %v813
        %v1360 = vpop.f32.mrb[0].mxu0
        %v1361 = vadd.f32 %v1200, %v1360
        %v1362 = vpop.f32.mrb[0].mxu0
        %v1363 = vpop.f32.mrb[0].mxu0
        %v1364 = vadd.f32 %v1203, %v1363
        %v1365 = vpop.f32.mrb[0].mxu0
        %1366 = vmatprep.mubr.bf16.mxu0 0
        %1367 = vmatmul.mubr.bf16.gmra.mrb[0].mxu0 %v816
        %v1368 = vpop.f32.mrb[0].mxu0
        %v1369 = vadd.f32 %v1208, %v1368
        %v1370 = vpop.f32.mrb[0].mxu0
        %v1371 = vpop.f32.mrb[0].mxu0
        %v1372 = vadd.f32 %v1211, %v1371
        %v1373 = vpop.f32.mrb[0].mxu0
        %1374 = vmatprep.mubr.bf16.mxu0 0
        %1375 = vmatmul.mubr.bf16.gmra.mrb[0].mxu0 %v867
        %v1376 = vpop.f32.mrb[0].mxu0
        %v1377 = vadd.f32 %v1216, %v1376
        %v1378 = vpop.f32.mrb[0].mxu0
        %v1379 = vpop.f32.mrb[0].mxu0
        %v1380 = vadd.f32 %v1219, %v1379
        %v1381 = vpop.f32.mrb[0].mxu0
        %1382 = vdwg.mxu0
        %v1431 = vunpack.c.l.b16 %v817
        %v1432 = vunpack.c.l.b16 %v818
        %v1433 = vunpack.c.l.b16 %v819
        %v1434 = vunpack.c.l.b16 %v820
        %v1435 = vunpack.c.l.b16 %v821
        %v1436 = vunpack.c.l.b16 %v822
        %v1437 = vunpack.c.l.b16 %v823
        %v1438 = vunpack.c.l.b16 %v824
        %v1439 = vunpack.c.l.b16 %v825
        %v1440 = vunpack.c.l.b16 %v826
        %v1441 = vunpack.c.l.b16 %v827
        %v1442 = vunpack.c.l.b16 %v828
        %v1443 = vunpack.c.l.b16 %v829
        %v1444 = vunpack.c.l.b16 %v830
        %v1445 = vunpack.c.l.b16 %v831
        %v1446 = vunpack.c.l.b16 %v832
        %v1447 = vunpack.c.l.b16 %v833
        %v1448 = vunpack.c.l.b16 %v834
        %v1449 = vunpack.c.l.b16 %v835
        %v1450 = vunpack.c.l.b16 %v836
        %v1451 = vunpack.c.l.b16 %v837
        %v1452 = vunpack.c.l.b16 %v838
        %v1453 = vunpack.c.l.b16 %v839
        %v1454 = vunpack.c.l.b16 %v840
        %v1455 = vunpack.c.l.b16 %v841
        %v1456 = vunpack.c.l.b16 %v842
        %v1457 = vunpack.c.l.b16 %v843
        %v1458 = vunpack.c.l.b16 %v844
        %v1459 = vunpack.c.l.b16 %v845
        %v1460 = vunpack.c.l.b16 %v846
        %v1461 = vunpack.c.l.b16 %v847
        %v1462 = vunpack.c.l.b16 %v848
        %v1463 = vunpack.c.l.b16 %v849
        %v1464 = vunpack.c.l.b16 %v850
        %v1465 = vunpack.c.l.b16 %v851
        %v1466 = vunpack.c.l.b16 %v852
        %v1467 = vunpack.c.l.b16 %v853
        %v1468 = vunpack.c.l.b16 %v854
        %v1469 = vunpack.c.l.b16 %v855
        %v1470 = vunpack.c.l.b16 %v856
        %v1471 = vunpack.c.l.b16 %v857
        %v1472 = vunpack.c.l.b16 %v858
        %v1473 = vunpack.c.l.b16 %v859
        %v1474 = vunpack.c.l.b16 %v860
        %v1475 = vunpack.c.l.b16 %v861
        %v1476 = vunpack.c.l.b16 %v862
        %v1477 = vunpack.c.l.b16 %v863
        %v1478 = vunpack.c.l.b16 %v864
        %v1479 = vpack.c.b16 %v1432, %v1431
        %v1480 = vpack.c.b16 %v1434, %v1433
        %v1481 = vpack.c.b16 %v1436, %v1435
        %v1482 = vpack.c.b16 %v1438, %v1437
        %v1483 = vpack.c.b16 %v1440, %v1439
        %v1484 = vpack.c.b16 %v1442, %v1441
        %v1485 = vpack.c.b16 %v1444, %v1443
        %v1486 = vpack.c.b16 %v1446, %v1445
        %v1487 = vpack.c.b16 %v1448, %v1447
        %v1488 = vpack.c.b16 %v1450, %v1449
        %v1489 = vpack.c.b16 %v1452, %v1451
        %v1490 = vpack.c.b16 %v1454, %v1453
        %v1491 = vpack.c.b16 %v1456, %v1455
        %v1492 = vpack.c.b16 %v1458, %v1457
        %v1493 = vpack.c.b16 %v1460, %v1459
        %v1494 = vpack.c.b16 %v1462, %v1461
        %v1495 = vpack.c.b16 %v1464, %v1463
        %v1496 = vpack.c.b16 %v1466, %v1465
        %v1497 = vpack.c.b16 %v1468, %v1467
        %v1498 = vpack.c.b16 %v1470, %v1469
        %v1499 = vpack.c.b16 %v1472, %v1471
        %v1500 = vpack.c.b16 %v1474, %v1473
        %v1501 = vpack.c.b16 %v1476, %v1475
        %v1502 = vpack.c.b16 %v1478, %v1477
        %1527 = vmatprep.subr.bf16.mxu0 0
        %1528 = vmatpush1.bf16.msra.mxu0 %v1479
        %1529 = vmatprep.subr.bf16.mxu0 0
        %1530 = vmatpush1.bf16.msra.mxu0 %v1480
        %1531 = vmatprep.subr.bf16.mxu0 0
        %1532 = vmatpush1.bf16.msra.mxu0 %v1481
        %1533 = vmatprep.subr.bf16.mxu0 0
        %1534 = vmatpush1.bf16.msra.mxu0 %v1482
        %1535 = vmatprep.subr.bf16.mxu0 0
        %1536 = vmatpush1.bf16.msra.mxu0 %v1483
        %1537 = vmatprep.subr.bf16.mxu0 0
        %1538 = vmatpush1.bf16.msra.mxu0 %v1484
        %1539 = vmatprep.subr.bf16.mxu0 0
        %1540 = vmatpush1.bf16.msra.mxu0 %v1485
        %1541 = vmatprep.subr.bf16.mxu0 0
        %1542 = vmatpush1.bf16.msra.mxu0 %v1486
        %1543 = vmatprep.subr.bf16.mxu0 0
        %1544 = vmatpush1.bf16.msra.mxu0 %v1487
        %1545 = vmatprep.subr.bf16.mxu0 0
        %1546 = vmatpush1.bf16.msra.mxu0 %v1488
        %1547 = vmatprep.subr.bf16.mxu0 0
        %1548 = vmatpush1.bf16.msra.mxu0 %v1489
        %1549 = vmatprep.subr.bf16.mxu0 0
        %1550 = vmatpush1.bf16.msra.mxu0 %v1490
        %1551 = vmatprep.subr.bf16.mxu0 0
        %1552 = vmatpush1.bf16.msra.mxu0 %v1491
        %1553 = vmatprep.subr.bf16.mxu0 0
        %1554 = vmatpush1.bf16.msra.mxu0 %v1492
        %1555 = vmatprep.subr.bf16.mxu0 0
        %1556 = vmatpush1.bf16.msra.mxu0 %v1493
        %1557 = vmatprep.subr.bf16.mxu0 0
        %1558 = vmatpush1.bf16.msra.mxu0 %v1494
        %1559 = vmatprep.mubr.bf16.mxu0 %v770
        %1560 = vmatmul.mubr.bf16.gmra.mrb[0].mxu0 %v769
        %v1561 = vpop.f32.mrb[0].mxu0
        %v1562 = vadd.f32 %v1257, %v1561
        %v1563 = vpop.f32.mrb[0].mxu0
        %v1564 = vpop.f32.mrb[0].mxu0
        %v1565 = vadd.f32 %v1260, %v1564
        %v1566 = vpop.f32.mrb[0].mxu0
        %1567 = vmatprep.mubr.bf16.mxu0 %v773
        %1568 = vmatmul.mubr.bf16.gmra.mrb[0].mxu0 %v772
        %v1569 = vpop.f32.mrb[0].mxu0
        %v1570 = vadd.f32 %v1265, %v1569
        %v1571 = vpop.f32.mrb[0].mxu0
        %v1572 = vpop.f32.mrb[0].mxu0
        %v1573 = vadd.f32 %v1268, %v1572
        %v1574 = vpop.f32.mrb[0].mxu0
        %1575 = vmatprep.mubr.bf16.mxu0 %v776
        %1576 = vmatmul.mubr.bf16.gmra.mrb[0].mxu0 %v775
        %v1577 = vpop.f32.mrb[0].mxu0
        %v1578 = vadd.f32 %v1273, %v1577
        %v1579 = vpop.f32.mrb[0].mxu0
        %v1580 = vpop.f32.mrb[0].mxu0
        %v1581 = vadd.f32 %v1276, %v1580
        %v1582 = vpop.f32.mrb[0].mxu0
        %1583 = vmatprep.mubr.bf16.mxu0 %v779
        %1584 = vmatmul.mubr.bf16.gmra.mrb[0].mxu0 %v778
        %v1585 = vpop.f32.mrb[0].mxu0
        %v1586 = vadd.f32 %v1281, %v1585
        %v1587 = vpop.f32.mrb[0].mxu0
        %v1588 = vpop.f32.mrb[0].mxu0
        %v1589 = vadd.f32 %v1284, %v1588
        %v1590 = vpop.f32.mrb[0].mxu0
        %1591 = vmatprep.mubr.bf16.mxu0 %v782
        %1592 = vmatmul.mubr.bf16.gmra.mrb[0].mxu0 %v781
        %v1593 = vpop.f32.mrb[0].mxu0
        %v1594 = vadd.f32 %v1289, %v1593
        %v1595 = vpop.f32.mrb[0].mxu0
        %v1596 = vpop.f32.mrb[0].mxu0
        %v1597 = vadd.f32 %v1292, %v1596
        %v1598 = vpop.f32.mrb[0].mxu0
        %1599 = vmatprep.mubr.bf16.mxu0 %v785
        %1600 = vmatmul.mubr.bf16.gmra.mrb[0].mxu0 %v784
        %v1601 = vpop.f32.mrb[0].mxu0
        %v1602 = vadd.f32 %v1297, %v1601
        %v1603 = vpop.f32.mrb[0].mxu0
        %v1604 = vpop.f32.mrb[0].mxu0
        %v1605 = vadd.f32 %v1300, %v1604
        %v1606 = vpop.f32.mrb[0].mxu0
        %1607 = vmatprep.mubr.bf16.mxu0 %v788
        %1608 = vmatmul.mubr.bf16.gmra.mrb[0].mxu0 %v787
        %v1609 = vpop.f32.mrb[0].mxu0
        %v1610 = vadd.f32 %v1305, %v1609
        %v1611 = vpop.f32.mrb[0].mxu0
        %v1612 = vpop.f32.mrb[0].mxu0
        %v1613 = vadd.f32 %v1308, %v1612
        %v1614 = vpop.f32.mrb[0].mxu0
        %1615 = vmatprep.mubr.bf16.mxu0 %v791
        %1616 = vmatmul.mubr.bf16.gmra.mrb[0].mxu0 %v790
        %v1617 = vpop.f32.mrb[0].mxu0
        %v1618 = vadd.f32 %v1313, %v1617
        %v1619 = vpop.f32.mrb[0].mxu0
        %v1620 = vpop.f32.mrb[0].mxu0
        %v1621 = vadd.f32 %v1316, %v1620
        %v1622 = vpop.f32.mrb[0].mxu0
        %1623 = vmatprep.mubr.bf16.mxu0 %v794
        %1624 = vmatmul.mubr.bf16.gmra.mrb[0].mxu0 %v793
        %v1625 = vpop.f32.mrb[0].mxu0
        %v1626 = vadd.f32 %v1321, %v1625
        %v1627 = vpop.f32.mrb[0].mxu0
        %v1628 = vpop.f32.mrb[0].mxu0
        %v1629 = vadd.f32 %v1324, %v1628
        %v1630 = vpop.f32.mrb[0].mxu0
        %1631 = vmatprep.mubr.bf16.mxu0 %v797
        %1632 = vmatmul.mubr.bf16.gmra.mrb[0].mxu0 %v796
        %v1633 = vpop.f32.mrb[0].mxu0
        %v1634 = vadd.f32 %v1329, %v1633
        %v1635 = vpop.f32.mrb[0].mxu0
        %v1636 = vpop.f32.mrb[0].mxu0
        %v1637 = vadd.f32 %v1332, %v1636
        %v1638 = vpop.f32.mrb[0].mxu0
        %1639 = vmatprep.mubr.bf16.mxu0 %v800
        %1640 = vmatmul.mubr.bf16.gmra.mrb[0].mxu0 %v799
        %v1641 = vpop.f32.mrb[0].mxu0
        %v1642 = vadd.f32 %v1337, %v1641
        %v1643 = vpop.f32.mrb[0].mxu0
        %v1644 = vpop.f32.mrb[0].mxu0
        %v1645 = vadd.f32 %v1340, %v1644
        %v1646 = vpop.f32.mrb[0].mxu0
        %1647 = vmatprep.mubr.bf16.mxu0 %v803
        %1648 = vmatmul.mubr.bf16.gmra.mrb[0].mxu0 %v802
        %v1649 = vpop.f32.mrb[0].mxu0
        %v1650 = vadd.f32 %v1345, %v1649
        %v1651 = vpop.f32.mrb[0].mxu0
        %v1652 = vpop.f32.mrb[0].mxu0
        %v1653 = vadd.f32 %v1348, %v1652
        %v1654 = vpop.f32.mrb[0].mxu0
        %1655 = vmatprep.mubr.bf16.mxu0 %v806
        %1656 = vmatmul.mubr.bf16.gmra.mrb[0].mxu0 %v805
        %v1657 = vpop.f32.mrb[0].mxu0
        %v1658 = vadd.f32 %v1353, %v1657
        %v1659 = vpop.f32.mrb[0].mxu0
        %v1660 = vpop.f32.mrb[0].mxu0
        %v1661 = vadd.f32 %v1356, %v1660
        %v1662 = vpop.f32.mrb[0].mxu0
        %1663 = vmatprep.mubr.bf16.mxu0 %v809
        %1664 = vmatmul.mubr.bf16.gmra.mrb[0].mxu0 %v808
        %v1665 = vpop.f32.mrb[0].mxu0
        %v1666 = vadd.f32 %v1361, %v1665
        %v1667 = vpop.f32.mrb[0].mxu0
        %v1668 = vpop.f32.mrb[0].mxu0
        %v1669 = vadd.f32 %v1364, %v1668
        %v1670 = vpop.f32.mrb[0].mxu0
        %1671 = vmatprep.mubr.bf16.mxu0 %v812
        %1672 = vmatmul.mubr.bf16.gmra.mrb[0].mxu0 %v811
        %v1673 = vpop.f32.mrb[0].mxu0
        %v1674 = vadd.f32 %v1369, %v1673
        %v1675 = vpop.f32.mrb[0].mxu0
        %v1676 = vpop.f32.mrb[0].mxu0
        %v1677 = vadd.f32 %v1372, %v1676
        %v1678 = vpop.f32.mrb[0].mxu0
        %1679 = vmatprep.mubr.bf16.mxu0 %v815
        %1680 = vmatmul.mubr.bf16.gmra.mrb[0].mxu0 %v814
        %v1681 = vpop.f32.mrb[0].mxu0
        %v1682 = vadd.f32 %v1377, %v1681
        %v1683 = vpop.f32.mrb[0].mxu0
        %v1684 = vpop.f32.mrb[0].mxu0
        %v1685 = vadd.f32 %v1380, %v1684
        %v1686 = vpop.f32.mrb[0].mxu0
        %1687 = vdwg.mxu0
        %1688 = vmatprep.subr.bf16.mxu0 0
        %1689 = vmatpush1.bf16.msra.mxu0 %v1495
        %1690 = vmatprep.subr.bf16.mxu0 0
        %1691 = vmatpush1.bf16.msra.mxu0 %v1496
        %1692 = vmatprep.subr.bf16.mxu0 0
        %1693 = vmatpush1.bf16.msra.mxu0 %v1497
        %1694 = vmatprep.subr.bf16.mxu0 0
        %1695 = vmatpush1.bf16.msra.mxu0 %v1498
        %1696 = vmatprep.subr.bf16.mxu0 0
        %1697 = vmatpush1.bf16.msra.mxu0 %v1499
        %1698 = vmatprep.subr.bf16.mxu0 0
        %1699 = vmatpush1.bf16.msra.mxu0 %v1500
        %1700 = vmatprep.subr.bf16.mxu0 0
        %1701 = vmatpush1.bf16.msra.mxu0 %v1501
        %1702 = vmatprep.subr.bf16.mxu0 0
        %1703 = vmatpush1.bf16.msra.mxu0 %v1502
        %1704 = vmatprep.subr.bf16.mxu0 0
        %1705 = vmatpush1.bf16.msra.mxu0 0
        %1706 = vmatprep.subr.bf16.mxu0 0
        %1707 = vmatpush1.bf16.msra.mxu0 0
        %1708 = vmatprep.subr.bf16.mxu0 0
        %1709 = vmatpush1.bf16.msra.mxu0 0
        %1710 = vmatprep.subr.bf16.mxu0 0
        %1711 = vmatpush1.bf16.msra.mxu0 0
        %1712 = vmatprep.subr.bf16.mxu0 0
        %1713 = vmatpush1.bf16.msra.mxu0 0
        %1714 = vmatprep.subr.bf16.mxu0 0
        %1715 = vmatpush1.bf16.msra.mxu0 0
        %1716 = vmatprep.subr.bf16.mxu0 0
        %1717 = vmatpush1.bf16.msra.mxu0 0
        %1718 = vmatprep.subr.bf16.mxu0 0
        %1719 = vmatpush1.bf16.msra.mxu0 0
        %1720 = vmatprep.mubr.bf16.mxu0 0
        %1721 = vmatmul.mubr.bf16.gmra.mrb[0].mxu0 %v771
        %v1722 = vpop.f32.mrb[0].mxu0
        %v1723 = vadd.f32 %v1562, %v1722
        %v1724 = vpop.f32.mrb[0].mxu0
        %v1725 = vpop.f32.mrb[0].mxu0
        %v1726 = vadd.f32 %v1565, %v1725
        %v1727 = vpop.f32.mrb[0].mxu0
        %1728 = vmatprep.mubr.bf16.mxu0 0
        %1729 = vmatmul.mubr.bf16.gmra.mrb[0].mxu0 %v774
        %v1730 = vpop.f32.mrb[0].mxu0
        %v1731 = vadd.f32 %v1570, %v1730
        %v1732 = vpop.f32.mrb[0].mxu0
        %v1733 = vpop.f32.mrb[0].mxu0
        %v1734 = vadd.f32 %v1573, %v1733
        %v1735 = vpop.f32.mrb[0].mxu0
        %1736 = vmatprep.mubr.bf16.mxu0 0
        %1737 = vmatmul.mubr.bf16.gmra.mrb[0].mxu0 %v777
        %v1738 = vpop.f32.mrb[0].mxu0
        %v1739 = vadd.f32 %v1578, %v1738
        %v1740 = vpop.f32.mrb[0].mxu0
        %v1741 = vpop.f32.mrb[0].mxu0
        %v1742 = vadd.f32 %v1581, %v1741
        %v1743 = vpop.f32.mrb[0].mxu0
        %1744 = vmatprep.mubr.bf16.mxu0 0
        %1745 = vmatmul.mubr.bf16.gmra.mrb[0].mxu0 %v780
        %v1746 = vpop.f32.mrb[0].mxu0
        %v1747 = vadd.f32 %v1586, %v1746
        %v1748 = vpop.f32.mrb[0].mxu0
        %v1749 = vpop.f32.mrb[0].mxu0
        %v1750 = vadd.f32 %v1589, %v1749
        %v1751 = vpop.f32.mrb[0].mxu0
        %1752 = vmatprep.mubr.bf16.mxu0 0
        %1753 = vmatmul.mubr.bf16.gmra.mrb[0].mxu0 %v783
        %v1754 = vpop.f32.mrb[0].mxu0
        %v1755 = vadd.f32 %v1594, %v1754
        %v1756 = vpop.f32.mrb[0].mxu0
        %v1757 = vpop.f32.mrb[0].mxu0
        %v1758 = vadd.f32 %v1597, %v1757
        %v1759 = vpop.f32.mrb[0].mxu0
        %1760 = vmatprep.mubr.bf16.mxu0 0
        %1761 = vmatmul.mubr.bf16.gmra.mrb[0].mxu0 %v786
        %v1762 = vpop.f32.mrb[0].mxu0
        %v1763 = vadd.f32 %v1602, %v1762
        %v1764 = vpop.f32.mrb[0].mxu0
        %v1765 = vpop.f32.mrb[0].mxu0
        %v1766 = vadd.f32 %v1605, %v1765
        %v1767 = vpop.f32.mrb[0].mxu0
        %1768 = vmatprep.mubr.bf16.mxu0 0
        %1769 = vmatmul.mubr.bf16.gmra.mrb[0].mxu0 %v789
        %v1770 = vpop.f32.mrb[0].mxu0
        %v1771 = vadd.f32 %v1610, %v1770
        %v1772 = vpop.f32.mrb[0].mxu0
        %v1773 = vpop.f32.mrb[0].mxu0
        %v1774 = vadd.f32 %v1613, %v1773
        %v1775 = vpop.f32.mrb[0].mxu0
        %1776 = vmatprep.mubr.bf16.mxu0 0
        %1777 = vmatmul.mubr.bf16.gmra.mrb[0].mxu0 %v792
        %v1778 = vpop.f32.mrb[0].mxu0
        %v1779 = vadd.f32 %v1618, %v1778
        %v1780 = vpop.f32.mrb[0].mxu0
        %v1781 = vpop.f32.mrb[0].mxu0
        %v1782 = vadd.f32 %v1621, %v1781
        %v1783 = vpop.f32.mrb[0].mxu0
        %1784 = vmatprep.mubr.bf16.mxu0 0
        %1785 = vmatmul.mubr.bf16.gmra.mrb[0].mxu0 %v795
        %v1786 = vpop.f32.mrb[0].mxu0
        %v1787 = vadd.f32 %v1626, %v1786
        %v1788 = vpop.f32.mrb[0].mxu0
        %v1789 = vpop.f32.mrb[0].mxu0
        %v1790 = vadd.f32 %v1629, %v1789
        %v1791 = vpop.f32.mrb[0].mxu0
        %1792 = vmatprep.mubr.bf16.mxu0 0
        %1793 = vmatmul.mubr.bf16.gmra.mrb[0].mxu0 %v798
        %v1794 = vpop.f32.mrb[0].mxu0
        %v1795 = vadd.f32 %v1634, %v1794
        %v1796 = vpop.f32.mrb[0].mxu0
        %v1797 = vpop.f32.mrb[0].mxu0
        %v1798 = vadd.f32 %v1637, %v1797
        %v1799 = vpop.f32.mrb[0].mxu0
        %1800 = vmatprep.mubr.bf16.mxu0 0
        %1801 = vmatmul.mubr.bf16.gmra.mrb[0].mxu0 %v801
        %v1802 = vpop.f32.mrb[0].mxu0
        %v1803 = vadd.f32 %v1642, %v1802
        %v1804 = vpop.f32.mrb[0].mxu0
        %v1805 = vpop.f32.mrb[0].mxu0
        %v1806 = vadd.f32 %v1645, %v1805
        %v1807 = vpop.f32.mrb[0].mxu0
        %1808 = vmatprep.mubr.bf16.mxu0 0
        %1809 = vmatmul.mubr.bf16.gmra.mrb[0].mxu0 %v804
        %v1810 = vpop.f32.mrb[0].mxu0
        %v1811 = vadd.f32 %v1650, %v1810
        %v1812 = vpop.f32.mrb[0].mxu0
        %v1813 = vpop.f32.mrb[0].mxu0
        %v1814 = vadd.f32 %v1653, %v1813
        %v1815 = vpop.f32.mrb[0].mxu0
        %1816 = vmatprep.mubr.bf16.mxu0 0
        %1817 = vmatmul.mubr.bf16.gmra.mrb[0].mxu0 %v807
        %v1818 = vpop.f32.mrb[0].mxu0
        %v1819 = vadd.f32 %v1658, %v1818
        %v1820 = vpop.f32.mrb[0].mxu0
        %v1821 = vpop.f32.mrb[0].mxu0
        %v1822 = vadd.f32 %v1661, %v1821
        %v1823 = vpop.f32.mrb[0].mxu0
        %1824 = vmatprep.mubr.bf16.mxu0 0
        %1825 = vmatmul.mubr.bf16.gmra.mrb[0].mxu0 %v810
        %v1826 = vpop.f32.mrb[0].mxu0
        %v1827 = vadd.f32 %v1666, %v1826
        %v1828 = vpop.f32.mrb[0].mxu0
        %v1829 = vpop.f32.mrb[0].mxu0
        %v1830 = vadd.f32 %v1669, %v1829
        %v1831 = vpop.f32.mrb[0].mxu0
        %1832 = vmatprep.mubr.bf16.mxu0 0
        %1833 = vmatmul.mubr.bf16.gmra.mrb[0].mxu0 %v813
        %v1834 = vpop.f32.mrb[0].mxu0
        %v1835 = vadd.f32 %v1674, %v1834
        %v1836 = vpop.f32.mrb[0].mxu0
        %v1837 = vpop.f32.mrb[0].mxu0
        %v1838 = vadd.f32 %v1677, %v1837
        %v1839 = vpop.f32.mrb[0].mxu0
        %1840 = vmatprep.mubr.bf16.mxu0 0
        %1841 = vmatmul.mubr.bf16.gmra.mrb[0].mxu0 %v816
        %v1842 = vpop.f32.mrb[0].mxu0
        %v1843 = vadd.f32 %v1682, %v1842
        %v1844 = vpop.f32.mrb[0].mxu0
        %v1845 = vpop.f32.mrb[0].mxu0
        %v1846 = vadd.f32 %v1685, %v1845
        %v1847 = vpop.f32.mrb[0].mxu0
        %1848 = vdwg.mxu0
        %v1849 = vld [vmem:[#allocation2 + $0x30] sm:$0xff]
        %v1850 = vld [vmem:[#allocation2 + $0x38] sm:$0xff]
        %v1851 = vld [vmem:[#allocation2 + $0x40] sm:$0xff]
        %v1852 = vld [vmem:[#allocation2 + $0x48] sm:$0xff]
        %v1853 = vld [vmem:[#allocation2 + $0x50] sm:$0xff]
        %v1854 = vld [vmem:[#allocation2 + $0x58] sm:$0xff]
        %v1855 = vld [vmem:[#allocation2 + $0x60] sm:$0xff]
        %v1856 = vld [vmem:[#allocation2 + $0x68] sm:$0xff]
        %v1857 = vld [vmem:[#allocation2 + $0x70] sm:$0xff]
        %v1858 = vld [vmem:[#allocation2 + $0x78] sm:$0xff]
        %v1859 = vld [vmem:[#allocation2 + $0x80] sm:$0xff]
        %v1860 = vld [vmem:[#allocation2 + $0x88] sm:$0xff]
        %v1861 = vld [vmem:[#allocation2 + $0x90] sm:$0xff]
        %v1862 = vld [vmem:[#allocation2 + $0x98] sm:$0xff]
        %v1863 = vld [vmem:[#allocation2 + $0xa0] sm:$0xff]
        %v1864 = vld [vmem:[#allocation2 + $0xa8] sm:$0xff]
        %v1865 = vld [vmem:[#allocation2 + $0xb0] sm:$0xff]
        %v1866 = vld [vmem:[#allocation2 + $0xb8] sm:$0xff]
        %v1867 = vld [vmem:[#allocation2 + $0xc0] sm:$0xff]
        %v1868 = vld [vmem:[#allocation2 + $0xc8] sm:$0xff]
        %v1869 = vld [vmem:[#allocation2 + $0xd0] sm:$0xff]
        %v1870 = vld [vmem:[#allocation2 + $0xd8] sm:$0xff]
        %v1871 = vld [vmem:[#allocation2 + $0xe0] sm:$0xff]
        %v1872 = vld [vmem:[#allocation2 + $0xe8] sm:$0xff]
        %v1873 = vld [vmem:[#allocation2 + $0xf0] sm:$0xff]
        %v1874 = vld [vmem:[#allocation2 + $0xf8] sm:$0xff]
        %v1875 = vld [vmem:[#allocation2 + $0x100] sm:$0xff]
        %v1876 = vld [vmem:[#allocation2 + $0x108] sm:$0xff]
        %v1877 = vld [vmem:[#allocation2 + $0x110] sm:$0xff]
        %v1878 = vld [vmem:[#allocation2 + $0x118] sm:$0xff]
        %v1879 = vld [vmem:[#allocation2 + $0x120] sm:$0xff]
        %v1880 = vld [vmem:[#allocation2 + $0x128] sm:$0xff]
        %v1881 = vld [vmem:[#allocation2 + $0x130] sm:$0xff]
        %v1882 = vld [vmem:[#allocation2 + $0x138] sm:$0xff]
        %v1883 = vld [vmem:[#allocation2 + $0x140] sm:$0xff]
        %v1884 = vld [vmem:[#allocation2 + $0x148] sm:$0xff]
        %v1885 = vld [vmem:[#allocation2 + $0x150] sm:$0xff]
        %v1886 = vld [vmem:[#allocation2 + $0x158] sm:$0xff]
        %v1887 = vld [vmem:[#allocation2 + $0x160] sm:$0xff]
        %v1888 = vld [vmem:[#allocation2 + $0x168] sm:$0xff]
        %v1889 = vld [vmem:[#allocation2 + $0x170] sm:$0xff]
        %v1890 = vld [vmem:[#allocation2 + $0x178] sm:$0xff]
        %v1891 = vld [vmem:[#allocation2 + $0x180] sm:$0xff]
        %v1892 = vld [vmem:[#allocation2 + $0x188] sm:$0xff]
        %v1893 = vld [vmem:[#allocation2 + $0x190] sm:$0xff]
        %v1894 = vld [vmem:[#allocation2 + $0x198] sm:$0xff]
        %v1895 = vld [vmem:[#allocation2 + $0x1a0] sm:$0xff]
        %v1896 = vld [vmem:[#allocation2 + $0x1a8] sm:$0xff]
        %s1897 = scalar_lea.vmem %s3, 384
        %v1898 = vld [vmem:[%s1897] sm:$0xf]
        %v1899 = vld [vmem:[%s1897 + $0x4] sm:$0xf]
        %v1900 = vld [vmem:[%s1897 + $0x8] sm:$0xf]
        %v1901 = vld [vmem:[%s1897 + $0xc] sm:$0xf]
        %v1902 = vld [vmem:[%s1897 + $0x10] sm:$0xf]
        %v1903 = vld [vmem:[%s1897 + $0x14] sm:$0xf]
        %v1904 = vld [vmem:[%s1897 + $0x18] sm:$0xf]
        %v1905 = vld [vmem:[%s1897 + $0x1c] sm:$0xf]
        %v1906 = vld [vmem:[%s1897 + $0x20] sm:$0xf]
        %v1907 = vld [vmem:[%s1897 + $0x24] sm:$0xf]
        %v1908 = vld [vmem:[%s1897 + $0x28] sm:$0xf]
        %v1909 = vld [vmem:[%s1897 + $0x2c] sm:$0xf]
        %v1910 = vld [vmem:[%s1897 + $0x30] sm:$0xf]
        %v1911 = vld [vmem:[%s1897 + $0x34] sm:$0xf]
        %v1912 = vld [vmem:[%s1897 + $0x38] sm:$0xf]
        %v1913 = vld [vmem:[%s1897 + $0x3c] sm:$0xf]
        %v1914 = vld [vmem:[%s1897 + $0x40] sm:$0xf]
        %v1915 = vld [vmem:[%s1897 + $0x44] sm:$0xf]
        %v1916 = vld [vmem:[%s1897 + $0x48] sm:$0xf]
        %v1917 = vld [vmem:[%s1897 + $0x4c] sm:$0xf]
        %v1918 = vld [vmem:[%s1897 + $0x50] sm:$0xf]
        %v1919 = vld [vmem:[%s1897 + $0x54] sm:$0xf]
        %v1920 = vld [vmem:[%s1897 + $0x58] sm:$0xf]
        %v1921 = vld [vmem:[%s1897 + $0x5c] sm:$0xf]
        %v1922 = vld [vmem:[%s1897 + $0x60] sm:$0xf]
        %v1923 = vld [vmem:[%s1897 + $0x64] sm:$0xf]
        %v1924 = vld [vmem:[%s1897 + $0x68] sm:$0xf]
        %v1925 = vld [vmem:[%s1897 + $0x6c] sm:$0xf]
        %v1926 = vld [vmem:[%s1897 + $0x70] sm:$0xf]
        %v1927 = vld [vmem:[%s1897 + $0x74] sm:$0xf]
        %v1928 = vld [vmem:[%s1897 + $0x78] sm:$0xf]
        %v1929 = vld [vmem:[%s1897 + $0x7c] sm:$0xf]
        %v1930 = vld [vmem:[%s1897 + $0x80] sm:$0xf]
        %v1931 = vld [vmem:[%s1897 + $0x84] sm:$0xf]
        %v1932 = vld [vmem:[%s1897 + $0x88] sm:$0xf]
        %v1933 = vld [vmem:[%s1897 + $0x8c] sm:$0xf]
        %v1934 = vld [vmem:[%s1897 + $0x90] sm:$0xf]
        %v1935 = vld [vmem:[%s1897 + $0x94] sm:$0xf]
        %v1936 = vld [vmem:[%s1897 + $0x98] sm:$0xf]
        %v1937 = vld [vmem:[%s1897 + $0x9c] sm:$0xf]
        %v1938 = vld [vmem:[%s1897 + $0xa0] sm:$0xf]
        %v1939 = vld [vmem:[%s1897 + $0xa4] sm:$0xf]
        %v1940 = vld [vmem:[%s1897 + $0xa8] sm:$0xf]
        %v1941 = vld [vmem:[%s1897 + $0xac] sm:$0xf]
        %v1942 = vld [vmem:[%s1897 + $0xb0] sm:$0xf]
        %v1943 = vld [vmem:[%s1897 + $0xb4] sm:$0xf]
        %v1944 = vld [vmem:[%s1897 + $0xb8] sm:$0xf]
        %v1945 = vld [vmem:[%s1897 + $0xbc] sm:$0xf]
        %v1994 = vunpack.c.l.b16 %v1898
        %v1995 = vunpack.c.l.b16 %v1899
        %v1996 = vunpack.c.l.b16 %v1900
        %v1997 = vunpack.c.l.b16 %v1901
        %v1998 = vunpack.c.l.b16 %v1902
        %v1999 = vunpack.c.l.b16 %v1903
        %v2000 = vunpack.c.l.b16 %v1904
        %v2001 = vunpack.c.l.b16 %v1905
        %v2002 = vunpack.c.l.b16 %v1906
        %v2003 = vunpack.c.l.b16 %v1907
        %v2004 = vunpack.c.l.b16 %v1908
        %v2005 = vunpack.c.l.b16 %v1909
        %v2006 = vunpack.c.l.b16 %v1910
        %v2007 = vunpack.c.l.b16 %v1911
        %v2008 = vunpack.c.l.b16 %v1912
        %v2009 = vunpack.c.l.b16 %v1913
        %v2010 = vunpack.c.l.b16 %v1914
        %v2011 = vunpack.c.l.b16 %v1915
        %v2012 = vunpack.c.l.b16 %v1916
        %v2013 = vunpack.c.l.b16 %v1917
        %v2014 = vunpack.c.l.b16 %v1918
        %v2015 = vunpack.c.l.b16 %v1919
        %v2016 = vunpack.c.l.b16 %v1920
        %v2017 = vunpack.c.l.b16 %v1921
        %v2018 = vunpack.c.l.b16 %v1922
        %v2019 = vunpack.c.l.b16 %v1923
        %v2020 = vunpack.c.l.b16 %v1924
        %v2021 = vunpack.c.l.b16 %v1925
        %v2022 = vunpack.c.l.b16 %v1926
        %v2023 = vunpack.c.l.b16 %v1927
        %v2024 = vunpack.c.l.b16 %v1928
        %v2025 = vunpack.c.l.b16 %v1929
        %v2026 = vunpack.c.l.b16 %v1930
        %v2027 = vunpack.c.l.b16 %v1931
        %v2028 = vunpack.c.l.b16 %v1932
        %v2029 = vunpack.c.l.b16 %v1933
        %v2030 = vunpack.c.l.b16 %v1934
        %v2031 = vunpack.c.l.b16 %v1935
        %v2032 = vunpack.c.l.b16 %v1936
        %v2033 = vunpack.c.l.b16 %v1937
        %v2034 = vunpack.c.l.b16 %v1938
        %v2035 = vunpack.c.l.b16 %v1939
        %v2036 = vunpack.c.l.b16 %v1940
        %v2037 = vunpack.c.l.b16 %v1941
        %v2038 = vunpack.c.l.b16 %v1942
        %v2039 = vunpack.c.l.b16 %v1943
        %v2040 = vunpack.c.l.b16 %v1944
        %v2041 = vunpack.c.l.b16 %v1945
        %v2042 = vpack.c.b16 %v1995, %v1994
        %v2043 = vpack.c.b16 %v1997, %v1996
        %v2044 = vpack.c.b16 %v1999, %v1998
        %v2045 = vpack.c.b16 %v2001, %v2000
        %v2046 = vpack.c.b16 %v2003, %v2002
        %v2047 = vpack.c.b16 %v2005, %v2004
        %v2048 = vpack.c.b16 %v2007, %v2006
        %v2049 = vpack.c.b16 %v2009, %v2008
        %v2050 = vpack.c.b16 %v2011, %v2010
        %v2051 = vpack.c.b16 %v2013, %v2012
        %v2052 = vpack.c.b16 %v2015, %v2014
        %v2053 = vpack.c.b16 %v2017, %v2016
        %v2054 = vpack.c.b16 %v2019, %v2018
        %v2055 = vpack.c.b16 %v2021, %v2020
        %v2056 = vpack.c.b16 %v2023, %v2022
        %v2057 = vpack.c.b16 %v2025, %v2024
        %v2058 = vpack.c.b16 %v2027, %v2026
        %v2059 = vpack.c.b16 %v2029, %v2028
        %v2060 = vpack.c.b16 %v2031, %v2030
        %v2061 = vpack.c.b16 %v2033, %v2032
        %v2062 = vpack.c.b16 %v2035, %v2034
        %v2063 = vpack.c.b16 %v2037, %v2036
        %v2064 = vpack.c.b16 %v2039, %v2038
        %v2065 = vpack.c.b16 %v2041, %v2040
        %2090 = vmatprep.subr.bf16.mxu0 0
        %2091 = vmatpush1.bf16.msra.mxu0 %v2042
        %2092 = vmatprep.subr.bf16.mxu0 0
        %2093 = vmatpush1.bf16.msra.mxu0 %v2043
        %2094 = vmatprep.subr.bf16.mxu0 0
        %2095 = vmatpush1.bf16.msra.mxu0 %v2044
        %2096 = vmatprep.subr.bf16.mxu0 0
        %2097 = vmatpush1.bf16.msra.mxu0 %v2045
        %2098 = vmatprep.subr.bf16.mxu0 0
        %2099 = vmatpush1.bf16.msra.mxu0 %v2046
        %2100 = vmatprep.subr.bf16.mxu0 0
        %2101 = vmatpush1.bf16.msra.mxu0 %v2047
        %2102 = vmatprep.subr.bf16.mxu0 0
        %2103 = vmatpush1.bf16.msra.mxu0 %v2048
        %2104 = vmatprep.subr.bf16.mxu0 0
        %2105 = vmatpush1.bf16.msra.mxu0 %v2049
        %2106 = vmatprep.subr.bf16.mxu0 0
        %2107 = vmatpush1.bf16.msra.mxu0 %v2050
        %2108 = vmatprep.subr.bf16.mxu0 0
        %2109 = vmatpush1.bf16.msra.mxu0 %v2051
        %2110 = vmatprep.subr.bf16.mxu0 0
        %2111 = vmatpush1.bf16.msra.mxu0 %v2052
        %2112 = vmatprep.subr.bf16.mxu0 0
        %2113 = vmatpush1.bf16.msra.mxu0 %v2053
        %2114 = vmatprep.subr.bf16.mxu0 0
        %2115 = vmatpush1.bf16.msra.mxu0 %v2054
        %2116 = vmatprep.subr.bf16.mxu0 0
        %2117 = vmatpush1.bf16.msra.mxu0 %v2055
        %2118 = vmatprep.subr.bf16.mxu0 0
        %2119 = vmatpush1.bf16.msra.mxu0 %v2056
        %2120 = vmatprep.subr.bf16.mxu0 0
        %2121 = vmatpush1.bf16.msra.mxu0 %v2057
        %2122 = vmatprep.mubr.bf16.mxu0 %v1850
        %2123 = vmatmul.mubr.bf16.gmra.mrb[0].mxu0 %v1849
        %v2124 = vpop.f32.mrb[0].mxu0
        %v2125 = vadd.f32 0.0, %v2124
        %v2126 = vpop.f32.mrb[0].mxu0
        %v2127 = vpop.f32.mrb[0].mxu0
        %v2128 = vadd.f32 0.0, %v2127
        %v2129 = vpop.f32.mrb[0].mxu0
        %2130 = vmatprep.mubr.bf16.mxu0 %v1853
        %2131 = vmatmul.mubr.bf16.gmra.mrb[0].mxu0 %v1852
        %v2132 = vpop.f32.mrb[0].mxu0
        %v2133 = vadd.f32 0.0, %v2132
        %v2134 = vpop.f32.mrb[0].mxu0
        %v2135 = vpop.f32.mrb[0].mxu0
        %v2136 = vadd.f32 0.0, %v2135
        %v2137 = vpop.f32.mrb[0].mxu0
        %2138 = vmatprep.mubr.bf16.mxu0 %v1856
        %2139 = vmatmul.mubr.bf16.gmra.mrb[0].mxu0 %v1855
        %v2140 = vpop.f32.mrb[0].mxu0
        %v2141 = vadd.f32 0.0, %v2140
        %v2142 = vpop.f32.mrb[0].mxu0
        %v2143 = vpop.f32.mrb[0].mxu0
        %v2144 = vadd.f32 0.0, %v2143
        %v2145 = vpop.f32.mrb[0].mxu0
        %2146 = vmatprep.mubr.bf16.mxu0 %v1859
        %2147 = vmatmul.mubr.bf16.gmra.mrb[0].mxu0 %v1858
        %v2148 = vpop.f32.mrb[0].mxu0
        %v2149 = vadd.f32 0.0, %v2148
        %v2150 = vpop.f32.mrb[0].mxu0
        %v2151 = vpop.f32.mrb[0].mxu0
        %v2152 = vadd.f32 0.0, %v2151
        %v2153 = vpop.f32.mrb[0].mxu0
        %2154 = vmatprep.mubr.bf16.mxu0 %v1862
        %2155 = vmatmul.mubr.bf16.gmra.mrb[0].mxu0 %v1861
        %v2156 = vpop.f32.mrb[0].mxu0
        %v2157 = vadd.f32 0.0, %v2156
        %v2158 = vpop.f32.mrb[0].mxu0
        %v2159 = vpop.f32.mrb[0].mxu0
        %v2160 = vadd.f32 0.0, %v2159
        %v2161 = vpop.f32.mrb[0].mxu0
        %2162 = vmatprep.mubr.bf16.mxu0 %v1865
        %2163 = vmatmul.mubr.bf16.gmra.mrb[0].mxu0 %v1864
        %v2164 = vpop.f32.mrb[0].mxu0
        %v2165 = vadd.f32 0.0, %v2164
        %v2166 = vpop.f32.mrb[0].mxu0
        %v2167 = vpop.f32.mrb[0].mxu0
        %v2168 = vadd.f32 0.0, %v2167
        %v2169 = vpop.f32.mrb[0].mxu0
        %2170 = vmatprep.mubr.bf16.mxu0 %v1868
        %2171 = vmatmul.mubr.bf16.gmra.mrb[0].mxu0 %v1867
        %v2172 = vpop.f32.mrb[0].mxu0
        %v2173 = vadd.f32 0.0, %v2172
        %v2174 = vpop.f32.mrb[0].mxu0
        %v2175 = vpop.f32.mrb[0].mxu0
        %v2176 = vadd.f32 0.0, %v2175
        %v2177 = vpop.f32.mrb[0].mxu0
        %2178 = vmatprep.mubr.bf16.mxu0 %v1871
        %2179 = vmatmul.mubr.bf16.gmra.mrb[0].mxu0 %v1870
        %v2180 = vpop.f32.mrb[0].mxu0
        %v2181 = vadd.f32 0.0, %v2180
        %v2182 = vpop.f32.mrb[0].mxu0
        %v2183 = vpop.f32.mrb[0].mxu0
        %v2184 = vadd.f32 0.0, %v2183
        %v2185 = vpop.f32.mrb[0].mxu0
        %2186 = vmatprep.mubr.bf16.mxu0 %v1874
        %2187 = vmatmul.mubr.bf16.gmra.mrb[0].mxu0 %v1873
        %v2188 = vpop.f32.mrb[0].mxu0
        %v2189 = vadd.f32 0.0, %v2188
        %v2190 = vpop.f32.mrb[0].mxu0
        %v2191 = vpop.f32.mrb[0].mxu0
        %v2192 = vadd.f32 0.0, %v2191
        %v2193 = vpop.f32.mrb[0].mxu0
        %2194 = vmatprep.mubr.bf16.mxu0 %v1877
        %2195 = vmatmul.mubr.bf16.gmra.mrb[0].mxu0 %v1876
        %v2196 = vpop.f32.mrb[0].mxu0
        %v2197 = vadd.f32 0.0, %v2196
        %v2198 = vpop.f32.mrb[0].mxu0
        %v2199 = vpop.f32.mrb[0].mxu0
        %v2200 = vadd.f32 0.0, %v2199
        %v2201 = vpop.f32.mrb[0].mxu0
        %2202 = vmatprep.mubr.bf16.mxu0 %v1880
        %2203 = vmatmul.mubr.bf16.gmra.mrb[0].mxu0 %v1879
        %v2204 = vpop.f32.mrb[0].mxu0
        %v2205 = vadd.f32 0.0, %v2204
        %v2206 = vpop.f32.mrb[0].mxu0
        %v2207 = vpop.f32.mrb[0].mxu0
        %v2208 = vadd.f32 0.0, %v2207
        %v2209 = vpop.f32.mrb[0].mxu0
        %2210 = vmatprep.mubr.bf16.mxu0 %v1883
        %2211 = vmatmul.mubr.bf16.gmra.mrb[0].mxu0 %v1882
        %v2212 = vpop.f32.mrb[0].mxu0
        %v2213 = vadd.f32 0.0, %v2212
        %v2214 = vpop.f32.mrb[0].mxu0
        %v2215 = vpop.f32.mrb[0].mxu0
        %v2216 = vadd.f32 0.0, %v2215
        %v2217 = vpop.f32.mrb[0].mxu0
        %2218 = vmatprep.mubr.bf16.mxu0 %v1886
        %2219 = vmatmul.mubr.bf16.gmra.mrb[0].mxu0 %v1885
        %v2220 = vpop.f32.mrb[0].mxu0
        %v2221 = vadd.f32 0.0, %v2220
        %v2222 = vpop.f32.mrb[0].mxu0
        %v2223 = vpop.f32.mrb[0].mxu0
        %v2224 = vadd.f32 0.0, %v2223
        %v2225 = vpop.f32.mrb[0].mxu0
        %2226 = vmatprep.mubr.bf16.mxu0 %v1889
        %2227 = vmatmul.mubr.bf16.gmra.mrb[0].mxu0 %v1888
        %v2228 = vpop.f32.mrb[0].mxu0
        %v2229 = vadd.f32 0.0, %v2228
        %v2230 = vpop.f32.mrb[0].mxu0
        %v2231 = vpop.f32.mrb[0].mxu0
        %v2232 = vadd.f32 0.0, %v2231
        %v2233 = vpop.f32.mrb[0].mxu0
        %2234 = vmatprep.mubr.bf16.mxu0 %v1892
        %2235 = vmatmul.mubr.bf16.gmra.mrb[0].mxu0 %v1891
        %v2236 = vpop.f32.mrb[0].mxu0
        %v2237 = vadd.f32 0.0, %v2236
        %v2238 = vpop.f32.mrb[0].mxu0
        %v2239 = vpop.f32.mrb[0].mxu0
        %v2240 = vadd.f32 0.0, %v2239
        %v2241 = vpop.f32.mrb[0].mxu0
        %2242 = vmatprep.mubr.bf16.mxu0 %v1895
        %2243 = vmatmul.mubr.bf16.gmra.mrb[0].mxu0 %v1894
        %v2244 = vpop.f32.mrb[0].mxu0
        %v2245 = vadd.f32 0.0, %v2244
        %v2246 = vpop.f32.mrb[0].mxu0
        %v2247 = vpop.f32.mrb[0].mxu0
        %v2248 = vadd.f32 0.0, %v2247
        %v2249 = vpop.f32.mrb[0].mxu0
        %2250 = vdwg.mxu0
        %2251 = vmatprep.subr.bf16.mxu0 0
        %2252 = vmatpush1.bf16.msra.mxu0 %v2058
        %2253 = vmatprep.subr.bf16.mxu0 0
        %2254 = vmatpush1.bf16.msra.mxu0 %v2059
        %2255 = vmatprep.subr.bf16.mxu0 0
        %2256 = vmatpush1.bf16.msra.mxu0 %v2060
        %2257 = vmatprep.subr.bf16.mxu0 0
        %2258 = vmatpush1.bf16.msra.mxu0 %v2061
        %2259 = vmatprep.subr.bf16.mxu0 0
        %2260 = vmatpush1.bf16.msra.mxu0 %v2062
        %2261 = vmatprep.subr.bf16.mxu0 0
        %2262 = vmatpush1.bf16.msra.mxu0 %v2063
        %2263 = vmatprep.subr.bf16.mxu0 0
        %2264 = vmatpush1.bf16.msra.mxu0 %v2064
        %2265 = vmatprep.subr.bf16.mxu0 0
        %2266 = vmatpush1.bf16.msra.mxu0 %v2065
        %2267 = vmatprep.subr.bf16.mxu0 0
        %2268 = vmatpush1.bf16.msra.mxu0 0
        %2269 = vmatprep.subr.bf16.mxu0 0
        %2270 = vmatpush1.bf16.msra.mxu0 0
        %2271 = vmatprep.subr.bf16.mxu0 0
        %2272 = vmatpush1.bf16.msra.mxu0 0
        %2273 = vmatprep.subr.bf16.mxu0 0
        %2274 = vmatpush1.bf16.msra.mxu0 0
        %2275 = vmatprep.subr.bf16.mxu0 0
        %2276 = vmatpush1.bf16.msra.mxu0 0
        %2277 = vmatprep.subr.bf16.mxu0 0
        %2278 = vmatpush1.bf16.msra.mxu0 0
        %2279 = vmatprep.subr.bf16.mxu0 0
        %2280 = vmatpush1.bf16.msra.mxu0 0
        %2281 = vmatprep.subr.bf16.mxu0 0
        %2282 = vmatpush1.bf16.msra.mxu0 0
        %2283 = vmatprep.mubr.bf16.mxu0 0
        %2284 = vmatmul.mubr.bf16.gmra.mrb[0].mxu0 %v1851
        %v2285 = vpop.f32.mrb[0].mxu0
        %v2286 = vadd.f32 %v2125, %v2285
        %v2287 = vpop.f32.mrb[0].mxu0
        %v2288 = vpop.f32.mrb[0].mxu0
        %v2289 = vadd.f32 %v2128, %v2288
        %v2290 = vpop.f32.mrb[0].mxu0
        %2291 = vmatprep.mubr.bf16.mxu0 0
        %2292 = vmatmul.mubr.bf16.gmra.mrb[0].mxu0 %v1854
        %v2293 = vpop.f32.mrb[0].mxu0
        %v2294 = vadd.f32 %v2133, %v2293
        %v2295 = vpop.f32.mrb[0].mxu0
        %v2296 = vpop.f32.mrb[0].mxu0
        %v2297 = vadd.f32 %v2136, %v2296
        %v2298 = vpop.f32.mrb[0].mxu0
        %2299 = vmatprep.mubr.bf16.mxu0 0
        %2300 = vmatmul.mubr.bf16.gmra.mrb[0].mxu0 %v1857
        %v2301 = vpop.f32.mrb[0].mxu0
        %v2302 = vadd.f32 %v2141, %v2301
        %v2303 = vpop.f32.mrb[0].mxu0
        %v2304 = vpop.f32.mrb[0].mxu0
        %v2305 = vadd.f32 %v2144, %v2304
        %v2306 = vpop.f32.mrb[0].mxu0
        %2307 = vmatprep.mubr.bf16.mxu0 0
        %2308 = vmatmul.mubr.bf16.gmra.mrb[0].mxu0 %v1860
        %v2309 = vpop.f32.mrb[0].mxu0
        %v2310 = vadd.f32 %v2149, %v2309
        %v2311 = vpop.f32.mrb[0].mxu0
        %v2312 = vpop.f32.mrb[0].mxu0
        %v2313 = vadd.f32 %v2152, %v2312
        %v2314 = vpop.f32.mrb[0].mxu0
        %2315 = vmatprep.mubr.bf16.mxu0 0
        %2316 = vmatmul.mubr.bf16.gmra.mrb[0].mxu0 %v1863
        %v2317 = vpop.f32.mrb[0].mxu0
        %v2318 = vadd.f32 %v2157, %v2317
        %v2319 = vpop.f32.mrb[0].mxu0
        %v2320 = vpop.f32.mrb[0].mxu0
        %v2321 = vadd.f32 %v2160, %v2320
        %v2322 = vpop.f32.mrb[0].mxu0
        %2323 = vmatprep.mubr.bf16.mxu0 0
        %2324 = vmatmul.mubr.bf16.gmra.mrb[0].mxu0 %v1866
        %v2325 = vpop.f32.mrb[0].mxu0
        %v2326 = vadd.f32 %v2165, %v2325
        %v2327 = vpop.f32.mrb[0].mxu0
        %v2328 = vpop.f32.mrb[0].mxu0
        %v2329 = vadd.f32 %v2168, %v2328
        %v2330 = vpop.f32.mrb[0].mxu0
        %2331 = vmatprep.mubr.bf16.mxu0 0
        %2332 = vmatmul.mubr.bf16.gmra.mrb[0].mxu0 %v1869
        %v2333 = vpop.f32.mrb[0].mxu0
        %v2334 = vadd.f32 %v2173, %v2333
        %v2335 = vpop.f32.mrb[0].mxu0
        %v2336 = vpop.f32.mrb[0].mxu0
        %v2337 = vadd.f32 %v2176, %v2336
        %v2338 = vpop.f32.mrb[0].mxu0
        %2339 = vmatprep.mubr.bf16.mxu0 0
        %2340 = vmatmul.mubr.bf16.gmra.mrb[0].mxu0 %v1872
        %v2341 = vpop.f32.mrb[0].mxu0
        %v2342 = vadd.f32 %v2181, %v2341
        %v2343 = vpop.f32.mrb[0].mxu0
        %v2344 = vpop.f32.mrb[0].mxu0
        %v2345 = vadd.f32 %v2184, %v2344
        %v2346 = vpop.f32.mrb[0].mxu0
        %2347 = vmatprep.mubr.bf16.mxu0 0
        %2348 = vmatmul.mubr.bf16.gmra.mrb[0].mxu0 %v1875
        %v2349 = vpop.f32.mrb[0].mxu0
        %v2350 = vadd.f32 %v2189, %v2349
        %v2351 = vpop.f32.mrb[0].mxu0
        %v2352 = vpop.f32.mrb[0].mxu0
        %v2353 = vadd.f32 %v2192, %v2352
        %v2354 = vpop.f32.mrb[0].mxu0
        %2355 = vmatprep.mubr.bf16.mxu0 0
        %2356 = vmatmul.mubr.bf16.gmra.mrb[0].mxu0 %v1878
        %v2357 = vpop.f32.mrb[0].mxu0
        %v2358 = vadd.f32 %v2197, %v2357
        %v2359 = vpop.f32.mrb[0].mxu0
        %v2360 = vpop.f32.mrb[0].mxu0
        %v2361 = vadd.f32 %v2200, %v2360
        %v2362 = vpop.f32.mrb[0].mxu0
        %2363 = vmatprep.mubr.bf16.mxu0 0
        %2364 = vmatmul.mubr.bf16.gmra.mrb[0].mxu0 %v1881
        %v2365 = vpop.f32.mrb[0].mxu0
        %v2366 = vadd.f32 %v2205, %v2365
        %v2367 = vpop.f32.mrb[0].mxu0
        %v2368 = vpop.f32.mrb[0].mxu0
        %v2369 = vadd.f32 %v2208, %v2368
        %v2370 = vpop.f32.mrb[0].mxu0
        %2371 = vmatprep.mubr.bf16.mxu0 0
        %2372 = vmatmul.mubr.bf16.gmra.mrb[0].mxu0 %v1884
        %v2373 = vpop.f32.mrb[0].mxu0
        %v2374 = vadd.f32 %v2213, %v2373
        %v2375 = vpop.f32.mrb[0].mxu0
        %v2376 = vpop.f32.mrb[0].mxu0
        %v2377 = vadd.f32 %v2216, %v2376
        %v2378 = vpop.f32.mrb[0].mxu0
        %2379 = vmatprep.mubr.bf16.mxu0 0
        %2380 = vmatmul.mubr.bf16.gmra.mrb[0].mxu0 %v1887
        %v2381 = vpop.f32.mrb[0].mxu0
        %v2382 = vadd.f32 %v2221, %v2381
        %v2383 = vpop.f32.mrb[0].mxu0
        %v2384 = vpop.f32.mrb[0].mxu0
        %v2385 = vadd.f32 %v2224, %v2384
        %v2386 = vpop.f32.mrb[0].mxu0
        %2387 = vmatprep.mubr.bf16.mxu0 0
        %2388 = vmatmul.mubr.bf16.gmra.mrb[0].mxu0 %v1890
        %v2389 = vpop.f32.mrb[0].mxu0
        %v2390 = vadd.f32 %v2229, %v2389
        %v2391 = vpop.f32.mrb[0].mxu0
        %v2392 = vpop.f32.mrb[0].mxu0
        %v2393 = vadd.f32 %v2232, %v2392
        %v2394 = vpop.f32.mrb[0].mxu0
        %2395 = vmatprep.mubr.bf16.mxu0 0
        %2396 = vmatmul.mubr.bf16.gmra.mrb[0].mxu0 %v1893
        %v2397 = vpop.f32.mrb[0].mxu0
        %v2398 = vadd.f32 %v2237, %v2397
        %v2399 = vpop.f32.mrb[0].mxu0
        %v2400 = vpop.f32.mrb[0].mxu0
        %v2401 = vadd.f32 %v2240, %v2400
        %v2402 = vpop.f32.mrb[0].mxu0
        %2403 = vmatprep.mubr.bf16.mxu0 0
        %2404 = vmatmul.mubr.bf16.gmra.mrb[0].mxu0 %v1896
        %v2405 = vpop.f32.mrb[0].mxu0
        %v2406 = vadd.f32 %v2245, %v2405
        %v2407 = vpop.f32.mrb[0].mxu0
        %v2408 = vpop.f32.mrb[0].mxu0
        %v2409 = vadd.f32 %v2248, %v2408
        %v2410 = vpop.f32.mrb[0].mxu0
        %2411 = vdwg.mxu0
        %v2412 = vadd.f32 %v1723, %v2286
        %v2413 = vadd.f32 %v1726, %v2289
        %v2414 = vadd.f32 %v1731, %v2294
        %v2415 = vadd.f32 %v1734, %v2297
        %v2416 = vadd.f32 %v1739, %v2302
        %v2417 = vadd.f32 %v1742, %v2305
        %v2418 = vadd.f32 %v1747, %v2310
        %v2419 = vadd.f32 %v1750, %v2313
        %v2420 = vadd.f32 %v1755, %v2318
        %v2421 = vadd.f32 %v1758, %v2321
        %v2422 = vadd.f32 %v1763, %v2326
        %v2423 = vadd.f32 %v1766, %v2329
        %v2424 = vadd.f32 %v1771, %v2334
        %v2425 = vadd.f32 %v1774, %v2337
        %v2426 = vadd.f32 %v1779, %v2342
        %v2427 = vadd.f32 %v1782, %v2345
        %v2428 = vadd.f32 %v1787, %v2350
        %v2429 = vadd.f32 %v1790, %v2353
        %v2430 = vadd.f32 %v1795, %v2358
        %v2431 = vadd.f32 %v1798, %v2361
        %v2432 = vadd.f32 %v1803, %v2366
        %v2433 = vadd.f32 %v1806, %v2369
        %v2434 = vadd.f32 %v1811, %v2374
        %v2435 = vadd.f32 %v1814, %v2377
        %v2436 = vadd.f32 %v1819, %v2382
        %v2437 = vadd.f32 %v1822, %v2385
        %v2438 = vadd.f32 %v1827, %v2390
        %v2439 = vadd.f32 %v1830, %v2393
        %v2440 = vadd.f32 %v1835, %v2398
        %v2441 = vadd.f32 %v1838, %v2401
        %v2442 = vadd.f32 %v1843, %v2406
        %v2443 = vadd.f32 %v1846, %v2409
        %v2444 = vld [vmem:[%s4] sm:$0x1]
        %v2446 = vlaneseq
        %v2447 = vshrl.u32 %v2446, 7
        %v2448 = vsub.s32 0, %v2447
        %v2449 = vrot.slane %v2444, %v2448
        %v2451 = vadd.f32 %v2412, %v2449
        %v2452 = vadd.f32 %v2413, %v2449
        %v2453 = vadd.f32 %v2414, %v2449
        %v2454 = vadd.f32 %v2415, %v2449
        %v2455 = vadd.f32 %v2416, %v2449
        %v2456 = vadd.f32 %v2417, %v2449
        %v2457 = vadd.f32 %v2418, %v2449
        %v2458 = vadd.f32 %v2419, %v2449
        %v2459 = vadd.f32 %v2420, %v2449
        %v2460 = vadd.f32 %v2421, %v2449
        %v2461 = vadd.f32 %v2422, %v2449
        %v2462 = vadd.f32 %v2423, %v2449
        %v2463 = vadd.f32 %v2424, %v2449
        %v2464 = vadd.f32 %v2425, %v2449
        %v2465 = vadd.f32 %v2426, %v2449
        %v2466 = vadd.f32 %v2427, %v2449
        %v2467 = vadd.f32 %v2428, %v2449
        %v2468 = vadd.f32 %v2429, %v2449
        %v2469 = vadd.f32 %v2430, %v2449
        %v2470 = vadd.f32 %v2431, %v2449
        %v2471 = vadd.f32 %v2432, %v2449
        %v2472 = vadd.f32 %v2433, %v2449
        %v2473 = vadd.f32 %v2434, %v2449
        %v2474 = vadd.f32 %v2435, %v2449
        %v2475 = vadd.f32 %v2436, %v2449
        %v2476 = vadd.f32 %v2437, %v2449
        %v2477 = vadd.f32 %v2438, %v2449
        %v2478 = vadd.f32 %v2439, %v2449
        %v2479 = vadd.f32 %v2440, %v2449
        %v2480 = vadd.f32 %v2441, %v2449
        %v2481 = vadd.f32 %v2442, %v2449
        %v2482 = vadd.f32 %v2443, %v2449
        %v2483 = vadd.f32 %v299, %v2451
        %v2484 = vadd.f32 %v300, %v2452
        %v2485 = vadd.f32 %v301, %v2453
        %v2486 = vadd.f32 %v302, %v2454
        %v2487 = vadd.f32 %v303, %v2455
        %v2488 = vadd.f32 %v304, %v2456
        %v2489 = vadd.f32 %v305, %v2457
        %v2490 = vadd.f32 %v306, %v2458
        %v2491 = vadd.f32 %v307, %v2459
        %v2492 = vadd.f32 %v308, %v2460
        %v2493 = vadd.f32 %v309, %v2461
        %v2494 = vadd.f32 %v310, %v2462
        %v2495 = vadd.f32 %v311, %v2463
        %v2496 = vadd.f32 %v312, %v2464
        %v2497 = vadd.f32 %v313, %v2465
        %v2498 = vadd.f32 %v314, %v2466
        %v2499 = vadd.f32 %v315, %v2467
        %v2500 = vadd.f32 %v316, %v2468
        %v2501 = vadd.f32 %v317, %v2469
        %v2502 = vadd.f32 %v318, %v2470
        %v2503 = vadd.f32 %v319, %v2471
        %v2504 = vadd.f32 %v320, %v2472
        %v2505 = vadd.f32 %v321, %v2473
        %v2506 = vadd.f32 %v322, %v2474
        %v2507 = vadd.f32 %v323, %v2475
        %v2508 = vadd.f32 %v324, %v2476
        %v2509 = vadd.f32 %v325, %v2477
        %v2510 = vadd.f32 %v326, %v2478
        %v2511 = vadd.f32 %v327, %v2479
        %v2512 = vadd.f32 %v328, %v2480
        %v2513 = vadd.f32 %v329, %v2481
        %v2514 = vadd.f32 %v330, %v2482
        %2515 = vst [vmem:[%s297] sm:$0xff] %v2483
        %2516 = vst [vmem:[%s297 + $0x8] sm:$0xff] %v2484
        %2517 = vst [vmem:[%s297 + $0x10] sm:$0xff] %v2485
        %2518 = vst [vmem:[%s297 + $0x18] sm:$0xff] %v2486
        %2519 = vst [vmem:[%s297 + $0x20] sm:$0xff] %v2487
        %2520 = vst [vmem:[%s297 + $0x28] sm:$0xff] %v2488
        %2521 = vst [vmem:[%s297 + $0x30] sm:$0xff] %v2489
        %2522 = vst [vmem:[%s297 + $0x38] sm:$0xff] %v2490
        %2523 = vst [vmem:[%s297 + $0x40] sm:$0xff] %v2491
        %2524 = vst [vmem:[%s297 + $0x48] sm:$0xff] %v2492
        %2525 = vst [vmem:[%s297 + $0x50] sm:$0xff] %v2493
        %2526 = vst [vmem:[%s297 + $0x58] sm:$0xff] %v2494
        %2527 = vst [vmem:[%s297 + $0x60] sm:$0xff] %v2495
        %2528 = vst [vmem:[%s297 + $0x68] sm:$0xff] %v2496
        %2529 = vst [vmem:[%s297 + $0x70] sm:$0xff] %v2497
        %2530 = vst [vmem:[%s297 + $0x78] sm:$0xff] %v2498
        %2531 = vst [vmem:[%s297 + $0x80] sm:$0xff] %v2499
        %2532 = vst [vmem:[%s297 + $0x88] sm:$0xff] %v2500
        %2533 = vst [vmem:[%s297 + $0x90] sm:$0xff] %v2501
        %2534 = vst [vmem:[%s297 + $0x98] sm:$0xff] %v2502
        %2535 = vst [vmem:[%s297 + $0xa0] sm:$0xff] %v2503
        %2536 = vst [vmem:[%s297 + $0xa8] sm:$0xff] %v2504
        %2537 = vst [vmem:[%s297 + $0xb0] sm:$0xff] %v2505
        %2538 = vst [vmem:[%s297 + $0xb8] sm:$0xff] %v2506
        %2539 = vst [vmem:[%s297 + $0xc0] sm:$0xff] %v2507
        %2540 = vst [vmem:[%s297 + $0xc8] sm:$0xff] %v2508
        %2541 = vst [vmem:[%s297 + $0xd0] sm:$0xff] %v2509
        %2542 = vst [vmem:[%s297 + $0xd8] sm:$0xff] %v2510
        %2543 = vst [vmem:[%s297 + $0xe0] sm:$0xff] %v2511
        %2544 = vst [vmem:[%s297 + $0xe8] sm:$0xff] %v2512
        %2545 = vst [vmem:[%s297 + $0xf0] sm:$0xff] %v2513
        %2546 = vst [vmem:[%s297 + $0xf8] sm:$0xff] %v2514
        %v2547 = vmax.f32 %v2483, 0.0
        %v2548 = vmax.f32 %v2484, 0.0
        %v2549 = vmax.f32 %v2485, 0.0
        %v2550 = vmax.f32 %v2486, 0.0
        %v2551 = vmax.f32 %v2487, 0.0
        %v2552 = vmax.f32 %v2488, 0.0
        %v2553 = vmax.f32 %v2489, 0.0
        %v2554 = vmax.f32 %v2490, 0.0
        %v2555 = vmax.f32 %v2491, 0.0
        %v2556 = vmax.f32 %v2492, 0.0
        %v2557 = vmax.f32 %v2493, 0.0
        %v2558 = vmax.f32 %v2494, 0.0
        %v2559 = vmax.f32 %v2495, 0.0
        %v2560 = vmax.f32 %v2496, 0.0
        %v2561 = vmax.f32 %v2497, 0.0
        %v2562 = vmax.f32 %v2498, 0.0
        %v2563 = vmax.f32 %v2499, 0.0
        %v2564 = vmax.f32 %v2500, 0.0
        %v2565 = vmax.f32 %v2501, 0.0
        %v2566 = vmax.f32 %v2502, 0.0
        %v2567 = vmax.f32 %v2503, 0.0
        %v2568 = vmax.f32 %v2504, 0.0
        %v2569 = vmax.f32 %v2505, 0.0
        %v2570 = vmax.f32 %v2506, 0.0
        %v2571 = vmax.f32 %v2507, 0.0
        %v2572 = vmax.f32 %v2508, 0.0
        %v2573 = vmax.f32 %v2509, 0.0
        %v2574 = vmax.f32 %v2510, 0.0
        %v2575 = vmax.f32 %v2511, 0.0
        %v2576 = vmax.f32 %v2512, 0.0
        %v2577 = vmax.f32 %v2513, 0.0
        %v2578 = vmax.f32 %v2514, 0.0
        %v2579 = vadd.f32 %v2547, %v2549
        %v2580 = vadd.f32 %v2579, %v2551
        %v2581 = vadd.f32 %v2580, %v2553
        %v2582 = vadd.f32 %v2581, %v2555
        %v2583 = vadd.f32 %v2582, %v2557
        %v2584 = vadd.f32 %v2583, %v2559
        %v2585 = vadd.f32 %v2584, %v2561
        %v2586 = vadd.f32 %v2585, %v2563
        %v2587 = vadd.f32 %v2586, %v2565
        %v2588 = vadd.f32 %v2587, %v2567
        %v2589 = vadd.f32 %v2588, %v2569
        %v2590 = vadd.f32 %v2589, %v2571
        %v2591 = vadd.f32 %v2590, %v2573
        %v2592 = vadd.f32 %v2591, %v2575
        %v2593 = vadd.f32 %v2592, %v2577
        %v2594 = vadd.f32 %v2548, %v2550
        %v2595 = vadd.f32 %v2594, %v2552
        %v2596 = vadd.f32 %v2595, %v2554
        %v2597 = vadd.f32 %v2596, %v2556
        %v2598 = vadd.f32 %v2597, %v2558
        %v2599 = vadd.f32 %v2598, %v2560
        %v2600 = vadd.f32 %v2599, %v2562
        %v2601 = vadd.f32 %v2600, %v2564
        %v2602 = vadd.f32 %v2601, %v2566
        %v2603 = vadd.f32 %v2602, %v2568
        %v2604 = vadd.f32 %v2603, %v2570
        %v2605 = vadd.f32 %v2604, %v2572
        %v2606 = vadd.f32 %v2605, %v2574
        %v2607 = vadd.f32 %v2606, %v2576
        %v2608 = vadd.f32 %v2607, %v2578
        %v2609 = vadd.f32 %v2593, %v2608
        %v2610 = vrot.slane %v2609, 4
        %v2611 = vadd.f32 %v2609, %v2610
        %v2612 = vrot.slane %v2611, 2
        %v2613 = vadd.f32 %v2611, %v2612
        %v2614 = vrot.slane %v2613, 1
        %v2615 = vadd.f32 %v2613, %v2614
        %2616 = vst [vmem:[%s281] sm:$0x1] %v2615
        %v2617 = vmul.f32 %v2547, %v2547
        %v2618 = vmul.f32 %v2548, %v2548
        %v2619 = vmul.f32 %v2549, %v2549
        %v2620 = vmul.f32 %v2550, %v2550
        %v2621 = vmul.f32 %v2551, %v2551
        %v2622 = vmul.f32 %v2552, %v2552
        %v2623 = vmul.f32 %v2553, %v2553
        %v2624 = vmul.f32 %v2554, %v2554
        %v2625 = vmul.f32 %v2555, %v2555
        %v2626 = vmul.f32 %v2556, %v2556
        %v2627 = vmul.f32 %v2557, %v2557
        %v2628 = vmul.f32 %v2558, %v2558
        %v2629 = vmul.f32 %v2559, %v2559
        %v2630 = vmul.f32 %v2560, %v2560
        %v2631 = vmul.f32 %v2561, %v2561
        %v2632 = vmul.f32 %v2562, %v2562
        %v2633 = vmul.f32 %v2563, %v2563
        %v2634 = vmul.f32 %v2564, %v2564
        %v2635 = vmul.f32 %v2565, %v2565
        %v2636 = vmul.f32 %v2566, %v2566
        %v2637 = vmul.f32 %v2567, %v2567
        %v2638 = vmul.f32 %v2568, %v2568
        %v2639 = vmul.f32 %v2569, %v2569
        %v2640 = vmul.f32 %v2570, %v2570
        %v2641 = vmul.f32 %v2571, %v2571
        %v2642 = vmul.f32 %v2572, %v2572
        %v2643 = vmul.f32 %v2573, %v2573
        %v2644 = vmul.f32 %v2574, %v2574
        %v2645 = vmul.f32 %v2575, %v2575
        %v2646 = vmul.f32 %v2576, %v2576
        %v2647 = vmul.f32 %v2577, %v2577
        %v2648 = vmul.f32 %v2578, %v2578
        %v2649 = vadd.f32 %v2617, %v2619
        %v2650 = vadd.f32 %v2649, %v2621
        %v2651 = vadd.f32 %v2650, %v2623
        %v2652 = vadd.f32 %v2651, %v2625
        %v2653 = vadd.f32 %v2652, %v2627
        %v2654 = vadd.f32 %v2653, %v2629
        %v2655 = vadd.f32 %v2654, %v2631
        %v2656 = vadd.f32 %v2655, %v2633
        %v2657 = vadd.f32 %v2656, %v2635
        %v2658 = vadd.f32 %v2657, %v2637
        %v2659 = vadd.f32 %v2658, %v2639
        %v2660 = vadd.f32 %v2659, %v2641
        %v2661 = vadd.f32 %v2660, %v2643
        %v2662 = vadd.f32 %v2661, %v2645
        %v2663 = vadd.f32 %v2662, %v2647
        %v2664 = vadd.f32 %v2618, %v2620
        %v2665 = vadd.f32 %v2664, %v2622
        %v2666 = vadd.f32 %v2665, %v2624
        %v2667 = vadd.f32 %v2666, %v2626
        %v2668 = vadd.f32 %v2667, %v2628
        %v2669 = vadd.f32 %v2668, %v2630
        %v2670 = vadd.f32 %v2669, %v2632
        %v2671 = vadd.f32 %v2670, %v2634
        %v2672 = vadd.f32 %v2671, %v2636
        %v2673 = vadd.f32 %v2672, %v2638
        %v2674 = vadd.f32 %v2673, %v2640
        %v2675 = vadd.f32 %v2674, %v2642
        %v2676 = vadd.f32 %v2675, %v2644
        %v2677 = vadd.f32 %v2676, %v2646
        %v2678 = vadd.f32 %v2677, %v2648
        %v2679 = vadd.f32 %v2663, %v2678
        %v2680 = vrot.slane %v2679, 4
        %v2681 = vadd.f32 %v2679, %v2680
        %v2682 = vrot.slane %v2681, 2
        %v2683 = vadd.f32 %v2681, %v2682
        %v2684 = vrot.slane %v2683, 1
        %v2685 = vadd.f32 %v2683, %v2684
        %2686 = vst [vmem:[%s287] sm:$0x1] %v2685
        %p2687 = scmp.lt.s32.totalorder %s25, 1
        %s2688 = scalar_select %p2687, %s25, 1
        %s2689 = smul.addr %s2688, 32
        %s2690 = smul.addr %s2689, 8
        %s2691 = scalar_lea.vmem %s5, %s2690
        %s2692 = sand.u32 %s169, 1
        %s2693 = scalar_lea.sflag [#allocation4], %s2692
        %s2694 = sand.u32 %s169, 1
        %s2695 = scalar_lea.vmem [#allocation3], %s2694
        %s2696 = sand.u32 %s195, 1
        %s2697 = scalar_lea.sflag [#allocation6], %s2696
        %s2698 = sand.u32 %s195, 1
        %s2699 = scalar_lea.vmem [#allocation5], %s2698
        // Predicated region
        $region41: #{dense_block_forward.7} parent=39 // pred_check
          %p2700 = pneg %p153
        $region42: #{dense_block_forward.7} parent=39 // pred_check_branch
          %2702 = sbr.rel (%p2700) target = $region44
        $region43: #{dense_block_forward.7} parent=39 // pred_region
          _
        $region44: #{dense_block_forward.7} parent=39 // pred_fallthru
          _
        // Predicated region
        $region45: #{dense_block_forward.7} parent=39 // pred_check
          %p2703 = pneg %p179
        $region46: #{dense_block_forward.7} parent=39 // pred_check_branch
          %2705 = sbr.rel (%p2703) target = $region48
        $region47: #{dense_block_forward.7} parent=39 // pred_region
          %s2707 = ssub.s32 16, 16
          %2708 = vsyncadd %s2693, %s2707
          %s2709 = smul.addr %s25, 16
          %s2710 = scalar_lea.hbm %s6, %s2709
          %s2712 = sshll.u32 %s2695, 4
          %s2713 = int_to_ptr.vmem [resolvable:$true] %s2712
          %2715 = dma.vmem_to_hbm [thread:$0]  %s2713, 16, %s2710, %s2693
        $region48: #{dense_block_forward.7} parent=39 // pred_fallthru
          _
        // Predicated region
        $region49: #{dense_block_forward.7} parent=39 // pred_check
          %p2716 = pneg %p205
        $region50: #{dense_block_forward.7} parent=39 // pred_check_branch
          %2718 = sbr.rel (%p2716) target = $region52
        $region51: #{dense_block_forward.7} parent=39 // pred_region
          %s2720 = ssub.s32 16, 16
          %2721 = vsyncadd %s2697, %s2720
          %s2722 = smul.addr %s25, 16
          %s2723 = scalar_lea.hbm %s7, %s2722
          %s2725 = sshll.u32 %s2699, 4
          %s2726 = int_to_ptr.vmem [resolvable:$true] %s2725
          %2728 = dma.vmem_to_hbm [thread:$0]  %s2726, 16, %s2723, %s2697
        $region52: #{dense_block_forward.7} parent=39 // pred_fallthru
          _
      $region40: #{dense_block_forward.7} parent=5 // pred_fallthru
        _
      %p2729 = scmp.le.s32.totalorder 2, %s20
      // Predicated region
      $region53: #{dense_block_forward.7} parent=5 // pred_check
        %p2730 = pneg %p2729
      $region54: #{dense_block_forward.7} parent=5 // pred_check_branch
        %2732 = sbr.rel (%p2730) target = $region56
      $region55: #{dense_block_forward.7} parent=5 // pred_region
        %s2733 = ssub.s32 %s20, 2
        // Predicated region
        $region57: #{dense_block_forward.7} parent=55 // pred_check
          %p2734 = pneg %p159
        $region58: #{dense_block_forward.7} parent=55 // pred_check_branch
          %2736 = sbr.rel (%p2734) target = $region60
        $region59: #{dense_block_forward.7} parent=55 // pred_region
          %p2737 = scmp.lt.s32.totalorder %s26, 1
          %s2738 = scalar_select %p2737, %s26, 1
          %s2739 = smul.addr %s2738, 32
          %s2740 = smul.addr %s2739, 8
          %s2741 = scalar_lea.vmem %s5, %s2740
        $region60: #{dense_block_forward.7} parent=55 // pred_fallthru
          _
        // Predicated region
        $region61: #{dense_block_forward.7} parent=55 // pred_check
          %p2742 = pneg %p185
        $region62: #{dense_block_forward.7} parent=55 // pred_check_branch
          %2744 = sbr.rel (%p2742) target = $region64
        $region63: #{dense_block_forward.7} parent=55 // pred_region
          %s2745 = sand.u32 %s170, 1
          %s2746 = scalar_lea.sflag [#allocation4], %s2745
          %s2747 = sand.u32 %s170, 1
          %s2748 = scalar_lea.vmem [#allocation3], %s2747
          %2749 = dma.done %s2746, 16
        $region64: #{dense_block_forward.7} parent=55 // pred_fallthru
          _
        // Predicated region
        $region65: #{dense_block_forward.7} parent=55 // pred_check
          %p2750 = pneg %p211
        $region66: #{dense_block_forward.7} parent=55 // pred_check_branch
          %2752 = sbr.rel (%p2750) target = $region68
        $region67: #{dense_block_forward.7} parent=55 // pred_region
          %s2753 = sand.u32 %s196, 1
          %s2754 = scalar_lea.sflag [#allocation6], %s2753
          %s2755 = sand.u32 %s196, 1
          %s2756 = scalar_lea.vmem [#allocation5], %s2755
          %2757 = dma.done %s2754, 16
        $region68: #{dense_block_forward.7} parent=55 // pred_fallthru
          _
      $region56: #{dense_block_forward.7} parent=5 // pred_fallthru
        _
    $region6: #{dense_block_forward.7} parent=1 // loop_footer
      %s24 = sadd.s32 1, %s20
    $region7: #{dense_block_forward.7} parent=1 // loop_footer_branch
      %19 = sbr.rel target = $region3
    $region8: #{dense_block_forward.7} parent=1 // loop_exit
      _
    %2758 = vsyncpa [#allocation4], 1
    %s2759 = scalar_lea.sflag [#allocation4], 1
    %2760 = vsyncpa %s2759, 1
    %2761 = vsyncpa [#allocation6], 1
    %s2762 = scalar_lea.sflag [#allocation6], 1
    %2763 = vsyncpa %s2762, 1

</llo_original>
